<compile_context>
chip_gen: v5e
topology: v5e:2x2
jax: 0.10.0
libtpu: 0.0.40
codegen_flags: <defaults>
</compile_context>

<pallas_src>
import numpy as np
import jax
import jax.numpy as jnp
from jax.experimental import pallas as pl
from jax.experimental.pallas import tpu as pltpu


def _round_up(x, m):
    return ((x + m - 1) // m) * m


# ---------------------------------------------------------------------------
# elementwise helpers (lower cleanly inside Mosaic)
# ---------------------------------------------------------------------------
def _softplus(x):
    # numerically stable softplus (matches torch.nn.Softplus), log1p per review
    return jnp.maximum(x, 0.0) + jnp.log1p(jnp.exp(-jnp.abs(x)))


def _sigmoid(x):
    # one EUP transcendental (tanh) instead of exp + divide
    return 0.5 * (jnp.tanh(0.5 * x) + 1.0)


# ---------------------------------------------------------------------------
# Fused kernel.  grid = (n_conv,); per layer step:
#   (layer 0)  nodes = atoms_embed @ W_emb + b_emb            (VMEM resident)
#   p_all  = nodes @ [Wself | Wnbr]                             (NP, 4H)
#   rhs    = [W_rbf_fold ; P_nbr ; P_self + b_fold]             (K_e, 2H)
#   g      = [rbf | nbr_onehot | self_onehot] @ rhs             (NM, 2H)  ONE dot
#   prod   = sigmoid(g[:, :H]) * softplus(g[:, H:])             (NM, H)
#   aggr   = pool_edges @ prod                                  (NP, H)   MXU reduce
#   nodes  = softplus(nodes + aggr)                             (stays in out_ref)
#   (last layer)  crys = cpool @ nodes ; head: sp -> FC -> sp -> FC -> pred
# ---------------------------------------------------------------------------
def _fused_cgcnn_kernel(atoms_ref, embw_ref, embb_ref, lhs_ref, pool_ref,
                        wnode_ref, wrbf_ref, b_ref,
                        cpool_ref, fc1w_ref, fc1b_ref, fc2w_ref, fc2b_ref,
                        nodes_ref, pred_ref, rhs_ref):
    NP, H = nodes_ref.shape
    H2 = 2 * H
    E2p = wrbf_ref.shape[0]
    cd = wnode_ref.dtype                     # matmul compute dtype (f32 or bf16)
    l = pl.program_id(0)

    # layer 0: fused embedding projection seeds the VMEM-resident node table
    @pl.when(l == 0)
    def _():
        nodes_ref[...] = (jnp.dot(atoms_ref[...], embw_ref[...],
                                  preferred_element_type=jnp.float32)
                          + embb_ref[...])

    nodes = nodes_ref[...]                                           # (NP, H) f32

    # one wide dot: columns = [self_filter|self_core | nbr_filter|nbr_core]
    p_all = jnp.dot(nodes.astype(cd), wnode_ref[...],
                    preferred_element_type=jnp.float32)              # (NP, 4H)

    # assemble fused RHS [W_rbf_fold ; P_nbr ; P_self (+ folded bias)] in VMEM
    rhs_ref[0:E2p, :] = wrbf_ref[...]
    rhs_ref[E2p:E2p + NP, :] = p_all[:, H2:].astype(cd)              # P_nbr
    rhs_ref[E2p + NP:, :] = (p_all[:, :H2] + b_ref[...]).astype(cd)  # P_self + b

    # single per-edge MXU dot (filter_layer already folded into fc_full)
    g = jnp.dot(lhs_ref[...], rhs_ref[...],
                preferred_element_type=jnp.float32)                  # (NM, 2H)

    prod = _sigmoid(g[:, :H]) * _softplus(g[:, H:])                  # (NM, H)

    # neighbor reduction as a block-ones pool matmul (stays 2-D, on the MXU)
    aggr = jnp.dot(pool_ref[...], prod.astype(cd),
                   preferred_element_type=jnp.float32)               # (NP, H)

    new_nodes = _softplus(nodes + aggr)
    nodes_ref[...] = new_nodes

    # last layer: fused readout (crystal mean pool + softplus/FC/softplus/FC)
    @pl.when(l == pl.num_programs(0) - 1)
    def _():
        crys = jnp.dot(cpool_ref[...], new_nodes,
                       preferred_element_type=jnp.float32)           # (B_pad, H)
        crys = _softplus(crys)
        crys = jnp.dot(crys, fc1w_ref[...],
                       preferred_element_type=jnp.float32) + fc1b_ref[...]
        crys = _softplus(crys)
        pred_ref[...] = (jnp.dot(crys, fc2w_ref[...],
                                 preferred_element_type=jnp.float32)
                         + fc2b_ref[...])


def cgcnn_fused_pallas(params, atoms_embed, rbf_edges, nbrs_idx, num_atoms,
                       compute_dtype=jnp.float32):
    """Embedding + all ConvLayers + pooling + FC head in one pallas_call."""
    N, F_in = atoms_embed.shape
    M = nbrs_idx.shape[1]
    E2 = rbf_edges.shape[2]
    H = params['emb_w'].shape[1]
    H2, H4 = 2 * H, 4 * H
    L = len(params['convs'])
    B = len(num_atoms)

    N_pad = _round_up(N, 8)
    E2_pad = _round_up(E2, 8)
    B_pad = _round_up(B, 8)
    NM = N_pad * M
    K_e = E2_pad + 2 * N_pad
    pad_n = N_pad - N

    # --- static 0/1 structure matrices built with numpy (no per-call XLA) ---
    # neighbor-sum pool: pool[n, n*M+m] = 1 ; self-selector is its transpose
    pool_np = np.kron(np.eye(N_pad, dtype=np.float32), np.ones((1, M), np.float32))
    selfsel_np = pool_np.T                                           # (NM, N_pad)
    cpool_np = np.zeros((B_pad, N_pad), np.float32)                  # crystal mean
    off = 0
    for b, c in enumerate(num_atoms):
        cpool_np[b, off:off + c] = 1.0 / float(c)
        off += c

    # --- fused per-edge LHS  [rbf | neighbor-onehot | self-onehot]  ---------
    rbf_flat = jnp.pad(rbf_edges, ((0, pad_n), (0, 0), (0, E2_pad - E2)))
    rbf_flat = rbf_flat.reshape(NM, E2_pad)
    idx_p = jnp.pad(nbrs_idx, ((0, pad_n), (0, 0)))    # padded rows index node 0
    onehot = jax.nn.one_hot(idx_p.reshape(NM), N_pad, dtype=jnp.float32)
    # NOTE(padding invariant): padded atom rows (>= N) gather node 0 and carry
    # garbage across layers.  This is safe because real edges never index a
    # padded node (nbrs_idx < N), the per-node pool is block-diagonal, cpool has
    # zero columns for padded atoms, and outputs are sliced to the real extent.
    lhs = jnp.concatenate([rbf_flat, onehot, jnp.asarray(selfsel_np)], axis=1)
    lhs = lhs.astype(compute_dtype)                                  # (NM, K_e)

    # --- fold filter_layer into fc_full; stack per-layer weights ------------
    wnode_l, wrbf_l, b_l = [], [], []
    for p in params['convs']:
        wn = p['full_w'][:H]             # self rows   (H, 2H)
        we = p['full_w'][H:2 * H]        # edge rows   (H, 2H)
        wb = p['full_w'][2 * H:]         # nbr rows    (H, 2H)
        wnode_l.append(jnp.concatenate([wn, wb], axis=1))            # (H, 4H)
        wrbf = p['filter_w'] @ we                                    # (E2, 2H)
        wrbf_l.append(jnp.pad(wrbf, ((0, E2_pad - E2), (0, 0))))
        b_l.append((p['full_b'] + p['filter_b'] @ we).reshape(1, H2))
    wnode_all = jnp.stack(wnode_l).astype(compute_dtype)             # (L, H, 4H)
    wrbf_all = jnp.stack(wrbf_l).astype(compute_dtype)               # (L, E2p, 2H)
    b_all = jnp.stack(b_l)                                           # (L, 1, 2H)

    atoms_p = jnp.pad(atoms_embed, ((0, pad_n), (0, 0))).astype(compute_dtype)
    emb_w = params['emb_w'].astype(compute_dtype)
    emb_b = params['emb_b'].reshape(1, H)
    pool_edge = jnp.asarray(pool_np, dtype=compute_dtype)            # (N_pad, NM)
    cpool = jnp.asarray(cpool_np)                                    # (B_pad, N_pad)
    fc1_w = params['conv_to_fc_w']
    fc1_b = params['conv_to_fc_b'].reshape(1, H)
    fc2_w = params['fc_out_w']
    fc2_b = params['fc_out_b'].reshape(1, 1)

    args = (atoms_p, emb_w, emb_b, lhs, pool_edge,
            wnode_all, wrbf_all, b_all,
            cpool, fc1_w, fc1_b, fc2_w, fc2_b)

    def run(use_buffered):
        def inv(shape):
            # grid-invariant operand: single-buffer it so it does not pay
            # 2x double-buffering across the (sequential) layer axis.
            imap = lambda l, n=len(shape): (0,) * n
            if use_buffered:
                return pl.BlockSpec(shape, imap, pipeline_mode=pl.Buffered(1))
            return pl.BlockSpec(shape, imap)

        in_specs = [
            inv((N_pad, F_in)),                                      # atoms_embed
            inv((F_in, H)),                                          # emb_w
            inv((1, H)),                                             # emb_b
            inv((NM, K_e)),                                          # edge LHS
            inv((N_pad, NM)),                                        # edge pool
            pl.BlockSpec((None, H, H4), lambda l: (l, 0, 0)),        # Wnode[l]
            pl.BlockSpec((None, E2_pad, H2), lambda l: (l, 0, 0)),   # Wrbf[l]
            pl.BlockSpec((None, 1, H2), lambda l: (l, 0, 0)),        # bias[l]
            inv((B_pad, N_pad)),                                     # crystal pool
            inv((H, H)), inv((1, H)),                                # conv_to_fc
            inv((H, 1)), inv((1, 1)),                                # fc_out
        ]
        out_specs = (pl.BlockSpec((N_pad, H), lambda l: (0, 0)),     # node table
                     pl.BlockSpec((B_pad, 1), lambda l: (0, 0)))     # prediction
        return pl.pallas_call(
            _fused_cgcnn_kernel,
            out_shape=(jax.ShapeDtypeStruct((N_pad, H), jnp.float32),
                       jax.ShapeDtypeStruct((B_pad, 1), jnp.float32)),
            grid=(L,),
            in_specs=in_specs,
            out_specs=out_specs,
            scratch_shapes=[pltpu.VMEM((K_e, H2), compute_dtype)],   # fused RHS
            compiler_params=pltpu.CompilerParams(
                dimension_semantics=("arbitrary",),   # layers are sequential
                vmem_limit_bytes=32 * 1024 * 1024),
        )(*args)

    try:
        _, pred = run(use_buffered=hasattr(pl, "Buffered"))
    except Exception:
        # pipeline_mode=pl.Buffered(1) unsupported on this build -> default bufs
        _, pred = run(use_buffered=False)

    return jnp.squeeze(pred[:B])


# ---------------------------------------------------------------------------
# Pure-JAX pieces (RBF expansion glue + reference path) and full forward
# ---------------------------------------------------------------------------
def _rbf_expand(d, cutoff, n_emb):
    # matches: where(d<cutoff, sin(d*k*pi/cutoff)/d, 0); then x*0.5*(cos(pi*x/cutoff)+1)
    k = jnp.arange(1, n_emb + 1, dtype=d.dtype)
    safe_d = jnp.where(d > 0, d, 1.0)   # guard only the degenerate 0/0 case
    x = jnp.where(d < cutoff, jnp.sin(d * k * jnp.pi / cutoff) / safe_d, 0.0)
    return x * 0.5 * (jnp.cos(jnp.pi * x / cutoff) + 1.0)


def _conv_layer_ref(nodes, rbf_edges, nbrs_idx, layer):
    N, H = nodes.shape
    M = nbrs_idx.shape[1]
    edges = rbf_edges @ layer['filter_w'] + layer['filter_b']
    nbrs_fea = nodes[nbrs_idx]
    total = jnp.concatenate(
        [jnp.broadcast_to(nodes[:, None, :], (N, M, H)), edges, nbrs_fea], axis=2)
    gated = total @ layer['full_w'] + layer['full_b']
    filt = jax.nn.sigmoid(gated[:, :, :H])
    core = jax.nn.softplus(gated[:, :, H:])
    return jax.nn.softplus(nodes + jnp.sum(filt * core, axis=1))


def model_forward(params, input_dict, *, cutoff, edge_embedding_size,
                  use_pallas=True, compute_dtype=jnp.float32):
    bonds = input_dict['nbrs_fea']                        # (N, M, 2)
    ches = _rbf_expand(bonds[:, :, 0:1], cutoff, edge_embedding_size)
    vdws = _rbf_expand(bonds[:, :, 1:2], cutoff, edge_embedding_size)
    rbf_edges = jnp.concatenate([ches, vdws], axis=2)     # (N, M, 2E)
    nbrs_idx = input_dict['nbrs_idx']
    num_atoms = list(input_dict['num_atoms'])

    if use_pallas:
        return cgcnn_fused_pallas(params, input_dict['atoms_embed'], rbf_edges,
                                  nbrs_idx, num_atoms,
                                  compute_dtype=compute_dtype)

    # --- pure-JAX reference path --------------------------------------------
    nodes = input_dict['atoms_embed'] @ params['emb_w'] + params['emb_b']
    for layer in params['convs']:
        nodes = _conv_layer_ref(nodes, rbf_edges, nbrs_idx, layer)
    B = len(num_atoms)
    seg_ids = jnp.asarray(np.repeat(np.arange(B), num_atoms), dtype=jnp.int32)
    sums = jax.ops.segment_sum(nodes, seg_ids, num_segments=B)
    crys = sums / jnp.asarray(np.asarray(num_atoms, np.float32)).reshape(B, 1)
    crys = jax.nn.softplus(crys)
    crys = crys @ params['conv_to_fc_w'] + params['conv_to_fc_b']
    crys = jax.nn.softplus(crys)
    pred = crys @ params['fc_out_w'] + params['fc_out_b']
    return jnp.squeeze(pred)


# ---------------------------------------------------------------------------
if __name__ == "__main__":
    cutoff = 4.0
    node_input_size = 13
    E = 8          # edge_embedding_size
    H = 32         # hidden_size
    n_conv = 3
    N = 16         # total atoms
    M = 8          # neighbors per atom
    num_atoms = [9, 7]   # two crystals

    key = jax.random.PRNGKey(0)
    keys = jax.random.split(key, 32)

    def w(k, shape, scale=0.1):
        return jax.random.normal(k, shape, jnp.float32) * scale

    params = {
        'emb_w': w(keys[0], (node_input_size, H)),
        'emb_b': w(keys[1], (H,)),
        'convs': [],
        'conv_to_fc_w': w(keys[2], (H, H)),
        'conv_to_fc_b': w(keys[3], (H,)),
        'fc_out_w': w(keys[4], (H, 1)),
        'fc_out_b': w(keys[5], (1,)),
    }
    for li in range(n_conv):
        base = 6 + 4 * li
        params['convs'].append({
            'filter_w': w(keys[base + 0], (2 * E, H)),
            'filter_b': w(keys[base + 1], (H,)),
            'full_w': w(keys[base + 2], (3 * H, 2 * H)),
            'full_b': w(keys[base + 3], (2 * H,)),
        })

    kd = jax.random.split(keys[31], 3)
    atoms_embed = jax.random.normal(kd[0], (N, node_input_size), jnp.float32)
    nbrs_fea = jax.random.uniform(kd[1], (N, M, 2), jnp.float32,
                                  minval=0.5, maxval=5.0)   # some past cutoff
    nbrs_idx = jax.random.randint(kd[2], (N, M), 0, N)

    input_dict = {'atoms_embed': atoms_embed, 'nbrs_fea': nbrs_fea,
                  'nbrs_idx': nbrs_idx, 'num_atoms': num_atoms}

    # f32 default keeps the numerics bit-comparable to the reference; on
    # v6e/v7x pass compute_dtype=jnp.bfloat16 (and re-validate tolerance).
    out = model_forward(params, input_dict, cutoff=cutoff,
                        edge_embedding_size=E, use_pallas=True)
    out = jax.block_until_ready(out)

    ref = model_forward(params, input_dict, cutoff=cutoff,
                        edge_embedding_size=E, use_pallas=False)
    ref = jax.block_until_ready(ref)

    assert out.shape == (len(num_atoms),)
    assert np.allclose(np.asarray(out), np.asarray(ref), rtol=1e-3, atol=1e-3), \
        (np.asarray(out), np.asarray(ref))
    print("KERNEL_OK")
</pallas_src>

<mosaic_0001>
module attributes {stable_mosaic.version = 11 : i64} {
  func.func @_fused_cgcnn_kernel(%arg0: i32, %arg1: memref<16x13xf32, #tpu.memory_space<vmem>>, %arg2: memref<13x32xf32, #tpu.memory_space<vmem>>, %arg3: memref<1x32xf32, #tpu.memory_space<vmem>>, %arg4: memref<128x48xf32, #tpu.memory_space<vmem>>, %arg5: memref<16x128xf32, #tpu.memory_space<vmem>>, %arg6: memref<1x32x128xf32, #tpu.memory_space<vmem>>, %arg7: memref<1x16x64xf32, #tpu.memory_space<vmem>>, %arg8: memref<1x1x64xf32, #tpu.memory_space<vmem>>, %arg9: memref<8x16xf32, #tpu.memory_space<vmem>>, %arg10: memref<32x32xf32, #tpu.memory_space<vmem>>, %arg11: memref<1x32xf32, #tpu.memory_space<vmem>>, %arg12: memref<32x1xf32, #tpu.memory_space<vmem>>, %arg13: memref<1x1xf32, #tpu.memory_space<vmem>>, %arg14: memref<16x32xf32, #tpu.memory_space<vmem>>, %arg15: memref<8x1xf32, #tpu.memory_space<vmem>>, %arg16: memref<48x64xf32, #tpu.memory_space<vmem>>) attributes {dimension_semantics = [#tpu.dimension_semantics<arbitrary>], iteration_bounds = array<i64: 3>, scalar_prefetch = 0 : i64, scratch_operands = 1 : i64, tpu.core_type = #tpu.core_type<tc>, window_params = [{pipeline_mode = #tpu.pipeline_mode<synchronous>, transform_indices = @transform_0, window_bounds = array<i64: 16, 13>}, {pipeline_mode = #tpu.pipeline_mode<synchronous>, transform_indices = @transform_1, window_bounds = array<i64: 13, 32>}, {pipeline_mode = #tpu.pipeline_mode<synchronous>, transform_indices = @transform_2, window_bounds = array<i64: 1, 32>}, {pipeline_mode = #tpu.pipeline_mode<synchronous>, transform_indices = @transform_3, window_bounds = array<i64: 128, 48>}, {pipeline_mode = #tpu.pipeline_mode<synchronous>, transform_indices = @transform_4, window_bounds = array<i64: 16, 128>}, {transform_indices = @transform_5, window_bounds = array<i64: 1, 32, 128>}, {transform_indices = @transform_6, window_bounds = array<i64: 1, 16, 64>}, {transform_indices = @transform_7, window_bounds = array<i64: 1, 1, 64>}, {pipeline_mode = #tpu.pipeline_mode<synchronous>, transform_indices = @transform_8, window_bounds = array<i64: 8, 16>}, {pipeline_mode = #tpu.pipeline_mode<synchronous>, transform_indices = @transform_9, window_bounds = array<i64: 32, 32>}, {pipeline_mode = #tpu.pipeline_mode<synchronous>, transform_indices = @transform_10, window_bounds = array<i64: 1, 32>}, {pipeline_mode = #tpu.pipeline_mode<synchronous>, transform_indices = @transform_11, window_bounds = array<i64: 32, 1>}, {pipeline_mode = #tpu.pipeline_mode<synchronous>, transform_indices = @transform_12, window_bounds = array<i64: 1, 1>}, {pipeline_mode = #tpu.pipeline_mode<synchronous>, transform_indices = @transform_13, window_bounds = array<i64: 16, 32>}, {pipeline_mode = #tpu.pipeline_mode<synchronous>, transform_indices = @transform_14, window_bounds = array<i64: 8, 1>}]} {
    %c0_i32 = arith.constant 0 : i32
    %0 = arith.cmpi eq, %arg0, %c0_i32 : i32
    %1 = arith.extui %0 : i1 to i32
    %c0_i32_0 = arith.constant 0 : i32
    %2 = arith.cmpi ne, %1, %c0_i32_0 : i32
    scf.if %2 {
      %c0_33 = arith.constant 0 : index
      %c0_34 = arith.constant 0 : index
      %54 = vector.load %arg1[%c0_33, %c0_34] : memref<16x13xf32, #tpu.memory_space<vmem>>, vector<16x13xf32>
      %c0_35 = arith.constant 0 : index
      %c0_36 = arith.constant 0 : index
      %55 = vector.load %arg2[%c0_35, %c0_36] : memref<13x32xf32, #tpu.memory_space<vmem>>, vector<13x32xf32>
      %cst_37 = arith.constant dense<0.000000e+00> : vector<16x32xf32>
      %56 = tpu.matmul %54, %55, %cst_37 {dimension_numbers = #tpu.dot_dimension_numbers<[1], [0], [0], [1], [0, 0, 1, 1], [], []>} : vector<16x13xf32>, vector<13x32xf32>, vector<16x32xf32> -> vector<16x32xf32>
      %c0_38 = arith.constant 0 : index
      %c0_39 = arith.constant 0 : index
      %57 = vector.load %arg3[%c0_38, %c0_39] : memref<1x32xf32, #tpu.memory_space<vmem>>, vector<1x32xf32>
      %58 = vector.broadcast %57 : vector<1x32xf32> to vector<16x32xf32>
      %59 = arith.addf %56, %58 : vector<16x32xf32>
      %c0_40 = arith.constant 0 : index
      %c0_41 = arith.constant 0 : index
      %60 = vector.load %arg14[%c0_40, %c0_41] : memref<16x32xf32, #tpu.memory_space<vmem>>, vector<16x32xf32>
      tpu.vector_store %arg14[%c0_40, %c0_41], %59 {strides = array<i32>} : memref<16x32xf32, #tpu.memory_space<vmem>>, vector<16x32xf32>,
    } else {
    }
    %c0 = arith.constant 0 : index
    %c0_1 = arith.constant 0 : index
    %3 = vector.load %arg14[%c0, %c0_1] : memref<16x32xf32, #tpu.memory_space<vmem>>, vector<16x32xf32>
    %c0_2 = arith.constant 0 : index
    %c0_3 = arith.constant 0 : index
    %c0_4 = arith.constant 0 : index
    %4 = vector.load %arg6[%c0_2, %c0_3, %c0_4] : memref<1x32x128xf32, #tpu.memory_space<vmem>>, vector<1x32x128xf32>
    %5 = vector.shape_cast %4 : vector<1x32x128xf32> to vector<32x128xf32>
    %cst = arith.constant dense<0.000000e+00> : vector<16x128xf32>
    %6 = tpu.matmul %3, %5, %cst {dimension_numbers = #tpu.dot_dimension_numbers<[1], [0], [0], [1], [0, 0, 1, 1], [], []>} : vector<16x32xf32>, vector<32x128xf32>, vector<16x128xf32> -> vector<16x128xf32>
    %c0_5 = arith.constant 0 : index
    %c0_6 = arith.constant 0 : index
    %c0_7 = arith.constant 0 : index
    %7 = vector.load %arg7[%c0_5, %c0_6, %c0_7] : memref<1x16x64xf32, #tpu.memory_space<vmem>>, vector<1x16x64xf32>
    %8 = vector.shape_cast %7 : vector<1x16x64xf32> to vector<16x64xf32>
    %c0_8 = arith.constant 0 : index
    %c0_9 = arith.constant 0 : index
    %9 = vector.load %arg16[%c0_8, %c0_9] : memref<48x64xf32, #tpu.memory_space<vmem>>, vector<16x64xf32>
    tpu.vector_store %arg16[%c0_8, %c0_9], %8 {strides = array<i32>} : memref<48x64xf32, #tpu.memory_space<vmem>>, vector<16x64xf32>,
    %10 = vector.extract_strided_slice %6 {offsets = [0, 64], sizes = [16, 64], strides = [1, 1]} : vector<16x128xf32> to vector<16x64xf32>
    %c16 = arith.constant 16 : index
    %c0_10 = arith.constant 0 : index
    %11 = vector.load %arg16[%c16, %c0_10] : memref<48x64xf32, #tpu.memory_space<vmem>>, vector<16x64xf32>
    tpu.vector_store %arg16[%c16, %c0_10], %10 {strides = array<i32>} : memref<48x64xf32, #tpu.memory_space<vmem>>, vector<16x64xf32>,
    %12 = vector.extract_strided_slice %6 {offsets = [0, 0], sizes = [16, 64], strides = [1, 1]} : vector<16x128xf32> to vector<16x64xf32>
    %c0_11 = arith.constant 0 : index
    %c0_12 = arith.constant 0 : index
    %c0_13 = arith.constant 0 : index
    %13 = vector.load %arg8[%c0_11, %c0_12, %c0_13] : memref<1x1x64xf32, #tpu.memory_space<vmem>>, vector<1x1x64xf32>
    %14 = vector.shape_cast %13 : vector<1x1x64xf32> to vector<1x64xf32>
    %15 = vector.broadcast %14 : vector<1x64xf32> to vector<16x64xf32>
    %16 = arith.addf %12, %15 : vector<16x64xf32>
    %c32 = arith.constant 32 : index
    %c0_14 = arith.constant 0 : index
    %17 = vector.load %arg16[%c32, %c0_14] : memref<48x64xf32, #tpu.memory_space<vmem>>, vector<16x64xf32>
    tpu.vector_store %arg16[%c32, %c0_14], %16 {strides = array<i32>} : memref<48x64xf32, #tpu.memory_space<vmem>>, vector<16x64xf32>,
    %c0_15 = arith.constant 0 : index
    %c0_16 = arith.constant 0 : index
    %18 = vector.load %arg4[%c0_15, %c0_16] : memref<128x48xf32, #tpu.memory_space<vmem>>, vector<128x48xf32>
    %c0_17 = arith.constant 0 : index
    %c0_18 = arith.constant 0 : index
    %19 = vector.load %arg16[%c0_17, %c0_18] : memref<48x64xf32, #tpu.memory_space<vmem>>, vector<48x64xf32>
    %cst_19 = arith.constant dense<0.000000e+00> : vector<128x64xf32>
    %20 = tpu.matmul %18, %19, %cst_19 {dimension_numbers = #tpu.dot_dimension_numbers<[1], [0], [0], [1], [0, 0, 1, 1], [], []>} : vector<128x48xf32>, vector<48x64xf32>, vector<128x64xf32> -> vector<128x64xf32>
    %21 = vector.extract_strided_slice %20 {offsets = [0, 0], sizes = [128, 32], strides = [1, 1]} : vector<128x64xf32> to vector<128x32xf32>
    %cst_20 = arith.constant 5.000000e-01 : f32
    %22 = vector.broadcast %cst_20 : f32 to vector<128x32xf32>
    %23 = arith.mulf %22, %21 : vector<128x32xf32>
    %24 = math.tanh %23 : vector<128x32xf32>
    %cst_21 = arith.constant 1.000000e+00 : f32
    %25 = vector.broadcast %cst_21 : f32 to vector<128x32xf32>
    %26 = arith.addf %24, %25 : vector<128x32xf32>
    %cst_22 = arith.constant 5.000000e-01 : f32
    %27 = vector.broadcast %cst_22 : f32 to vector<128x32xf32>
    %28 = arith.mulf %27, %26 : vector<128x32xf32>
    %29 = vector.extract_strided_slice %20 {offsets = [0, 32], sizes = [128, 32], strides = [1, 1]} : vector<128x64xf32> to vector<128x32xf32>
    %cst_23 = arith.constant 0.000000e+00 : f32
    %30 = vector.broadcast %cst_23 : f32 to vector<128x32xf32>
    %31 = arith.maximumf %29, %30 : vector<128x32xf32>
    %32 = math.absf %29 : vector<128x32xf32>
    %cst_24 = arith.constant 0.000000e+00 : f32
    %33 = vector.broadcast %cst_24 : f32 to vector<128x32xf32>
    %34 = arith.subf %33, %32 : vector<128x32xf32>
    %35 = math.exp %34 : vector<128x32xf32>
    %36 = math.log1p %35 : vector<128x32xf32>
    %37 = arith.addf %31, %36 : vector<128x32xf32>
    %38 = arith.mulf %28, %37 : vector<128x32xf32>
    %c0_25 = arith.constant 0 : index
    %c0_26 = arith.constant 0 : index
    %39 = vector.load %arg5[%c0_25, %c0_26] : memref<16x128xf32, #tpu.memory_space<vmem>>, vector<16x128xf32>
    %cst_27 = arith.constant dense<0.000000e+00> : vector<16x32xf32>
    %40 = tpu.matmul %39, %38, %cst_27 {dimension_numbers = #tpu.dot_dimension_numbers<[1], [0], [0], [1], [0, 0, 1, 1], [], []>} : vector<16x128xf32>, vector<128x32xf32>, vector<16x32xf32> -> vector<16x32xf32>
    %41 = arith.addf %3, %40 : vector<16x32xf32>
    %cst_28 = arith.constant 0.000000e+00 : f32
    %42 = vector.broadcast %cst_28 : f32 to vector<16x32xf32>
    %43 = arith.maximumf %41, %42 : vector<16x32xf32>
    %44 = math.absf %41 : vector<16x32xf32>
    %cst_29 = arith.constant 0.000000e+00 : f32
    %45 = vector.broadcast %cst_29 : f32 to vector<16x32xf32>
    %46 = arith.subf %45, %44 : vector<16x32xf32>
    %47 = math.exp %46 : vector<16x32xf32>
    %48 = math.log1p %47 : vector<16x32xf32>
    %49 = arith.addf %43, %48 : vector<16x32xf32>
    %c0_30 = arith.constant 0 : index
    %c0_31 = arith.constant 0 : index
    %50 = vector.load %arg14[%c0_30, %c0_31] : memref<16x32xf32, #tpu.memory_space<vmem>>, vector<16x32xf32>
    tpu.vector_store %arg14[%c0_30, %c0_31], %49 {strides = array<i32>} : memref<16x32xf32, #tpu.memory_space<vmem>>, vector<16x32xf32>,
    %c2_i32 = arith.constant 2 : i32
    %51 = arith.cmpi eq, %arg0, %c2_i32 : i32
    %52 = arith.extui %51 : i1 to i32
    %c0_i32_32 = arith.constant 0 : i32
    %53 = arith.cmpi ne, %52, %c0_i32_32 : i32
    scf.if %53 {
      %c0_33 = arith.constant 0 : index
      %c0_34 = arith.constant 0 : index
      %54 = vector.load %arg9[%c0_33, %c0_34] : memref<8x16xf32, #tpu.memory_space<vmem>>, vector<8x16xf32>
      %cst_35 = arith.constant dense<0.000000e+00> : vector<8x32xf32>
      %55 = tpu.matmul %54, %49, %cst_35 {dimension_numbers = #tpu.dot_dimension_numbers<[1], [0], [0], [1], [0, 0, 1, 1], [], []>} : vector<8x16xf32>, vector<16x32xf32>, vector<8x32xf32> -> vector<8x32xf32>
      %cst_36 = arith.constant 0.000000e+00 : f32
      %56 = vector.broadcast %cst_36 : f32 to vector<8x32xf32>
      %57 = arith.maximumf %55, %56 : vector<8x32xf32>
      %58 = math.absf %55 : vector<8x32xf32>
      %cst_37 = arith.constant 0.000000e+00 : f32
      %59 = vector.broadcast %cst_37 : f32 to vector<8x32xf32>
      %60 = arith.subf %59, %58 : vector<8x32xf32>
      %61 = math.exp %60 : vector<8x32xf32>
      %62 = math.log1p %61 : vector<8x32xf32>
      %63 = arith.addf %57, %62 : vector<8x32xf32>
      %c0_38 = arith.constant 0 : index
      %c0_39 = arith.constant 0 : index
      %64 = vector.load %arg10[%c0_38, %c0_39] : memref<32x32xf32, #tpu.memory_space<vmem>>, vector<32x32xf32>
      %cst_40 = arith.constant dense<0.000000e+00> : vector<8x32xf32>
      %65 = tpu.matmul %63, %64, %cst_40 {dimension_numbers = #tpu.dot_dimension_numbers<[1], [0], [0], [1], [0, 0, 1, 1], [], []>} : vector<8x32xf32>, vector<32x32xf32>, vector<8x32xf32> -> vector<8x32xf32>
      %c0_41 = arith.constant 0 : index
      %c0_42 = arith.constant 0 : index
      %66 = vector.load %arg11[%c0_41, %c0_42] : memref<1x32xf32, #tpu.memory_space<vmem>>, vector<1x32xf32>
      %67 = vector.broadcast %66 : vector<1x32xf32> to vector<8x32xf32>
      %68 = arith.addf %65, %67 : vector<8x32xf32>
      %cst_43 = arith.constant 0.000000e+00 : f32
      %69 = vector.broadcast %cst_43 : f32 to vector<8x32xf32>
      %70 = arith.maximumf %68, %69 : vector<8x32xf32>
      %71 = math.absf %68 : vector<8x32xf32>
      %cst_44 = arith.constant 0.000000e+00 : f32
      %72 = vector.broadcast %cst_44 : f32 to vector<8x32xf32>
      %73 = arith.subf %72, %71 : vector<8x32xf32>
      %74 = math.exp %73 : vector<8x32xf32>
      %75 = math.log1p %74 : vector<8x32xf32>
      %76 = arith.addf %70, %75 : vector<8x32xf32>
      %c0_45 = arith.constant 0 : index
      %c0_46 = arith.constant 0 : index
      %77 = vector.load %arg12[%c0_45, %c0_46] : memref<32x1xf32, #tpu.memory_space<vmem>>, vector<32x1xf32>
      %cst_47 = arith.constant dense<0.000000e+00> : vector<8x1xf32>
      %78 = tpu.matmul %76, %77, %cst_47 {dimension_numbers = #tpu.dot_dimension_numbers<[1], [0], [0], [1], [0, 0, 1, 1], [], []>} : vector<8x32xf32>, vector<32x1xf32>, vector<8x1xf32> -> vector<8x1xf32>
      %c0_48 = arith.constant 0 : index
      %c0_49 = arith.constant 0 : index
      %79 = vector.load %arg13[%c0_48, %c0_49] : memref<1x1xf32, #tpu.memory_space<vmem>>, vector<1x1xf32>
      %80 = vector.broadcast %79 : vector<1x1xf32> to vector<8x1xf32>
      %81 = arith.addf %78, %80 : vector<8x1xf32>
      %c0_50 = arith.constant 0 : index
      %c0_51 = arith.constant 0 : index
      %82 = vector.load %arg15[%c0_50, %c0_51] : memref<8x1xf32, #tpu.memory_space<vmem>>, vector<8x1xf32>
      tpu.vector_store %arg15[%c0_50, %c0_51], %81 {strides = array<i32>} : memref<8x1xf32, #tpu.memory_space<vmem>>, vector<8x1xf32>,
    } else {
    }
    return
  }
  func.func @transform_0(%arg0: i32) -> (i32, i32) {
    %c0_i32 = arith.constant 0 : i32
    %c0_i32_0 = arith.constant 0 : i32
    %c0_i32_1 = arith.constant 0 : i32
    return %c0_i32, %c0_i32_0 : i32, i32
  }
  func.func @transform_1(%arg0: i32) -> (i32, i32) {
    %c0_i32 = arith.constant 0 : i32
    %c0_i32_0 = arith.constant 0 : i32
    %c0_i32_1 = arith.constant 0 : i32
    return %c0_i32, %c0_i32_0 : i32, i32
  }
  func.func @transform_2(%arg0: i32) -> (i32, i32) {
    %c0_i32 = arith.constant 0 : i32
    %c0_i32_0 = arith.constant 0 : i32
    %c0_i32_1 = arith.constant 0 : i32
    return %c0_i32, %c0_i32_0 : i32, i32
  }
  func.func @transform_3(%arg0: i32) -> (i32, i32) {
    %c0_i32 = arith.constant 0 : i32
    %c0_i32_0 = arith.constant 0 : i32
    %c0_i32_1 = arith.constant 0 : i32
    return %c0_i32, %c0_i32_0 : i32, i32
  }
  func.func @transform_4(%arg0: i32) -> (i32, i32) {
    %c0_i32 = arith.constant 0 : i32
    %c0_i32_0 = arith.constant 0 : i32
    %c0_i32_1 = arith.constant 0 : i32
    return %c0_i32, %c0_i32_0 : i32, i32
  }
  func.func @transform_5(%arg0: i32) -> (i32, i32, i32) {
    %c0_i32 = arith.constant 0 : i32
    %c0_i32_0 = arith.constant 0 : i32
    %c0_i32_1 = arith.constant 0 : i32
    return %arg0, %c0_i32, %c0_i32_0 : i32, i32, i32
  }
  func.func @transform_6(%arg0: i32) -> (i32, i32, i32) {
    %c0_i32 = arith.constant 0 : i32
    %c0_i32_0 = arith.constant 0 : i32
    %c0_i32_1 = arith.constant 0 : i32
    return %arg0, %c0_i32, %c0_i32_0 : i32, i32, i32
  }
  func.func @transform_7(%arg0: i32) -> (i32, i32, i32) {
    %c0_i32 = arith.constant 0 : i32
    %c0_i32_0 = arith.constant 0 : i32
    %c0_i32_1 = arith.constant 0 : i32
    return %arg0, %c0_i32, %c0_i32_0 : i32, i32, i32
  }
  func.func @transform_8(%arg0: i32) -> (i32, i32) {
    %c0_i32 = arith.constant 0 : i32
    %c0_i32_0 = arith.constant 0 : i32
    %c0_i32_1 = arith.constant 0 : i32
    return %c0_i32, %c0_i32_0 : i32, i32
  }
  func.func @transform_9(%arg0: i32) -> (i32, i32) {
    %c0_i32 = arith.constant 0 : i32
    %c0_i32_0 = arith.constant 0 : i32
    %c0_i32_1 = arith.constant 0 : i32
    return %c0_i32, %c0_i32_0 : i32, i32
  }
  func.func @transform_10(%arg0: i32) -> (i32, i32) {
    %c0_i32 = arith.constant 0 : i32
    %c0_i32_0 = arith.constant 0 : i32
    %c0_i32_1 = arith.constant 0 : i32
    return %c0_i32, %c0_i32_0 : i32, i32
  }
  func.func @transform_11(%arg0: i32) -> (i32, i32) {
    %c0_i32 = arith.constant 0 : i32
    %c0_i32_0 = arith.constant 0 : i32
    %c0_i32_1 = arith.constant 0 : i32
    return %c0_i32, %c0_i32_0 : i32, i32
  }
  func.func @transform_12(%arg0: i32) -> (i32, i32) {
    %c0_i32 = arith.constant 0 : i32
    %c0_i32_0 = arith.constant 0 : i32
    %c0_i32_1 = arith.constant 0 : i32
    return %c0_i32, %c0_i32_0 : i32, i32
  }
  func.func @transform_13(%arg0: i32) -> (i32, i32) {
    %c0_i32 = arith.constant 0 : i32
    %c0_i32_0 = arith.constant 0 : i32
    %c0_i32_1 = arith.constant 0 : i32
    return %c0_i32, %c0_i32_0 : i32, i32
  }
  func.func @transform_14(%arg0: i32) -> (i32, i32) {
    %c0_i32 = arith.constant 0 : i32
    %c0_i32_0 = arith.constant 0 : i32
    %c0_i32_1 = arith.constant 0 : i32
    return %c0_i32, %c0_i32_0 : i32, i32
  }
}

module attributes {stable_mosaic.version = 11 : i64} {
  func.func @_fused_cgcnn_kernel(%arg0: i32, %arg1: memref<16x13xf32, #tpu.memory_space<vmem>>, %arg2: memref<13x32xf32, #tpu.memory_space<vmem>>, %arg3: memref<1x32xf32, #tpu.memory_space<vmem>>, %arg4: memref<128x48xf32, #tpu.memory_space<vmem>>, %arg5: memref<16x128xf32, #tpu.memory_space<vmem>>, %arg6: memref<1x32x128xf32, #tpu.memory_space<vmem>>, %arg7: memref<1x16x64xf32, #tpu.memory_space<vmem>>, %arg8: memref<1x1x64xf32, #tpu.memory_space<vmem>>, %arg9: memref<8x16xf32, #tpu.memory_space<vmem>>, %arg10: memref<32x32xf32, #tpu.memory_space<vmem>>, %arg11: memref<1x32xf32, #tpu.memory_space<vmem>>, %arg12: memref<32x1xf32, #tpu.memory_space<vmem>>, %arg13: memref<1x1xf32, #tpu.memory_space<vmem>>, %arg14: memref<16x32xf32, #tpu.memory_space<vmem>>, %arg15: memref<8x1xf32, #tpu.memory_space<vmem>>, %arg16: memref<48x64xf32, #tpu.memory_space<vmem>>) attributes {dimension_semantics = [#tpu.dimension_semantics<arbitrary>], iteration_bounds = array<i64: 3>, scalar_prefetch = 0 : i64, scratch_operands = 1 : i64, tpu.core_type = #tpu.core_type<tc>, window_params = [{pipeline_mode = #tpu.pipeline_mode<synchronous>, transform_indices = @transform_0, window_bounds = array<i64: 16, 13>}, {pipeline_mode = #tpu.pipeline_mode<synchronous>, transform_indices = @transform_1, window_bounds = array<i64: 13, 32>}, {pipeline_mode = #tpu.pipeline_mode<synchronous>, transform_indices = @transform_2, window_bounds = array<i64: 1, 32>}, {pipeline_mode = #tpu.pipeline_mode<synchronous>, transform_indices = @transform_3, window_bounds = array<i64: 128, 48>}, {pipeline_mode = #tpu.pipeline_mode<synchronous>, transform_indices = @transform_4, window_bounds = array<i64: 16, 128>}, {transform_indices = @transform_5, window_bounds = array<i64: 1, 32, 128>}, {transform_indices = @transform_6, window_bounds = array<i64: 1, 16, 64>}, {transform_indices = @transform_7, window_bounds = array<i64: 1, 1, 64>}, {pipeline_mode = #tpu.pipeline_mode<synchronous>, transform_indices = @transform_8, window_bounds = array<i64: 8, 16>}, {pipeline_mode = #tpu.pipeline_mode<synchronous>, transform_indices = @transform_9, window_bounds = array<i64: 32, 32>}, {pipeline_mode = #tpu.pipeline_mode<synchronous>, transform_indices = @transform_10, window_bounds = array<i64: 1, 32>}, {pipeline_mode = #tpu.pipeline_mode<synchronous>, transform_indices = @transform_11, window_bounds = array<i64: 32, 1>}, {pipeline_mode = #tpu.pipeline_mode<synchronous>, transform_indices = @transform_12, window_bounds = array<i64: 1, 1>}, {pipeline_mode = #tpu.pipeline_mode<synchronous>, transform_indices = @transform_13, window_bounds = array<i64: 16, 32>}, {pipeline_mode = #tpu.pipeline_mode<synchronous>, transform_indices = @transform_14, window_bounds = array<i64: 8, 1>}]} {
    %c0_i32 = arith.constant 0 : i32
    %0 = arith.cmpi eq, %arg0, %c0_i32 : i32
    %1 = arith.extui %0 : i1 to i32
    %c0_i32_0 = arith.constant 0 : i32
    %2 = arith.cmpi ne, %1, %c0_i32_0 : i32
    scf.if %2 {
      %c0_33 = arith.constant 0 : index
      %c0_34 = arith.constant 0 : index
      %54 = vector.load %arg1[%c0_33, %c0_34] : memref<16x13xf32, #tpu.memory_space<vmem>>, vector<16x13xf32>
      %c0_35 = arith.constant 0 : index
      %c0_36 = arith.constant 0 : index
      %55 = vector.load %arg2[%c0_35, %c0_36] : memref<13x32xf32, #tpu.memory_space<vmem>>, vector<13x32xf32>
      %cst_37 = arith.constant dense<0.000000e+00> : vector<16x32xf32>
      %56 = tpu.matmul %54, %55, %cst_37 {dimension_numbers = #tpu.dot_dimension_numbers<[1], [0], [0], [1], [0, 0, 1, 1], [], []>} : vector<16x13xf32>, vector<13x32xf32>, vector<16x32xf32> -> vector<16x32xf32>
      %c0_38 = arith.constant 0 : index
      %c0_39 = arith.constant 0 : index
      %57 = vector.load %arg3[%c0_38, %c0_39] : memref<1x32xf32, #tpu.memory_space<vmem>>, vector<1x32xf32>
      %58 = vector.broadcast %57 : vector<1x32xf32> to vector<16x32xf32>
      %59 = arith.addf %56, %58 : vector<16x32xf32>
      %c0_40 = arith.constant 0 : index
      %c0_41 = arith.constant 0 : index
      %60 = vector.load %arg14[%c0_40, %c0_41] : memref<16x32xf32, #tpu.memory_space<vmem>>, vector<16x32xf32>
      tpu.vector_store %arg14[%c0_40, %c0_41], %59 {strides = array<i32>} : memref<16x32xf32, #tpu.memory_space<vmem>>, vector<16x32xf32>,
    } else {
    }
    %c0 = arith.constant 0 : index
    %c0_1 = arith.constant 0 : index
    %3 = vector.load %arg14[%c0, %c0_1] : memref<16x32xf32, #tpu.memory_space<vmem>>, vector<16x32xf32>
    %c0_2 = arith.constant 0 : index
    %c0_3 = arith.constant 0 : index
    %c0_4 = arith.constant 0 : index
    %4 = vector.load %arg6[%c0_2, %c0_3, %c0_4] : memref<1x32x128xf32, #tpu.memory_space<vmem>>, vector<1x32x128xf32>
    %5 = vector.shape_cast %4 : vector<1x32x128xf32> to vector<32x128xf32>
    %cst = arith.constant dense<0.000000e+00> : vector<16x128xf32>
    %6 = tpu.matmul %3, %5, %cst {dimension_numbers = #tpu.dot_dimension_numbers<[1], [0], [0], [1], [0, 0, 1, 1], [], []>} : vector<16x32xf32>, vector<32x128xf32>, vector<16x128xf32> -> vector<16x128xf32>
    %c0_5 = arith.constant 0 : index
    %c0_6 = arith.constant 0 : index
    %c0_7 = arith.constant 0 : index
    %7 = vector.load %arg7[%c0_5, %c0_6, %c0_7] : memref<1x16x64xf32, #tpu.memory_space<vmem>>, vector<1x16x64xf32>
    %8 = vector.shape_cast %7 : vector<1x16x64xf32> to vector<16x64xf32>
    %c0_8 = arith.constant 0 : index
    %c0_9 = arith.constant 0 : index
    %9 = vector.load %arg16[%c0_8, %c0_9] : memref<48x64xf32, #tpu.memory_space<vmem>>, vector<16x64xf32>
    tpu.vector_store %arg16[%c0_8, %c0_9], %8 {strides = array<i32>} : memref<48x64xf32, #tpu.memory_space<vmem>>, vector<16x64xf32>,
    %10 = vector.extract_strided_slice %6 {offsets = [0, 64], sizes = [16, 64], strides = [1, 1]} : vector<16x128xf32> to vector<16x64xf32>
    %c16 = arith.constant 16 : index
    %c0_10 = arith.constant 0 : index
    %11 = vector.load %arg16[%c16, %c0_10] : memref<48x64xf32, #tpu.memory_space<vmem>>, vector<16x64xf32>
    tpu.vector_store %arg16[%c16, %c0_10], %10 {strides = array<i32>} : memref<48x64xf32, #tpu.memory_space<vmem>>, vector<16x64xf32>,
    %12 = vector.extract_strided_slice %6 {offsets = [0, 0], sizes = [16, 64], strides = [1, 1]} : vector<16x128xf32> to vector<16x64xf32>
    %c0_11 = arith.constant 0 : index
    %c0_12 = arith.constant 0 : index
    %c0_13 = arith.constant 0 : index
    %13 = vector.load %arg8[%c0_11, %c0_12, %c0_13] : memref<1x1x64xf32, #tpu.memory_space<vmem>>, vector<1x1x64xf32>
    %14 = vector.shape_cast %13 : vector<1x1x64xf32> to vector<1x64xf32>
    %15 = vector.broadcast %14 : vector<1x64xf32> to vector<16x64xf32>
    %16 = arith.addf %12, %15 : vector<16x64xf32>
    %c32 = arith.constant 32 : index
    %c0_14 = arith.constant 0 : index
    %17 = vector.load %arg16[%c32, %c0_14] : memref<48x64xf32, #tpu.memory_space<vmem>>, vector<16x64xf32>
    tpu.vector_store %arg16[%c32, %c0_14], %16 {strides = array<i32>} : memref<48x64xf32, #tpu.memory_space<vmem>>, vector<16x64xf32>,
    %c0_15 = arith.constant 0 : index
    %c0_16 = arith.constant 0 : index
    %18 = vector.load %arg4[%c0_15, %c0_16] : memref<128x48xf32, #tpu.memory_space<vmem>>, vector<128x48xf32>
    %c0_17 = arith.constant 0 : index
    %c0_18 = arith.constant 0 : index
    %19 = vector.load %arg16[%c0_17, %c0_18] : memref<48x64xf32, #tpu.memory_space<vmem>>, vector<48x64xf32>
    %cst_19 = arith.constant dense<0.000000e+00> : vector<128x64xf32>
    %20 = tpu.matmul %18, %19, %cst_19 {dimension_numbers = #tpu.dot_dimension_numbers<[1], [0], [0], [1], [0, 0, 1, 1], [], []>} : vector<128x48xf32>, vector<48x64xf32>, vector<128x64xf32> -> vector<128x64xf32>
    %21 = vector.extract_strided_slice %20 {offsets = [0, 0], sizes = [128, 32], strides = [1, 1]} : vector<128x64xf32> to vector<128x32xf32>
    %cst_20 = arith.constant 5.000000e-01 : f32
    %22 = vector.broadcast %cst_20 : f32 to vector<128x32xf32>
    %23 = arith.mulf %22, %21 : vector<128x32xf32>
    %24 = math.tanh %23 : vector<128x32xf32>
    %cst_21 = arith.constant 1.000000e+00 : f32
    %25 = vector.broadcast %cst_21 : f32 to vector<128x32xf32>
    %26 = arith.addf %24, %25 : vector<128x32xf32>
    %cst_22 = arith.constant 5.000000e-01 : f32
    %27 = vector.broadcast %cst_22 : f32 to vector<128x32xf32>
    %28 = arith.mulf %27, %26 : vector<128x32xf32>
    %29 = vector.extract_strided_slice %20 {offsets = [0, 32], sizes = [128, 32], strides = [1, 1]} : vector<128x64xf32> to vector<128x32xf32>
    %cst_23 = arith.constant 0.000000e+00 : f32
    %30 = vector.broadcast %cst_23 : f32 to vector<128x32xf32>
    %31 = arith.maximumf %29, %30 : vector<128x32xf32>
    %32 = math.absf %29 : vector<128x32xf32>
    %cst_24 = arith.constant 0.000000e+00 : f32
    %33 = vector.broadcast %cst_24 : f32 to vector<128x32xf32>
    %34 = arith.subf %33, %32 : vector<128x32xf32>
    %35 = math.exp %34 : vector<128x32xf32>
    %36 = math.log1p %35 : vector<128x32xf32>
    %37 = arith.addf %31, %36 : vector<128x32xf32>
    %38 = arith.mulf %28, %37 : vector<128x32xf32>
    %c0_25 = arith.constant 0 : index
    %c0_26 = arith.constant 0 : index
    %39 = vector.load %arg5[%c0_25, %c0_26] : memref<16x128xf32, #tpu.memory_space<vmem>>, vector<16x128xf32>
    %cst_27 = arith.constant dense<0.000000e+00> : vector<16x32xf32>
    %40 = tpu.matmul %39, %38, %cst_27 {dimension_numbers = #tpu.dot_dimension_numbers<[1], [0], [0], [1], [0, 0, 1, 1], [], []>} : vector<16x128xf32>, vector<128x32xf32>, vector<16x32xf32> -> vector<16x32xf32>
    %41 = arith.addf %3, %40 : vector<16x32xf32>
    %cst_28 = arith.constant 0.000000e+00 : f32
    %42 = vector.broadcast %cst_28 : f32 to vector<16x32xf32>
    %43 = arith.maximumf %41, %42 : vector<16x32xf32>
    %44 = math.absf %41 : vector<16x32xf32>
    %cst_29 = arith.constant 0.000000e+00 : f32
    %45 = vector.broadcast %cst_29 : f32 to vector<16x32xf32>
    %46 = arith.subf %45, %44 : vector<16x32xf32>
    %47 = math.exp %46 : vector<16x32xf32>
    %48 = math.log1p %47 : vector<16x32xf32>
    %49 = arith.addf %43, %48 : vector<16x32xf32>
    %c0_30 = arith.constant 0 : index
    %c0_31 = arith.constant 0 : index
    %50 = vector.load %arg14[%c0_30, %c0_31] : memref<16x32xf32, #tpu.memory_space<vmem>>, vector<16x32xf32>
    tpu.vector_store %arg14[%c0_30, %c0_31], %49 {strides = array<i32>} : memref<16x32xf32, #tpu.memory_space<vmem>>, vector<16x32xf32>,
    %c2_i32 = arith.constant 2 : i32
    %51 = arith.cmpi eq, %arg0, %c2_i32 : i32
    %52 = arith.extui %51 : i1 to i32
    %c0_i32_32 = arith.constant 0 : i32
    %53 = arith.cmpi ne, %52, %c0_i32_32 : i32
    scf.if %53 {
      %c0_33 = arith.constant 0 : index
      %c0_34 = arith.constant 0 : index
      %54 = vector.load %arg9[%c0_33, %c0_34] : memref<8x16xf32, #tpu.memory_space<vmem>>, vector<8x16xf32>
      %cst_35 = arith.constant dense<0.000000e+00> : vector<8x32xf32>
      %55 = tpu.matmul %54, %49, %cst_35 {dimension_numbers = #tpu.dot_dimension_numbers<[1], [0], [0], [1], [0, 0, 1, 1], [], []>} : vector<8x16xf32>, vector<16x32xf32>, vector<8x32xf32> -> vector<8x32xf32>
      %cst_36 = arith.constant 0.000000e+00 : f32
      %56 = vector.broadcast %cst_36 : f32 to vector<8x32xf32>
      %57 = arith.maximumf %55, %56 : vector<8x32xf32>
      %58 = math.absf %55 : vector<8x32xf32>
      %cst_37 = arith.constant 0.000000e+00 : f32
      %59 = vector.broadcast %cst_37 : f32 to vector<8x32xf32>
      %60 = arith.subf %59, %58 : vector<8x32xf32>
      %61 = math.exp %60 : vector<8x32xf32>
      %62 = math.log1p %61 : vector<8x32xf32>
      %63 = arith.addf %57, %62 : vector<8x32xf32>
      %c0_38 = arith.constant 0 : index
      %c0_39 = arith.constant 0 : index
      %64 = vector.load %arg10[%c0_38, %c0_39] : memref<32x32xf32, #tpu.memory_space<vmem>>, vector<32x32xf32>
      %cst_40 = arith.constant dense<0.000000e+00> : vector<8x32xf32>
      %65 = tpu.matmul %63, %64, %cst_40 {dimension_numbers = #tpu.dot_dimension_numbers<[1], [0], [0], [1], [0, 0, 1, 1], [], []>} : vector<8x32xf32>, vector<32x32xf32>, vector<8x32xf32> -> vector<8x32xf32>
      %c0_41 = arith.constant 0 : index
      %c0_42 = arith.constant 0 : index
      %66 = vector.load %arg11[%c0_41, %c0_42] : memref<1x32xf32, #tpu.memory_space<vmem>>, vector<1x32xf32>
      %67 = vector.broadcast %66 : vector<1x32xf32> to vector<8x32xf32>
      %68 = arith.addf %65, %67 : vector<8x32xf32>
      %cst_43 = arith.constant 0.000000e+00 : f32
      %69 = vector.broadcast %cst_43 : f32 to vector<8x32xf32>
      %70 = arith.maximumf %68, %69 : vector<8x32xf32>
      %71 = math.absf %68 : vector<8x32xf32>
      %cst_44 = arith.constant 0.000000e+00 : f32
      %72 = vector.broadcast %cst_44 : f32 to vector<8x32xf32>
      %73 = arith.subf %72, %71 : vector<8x32xf32>
      %74 = math.exp %73 : vector<8x32xf32>
      %75 = math.log1p %74 : vector<8x32xf32>
      %76 = arith.addf %70, %75 : vector<8x32xf32>
      %c0_45 = arith.constant 0 : index
      %c0_46 = arith.constant 0 : index
      %77 = vector.load %arg12[%c0_45, %c0_46] : memref<32x1xf32, #tpu.memory_space<vmem>>, vector<32x1xf32>
      %cst_47 = arith.constant dense<0.000000e+00> : vector<8x1xf32>
      %78 = tpu.matmul %76, %77, %cst_47 {dimension_numbers = #tpu.dot_dimension_numbers<[1], [0], [0], [1], [0, 0, 1, 1], [], []>} : vector<8x32xf32>, vector<32x1xf32>, vector<8x1xf32> -> vector<8x1xf32>
      %c0_48 = arith.constant 0 : index
      %c0_49 = arith.constant 0 : index
      %79 = vector.load %arg13[%c0_48, %c0_49] : memref<1x1xf32, #tpu.memory_space<vmem>>, vector<1x1xf32>
      %80 = vector.broadcast %79 : vector<1x1xf32> to vector<8x1xf32>
      %81 = arith.addf %78, %80 : vector<8x1xf32>
      %c0_50 = arith.constant 0 : index
      %c0_51 = arith.constant 0 : index
      %82 = vector.load %arg15[%c0_50, %c0_51] : memref<8x1xf32, #tpu.memory_space<vmem>>, vector<8x1xf32>
      tpu.vector_store %arg15[%c0_50, %c0_51], %81 {strides = array<i32>} : memref<8x1xf32, #tpu.memory_space<vmem>>, vector<8x1xf32>,
    } else {
    }
    return
  }
  func.func @transform_0(%arg0: i32) -> (i32, i32) {
    %c0_i32 = arith.constant 0 : i32
    %c0_i32_0 = arith.constant 0 : i32
    %c0_i32_1 = arith.constant 0 : i32
    return %c0_i32, %c0_i32_0 : i32, i32
  }
  func.func @transform_1(%arg0: i32) -> (i32, i32) {
    %c0_i32 = arith.constant 0 : i32
    %c0_i32_0 = arith.constant 0 : i32
    %c0_i32_1 = arith.constant 0 : i32
    return %c0_i32, %c0_i32_0 : i32, i32
  }
  func.func @transform_2(%arg0: i32) -> (i32, i32) {
    %c0_i32 = arith.constant 0 : i32
    %c0_i32_0 = arith.constant 0 : i32
    %c0_i32_1 = arith.constant 0 : i32
    return %c0_i32, %c0_i32_0 : i32, i32
  }
  func.func @transform_3(%arg0: i32) -> (i32, i32) {
    %c0_i32 = arith.constant 0 : i32
    %c0_i32_0 = arith.constant 0 : i32
    %c0_i32_1 = arith.constant 0 : i32
    return %c0_i32, %c0_i32_0 : i32, i32
  }
  func.func @transform_4(%arg0: i32) -> (i32, i32) {
    %c0_i32 = arith.constant 0 : i32
    %c0_i32_0 = arith.constant 0 : i32
    %c0_i32_1 = arith.constant 0 : i32
    return %c0_i32, %c0_i32_0 : i32, i32
  }
  func.func @transform_5(%arg0: i32) -> (i32, i32, i32) {
    %c0_i32 = arith.constant 0 : i32
    %c0_i32_0 = arith.constant 0 : i32
    %c0_i32_1 = arith.constant 0 : i32
    return %arg0, %c0_i32, %c0_i32_0 : i32, i32, i32
  }
  func.func @transform_6(%arg0: i32) -> (i32, i32, i32) {
    %c0_i32 = arith.constant 0 : i32
    %c0_i32_0 = arith.constant 0 : i32
    %c0_i32_1 = arith.constant 0 : i32
    return %arg0, %c0_i32, %c0_i32_0 : i32, i32, i32
  }
  func.func @transform_7(%arg0: i32) -> (i32, i32, i32) {
    %c0_i32 = arith.constant 0 : i32
    %c0_i32_0 = arith.constant 0 : i32
    %c0_i32_1 = arith.constant 0 : i32
    return %arg0, %c0_i32, %c0_i32_0 : i32, i32, i32
  }
  func.func @transform_8(%arg0: i32) -> (i32, i32) {
    %c0_i32 = arith.constant 0 : i32
    %c0_i32_0 = arith.constant 0 : i32
    %c0_i32_1 = arith.constant 0 : i32
    return %c0_i32, %c0_i32_0 : i32, i32
  }
  func.func @transform_9(%arg0: i32) -> (i32, i32) {
    %c0_i32 = arith.constant 0 : i32
    %c0_i32_0 = arith.constant 0 : i32
    %c0_i32_1 = arith.constant 0 : i32
    return %c0_i32, %c0_i32_0 : i32, i32
  }
  func.func @transform_10(%arg0: i32) -> (i32, i32) {
    %c0_i32 = arith.constant 0 : i32
    %c0_i32_0 = arith.constant 0 : i32
    %c0_i32_1 = arith.constant 0 : i32
    return %c0_i32, %c0_i32_0 : i32, i32
  }
  func.func @transform_11(%arg0: i32) -> (i32, i32) {
    %c0_i32 = arith.constant 0 : i32
    %c0_i32_0 = arith.constant 0 : i32
    %c0_i32_1 = arith.constant 0 : i32
    return %c0_i32, %c0_i32_0 : i32, i32
  }
  func.func @transform_12(%arg0: i32) -> (i32, i32) {
    %c0_i32 = arith.constant 0 : i32
    %c0_i32_0 = arith.constant 0 : i32
    %c0_i32_1 = arith.constant 0 : i32
    return %c0_i32, %c0_i32_0 : i32, i32
  }
  func.func @transform_13(%arg0: i32) -> (i32, i32) {
    %c0_i32 = arith.constant 0 : i32
    %c0_i32_0 = arith.constant 0 : i32
    %c0_i32_1 = arith.constant 0 : i32
    return %c0_i32, %c0_i32_0 : i32, i32
  }
  func.func @transform_14(%arg0: i32) -> (i32, i32) {
    %c0_i32 = arith.constant 0 : i32
    %c0_i32_0 = arith.constant 0 : i32
    %c0_i32_1 = arith.constant 0 : i32
    return %c0_i32, %c0_i32_0 : i32, i32
  }
}

</mosaic_0001>

<llo_original>
// kernel: tpu_custom_call.1
$region0: #{tpu_custom_call.1}
  #allocation0 [shape = 'u32[]', space=smem, size = 0x4, offset = 0x4, fixed_abs, tag = 'smem constant byte address 0x4 - core index']
  #allocation1 [shape = 'u32[72,128]{1,0:T(1,128)}', space=vmem, size = 0x9000, scoped, tag = 'internal scratch']
  #allocation2 [shape = 'f32[48,64]{1,0:T(8,128)}', space=vmem, size = 0x6000, scoped, tag = 'scratch operand']
  #allocation3 [shape = 'f32[1,1]{1,0:T(1,128)S(1)}', space=vmem, size = 0x200, scoped, tag = 'scoped memory for tpu_custom_call.1']
  %s0 = inlined_call_operand.vmem [shape: f32[16,13], index: 0, kind: input, shape index: {}]
  %s1 = inlined_call_operand.vmem [shape: f32[13,32], index: 1, kind: input, shape index: {}]
  %s2 = inlined_call_operand.vmem [shape: f32[1,32], index: 2, kind: input, shape index: {}]
  %s3 = inlined_call_operand.vmem [shape: f32[128,48], index: 3, kind: input, shape index: {}]
  %s4 = inlined_call_operand.hbm [shape: f32[16,128], index: 4, kind: input, shape index: {}]
  %s5 = inlined_call_operand.vmem [shape: f32[3,32,128], index: 5, kind: input, shape index: {}]
  %s6 = inlined_call_operand.vmem [shape: f32[3,16,64], index: 6, kind: input, shape index: {}]
  %s7 = inlined_call_operand.vmem [shape: f32[3,1,64], index: 7, kind: input, shape index: {}]
  %s8 = inlined_call_operand.hbm [shape: f32[8,16], index: 8, kind: input, shape index: {}]
  %s9 = inlined_call_operand.vmem [shape: f32[32,32], index: 9, kind: input, shape index: {}]
  %s10 = inlined_call_operand.vmem [shape: f32[1,32], index: 10, kind: input, shape index: {}]
  %s11 = inlined_call_operand.vmem [shape: f32[32,1], index: 11, kind: input, shape index: {}]
  %s12 = inlined_call_operand.<no memory space> [shape: f32[1,1], index: 12, kind: input, shape index: {}]
  %s13 = inlined_call_operand.hbm [shape: f32[16,32], index: 13, kind: output, shape index: {0}]
  %s14 = inlined_call_operand.vmem [shape: f32[8,1], index: 14, kind: output, shape index: {1}]
  %15 = xla_tuple %s13, %s14
  %s16 = sld [smem:[#allocation0]]
  $region109: #{tpu_custom_call.1} parent=0
    _
  %s18 = ssub.s32 1, %s16
  %s19 = scalar_select 0, %s18, %s16
  %v20 = vstv %s12
  %21 = vst [vmem:[#allocation3] sm:$0x1] %v20
  $region1: #{tpu_custom_call.1} parent=0
    #allocation4 [shape = 'u8[8192]{0}', space=vmem, size = 0x2000, scoped, tag = 'input window, operand 4, single buffered']
    #allocation5 [shape = 's32[2]{0}', space=sflag, size = 0x8, scoped, tag = 'scoped memory for tpu_custom_call.1']
    #allocation6 [shape = 's32[2]{0}', space=sflag, size = 0x8, scoped, tag = 'scoped memory for tpu_custom_call.1']
    #allocation7 [shape = 'u8[4096]{0}', space=vmem, size = 0x1000, scoped, tag = 'input window, operand 8, single buffered']
    #allocation8 [shape = 's32[1]{0}', space=sflag, size = 0x4, scoped, tag = 'scoped memory for tpu_custom_call.1']
    #allocation9 [shape = 'u8[8192]{0}', space=vmem, size = 0x2000, scoped, tag = 'output window, operand 0, single buffered']
    %22 = vsyncpa [#allocation5], 0
    %23 = vsyncpa [#allocation8], 0
    %24 = vsyncpa [#allocation6], 0
    loop: start=0, step=1, limit=5
    $region2: #{tpu_custom_call.1} parent=1 // loop_pre_header
      _
    $region3: #{tpu_custom_call.1} parent=1 // loop_header
      %s26 = sphi 0, %s30
      %p27 = scmp.ge.s32.totalorder %s26, 5
      %s34 = sphi 0, %s34
      %s36 = sphi 0, %s34
      %s37 = sphi 0, %s36
      %s51 = sphi 0, %s37
      %s55 = sphi 0, %s55
      %s57 = sphi 0, %s55
      %s58 = sphi 0, %s57
      %s72 = sphi 0, %s58
      %s76 = sphi 0, %s76
      %s78 = sphi 0, %s76
      %s79 = sphi 0, %s78
      %s93 = sphi 0, %s79
      %s97 = sphi 0, %s97
      %s99 = sphi 0, %s97
      %s100 = sphi 0, %s99
      %s114 = sphi 0, %s100
      %s118 = sphi 0, %s118
      %s120 = sphi 0, %s118
      %s121 = sphi 0, %s120
      %s135 = sphi 0, %s121
      %s141 = sphi 0, %s143
      %s144 = sphi 0, %s141
      %s145 = sphi 0, %s144
      %s161 = sphi 0, %s145
      %s167 = sphi 0, %s169
      %s170 = sphi 0, %s167
      %s171 = sphi 0, %s170
      %s187 = sphi 0, %s171
      %s193 = sphi 0, %s195
      %s196 = sphi 0, %s193
      %s197 = sphi 0, %s196
      %s213 = sphi 0, %s197
      %s217 = sphi 0, %s217
      %s219 = sphi 0, %s217
      %s220 = sphi 0, %s219
      %s234 = sphi 0, %s220
      %s238 = sphi 0, %s238
      %s240 = sphi 0, %s238
      %s241 = sphi 0, %s240
      %s255 = sphi 0, %s241
      %s259 = sphi 0, %s259
      %s261 = sphi 0, %s259
      %s262 = sphi 0, %s261
      %s276 = sphi 0, %s262
      %s280 = sphi 0, %s280
      %s282 = sphi 0, %s280
      %s283 = sphi 0, %s282
      %s297 = sphi 0, %s283
      %s301 = sphi 0, %s301
      %s303 = sphi 0, %s301
      %s304 = sphi 0, %s303
      %s318 = sphi 0, %s304
      %s322 = sphi 0, %s322
      %s324 = sphi 0, %s322
      %s325 = sphi 0, %s324
      %s339 = sphi 0, %s325
      %s343 = sphi 0, %s343
      %s345 = sphi 0, %s343
      %s346 = sphi 0, %s345
      %s360 = sphi 0, %s346
    $region4: #{tpu_custom_call.1} parent=1 // loop_header_branch
      %29 = sbr.rel (%p27) target = $region8
    $region5: #{tpu_custom_call.1} parent=1 // loop_body
      %s31 = ssub.s32 %s26, 1
      %s32 = ssub.s32 %s26, 2
      %s33 = sadd.s32 %s26, 1
      %s35 = sadd.s32 %s34, 1
      %p38 = scmp.eq.s32.totalorder %s26, 2
      %p39 = scmp.ne.s32.totalorder %s34, %s36
      %p40 = scmp.eq.s32.totalorder %s26, 0
      %p41 = por %p39, %p40
      %p42 = scmp.ne.s32.totalorder %s34, %s36
      %p43 = scmp.eq.s32.totalorder %s31, 2
      %p44 = por %p42, %p43
      %p45 = scmp.ne.s32.totalorder %s36, %s37
      %p46 = scmp.eq.s32.totalorder %s31, 0
      %p47 = por %p45, %p46
      %p48 = scmp.ne.s32.totalorder %s36, %s37
      %p49 = scmp.eq.s32.totalorder %s32, 2
      %p50 = por %p48, %p49
      %p52 = scmp.ne.s32.totalorder %s37, %s51
      %p53 = scmp.eq.s32.totalorder %s32, 0
      %p54 = por %p52, %p53
      %s56 = sadd.s32 %s55, 1
      %p59 = scmp.eq.s32.totalorder %s26, 2
      %p60 = scmp.ne.s32.totalorder %s55, %s57
      %p61 = scmp.eq.s32.totalorder %s26, 0
      %p62 = por %p60, %p61
      %p63 = scmp.ne.s32.totalorder %s55, %s57
      %p64 = scmp.eq.s32.totalorder %s31, 2
      %p65 = por %p63, %p64
      %p66 = scmp.ne.s32.totalorder %s57, %s58
      %p67 = scmp.eq.s32.totalorder %s31, 0
      %p68 = por %p66, %p67
      %p69 = scmp.ne.s32.totalorder %s57, %s58
      %p70 = scmp.eq.s32.totalorder %s32, 2
      %p71 = por %p69, %p70
      %p73 = scmp.ne.s32.totalorder %s58, %s72
      %p74 = scmp.eq.s32.totalorder %s32, 0
      %p75 = por %p73, %p74
      %s77 = sadd.s32 %s76, 1
      %p80 = scmp.eq.s32.totalorder %s26, 2
      %p81 = scmp.ne.s32.totalorder %s76, %s78
      %p82 = scmp.eq.s32.totalorder %s26, 0
      %p83 = por %p81, %p82
      %p84 = scmp.ne.s32.totalorder %s76, %s78
      %p85 = scmp.eq.s32.totalorder %s31, 2
      %p86 = por %p84, %p85
      %p87 = scmp.ne.s32.totalorder %s78, %s79
      %p88 = scmp.eq.s32.totalorder %s31, 0
      %p89 = por %p87, %p88
      %p90 = scmp.ne.s32.totalorder %s78, %s79
      %p91 = scmp.eq.s32.totalorder %s32, 2
      %p92 = por %p90, %p91
      %p94 = scmp.ne.s32.totalorder %s79, %s93
      %p95 = scmp.eq.s32.totalorder %s32, 0
      %p96 = por %p94, %p95
      %s98 = sadd.s32 %s97, 1
      %p101 = scmp.eq.s32.totalorder %s26, 2
      %p102 = scmp.ne.s32.totalorder %s97, %s99
      %p103 = scmp.eq.s32.totalorder %s26, 0
      %p104 = por %p102, %p103
      %p105 = scmp.ne.s32.totalorder %s97, %s99
      %p106 = scmp.eq.s32.totalorder %s31, 2
      %p107 = por %p105, %p106
      %p108 = scmp.ne.s32.totalorder %s99, %s100
      %p109 = scmp.eq.s32.totalorder %s31, 0
      %p110 = por %p108, %p109
      %p111 = scmp.ne.s32.totalorder %s99, %s100
      %p112 = scmp.eq.s32.totalorder %s32, 2
      %p113 = por %p111, %p112
      %p115 = scmp.ne.s32.totalorder %s100, %s114
      %p116 = scmp.eq.s32.totalorder %s32, 0
      %p117 = por %p115, %p116
      %s119 = sadd.s32 %s118, 1
      %p122 = scmp.eq.s32.totalorder %s26, 2
      %p123 = scmp.ne.s32.totalorder %s118, %s120
      %p124 = scmp.eq.s32.totalorder %s26, 0
      %p125 = por %p123, %p124
      %p126 = scmp.ne.s32.totalorder %s118, %s120
      %p127 = scmp.eq.s32.totalorder %s31, 2
      %p128 = por %p126, %p127
      %p129 = scmp.ne.s32.totalorder %s120, %s121
      %p130 = scmp.eq.s32.totalorder %s31, 0
      %p131 = por %p129, %p130
      %p132 = scmp.ne.s32.totalorder %s120, %s121
      %p133 = scmp.eq.s32.totalorder %s32, 2
      %p134 = por %p132, %p133
      %p136 = scmp.ne.s32.totalorder %s121, %s135
      %p137 = scmp.eq.s32.totalorder %s32, 0
      %p138 = por %p136, %p137
      %s139 = ssub.s32 %s26, %s33
      %p140 = scmp.eq.s32.totalorder %s139, 0
      %s142 = sadd.s32 %s141, 1
      %s143 = scalar_select %p140, %s141, %s142
      %p146 = pneg %p140
      %p147 = scmp.eq.s32.totalorder %s26, 2
      %p148 = por %p146, %p147
      %p149 = scmp.ne.s32.totalorder %s141, %s144
      %p150 = scmp.eq.s32.totalorder %s26, 0
      %p151 = por %p149, %p150
      %p152 = scmp.ne.s32.totalorder %s141, %s144
      %p153 = scmp.eq.s32.totalorder %s31, 2
      %p154 = por %p152, %p153
      %p155 = scmp.ne.s32.totalorder %s144, %s145
      %p156 = scmp.eq.s32.totalorder %s31, 0
      %p157 = por %p155, %p156
      %p158 = scmp.ne.s32.totalorder %s144, %s145
      %p159 = scmp.eq.s32.totalorder %s32, 2
      %p160 = por %p158, %p159
      %p162 = scmp.ne.s32.totalorder %s145, %s161
      %p163 = scmp.eq.s32.totalorder %s32, 0
      %p164 = por %p162, %p163
      %s165 = ssub.s32 %s26, %s33
      %p166 = scmp.eq.s32.totalorder %s165, 0
      %s168 = sadd.s32 %s167, 1
      %s169 = scalar_select %p166, %s167, %s168
      %p172 = pneg %p166
      %p173 = scmp.eq.s32.totalorder %s26, 2
      %p174 = por %p172, %p173
      %p175 = scmp.ne.s32.totalorder %s167, %s170
      %p176 = scmp.eq.s32.totalorder %s26, 0
      %p177 = por %p175, %p176
      %p178 = scmp.ne.s32.totalorder %s167, %s170
      %p179 = scmp.eq.s32.totalorder %s31, 2
      %p180 = por %p178, %p179
      %p181 = scmp.ne.s32.totalorder %s170, %s171
      %p182 = scmp.eq.s32.totalorder %s31, 0
      %p183 = por %p181, %p182
      %p184 = scmp.ne.s32.totalorder %s170, %s171
      %p185 = scmp.eq.s32.totalorder %s32, 2
      %p186 = por %p184, %p185
      %p188 = scmp.ne.s32.totalorder %s171, %s187
      %p189 = scmp.eq.s32.totalorder %s32, 0
      %p190 = por %p188, %p189
      %s191 = ssub.s32 %s26, %s33
      %p192 = scmp.eq.s32.totalorder %s191, 0
      %s194 = sadd.s32 %s193, 1
      %s195 = scalar_select %p192, %s193, %s194
      %p198 = pneg %p192
      %p199 = scmp.eq.s32.totalorder %s26, 2
      %p200 = por %p198, %p199
      %p201 = scmp.ne.s32.totalorder %s193, %s196
      %p202 = scmp.eq.s32.totalorder %s26, 0
      %p203 = por %p201, %p202
      %p204 = scmp.ne.s32.totalorder %s193, %s196
      %p205 = scmp.eq.s32.totalorder %s31, 2
      %p206 = por %p204, %p205
      %p207 = scmp.ne.s32.totalorder %s196, %s197
      %p208 = scmp.eq.s32.totalorder %s31, 0
      %p209 = por %p207, %p208
      %p210 = scmp.ne.s32.totalorder %s196, %s197
      %p211 = scmp.eq.s32.totalorder %s32, 2
      %p212 = por %p210, %p211
      %p214 = scmp.ne.s32.totalorder %s197, %s213
      %p215 = scmp.eq.s32.totalorder %s32, 0
      %p216 = por %p214, %p215
      %s218 = sadd.s32 %s217, 1
      %p221 = scmp.eq.s32.totalorder %s26, 2
      %p222 = scmp.ne.s32.totalorder %s217, %s219
      %p223 = scmp.eq.s32.totalorder %s26, 0
      %p224 = por %p222, %p223
      %p225 = scmp.ne.s32.totalorder %s217, %s219
      %p226 = scmp.eq.s32.totalorder %s31, 2
      %p227 = por %p225, %p226
      %p228 = scmp.ne.s32.totalorder %s219, %s220
      %p229 = scmp.eq.s32.totalorder %s31, 0
      %p230 = por %p228, %p229
      %p231 = scmp.ne.s32.totalorder %s219, %s220
      %p232 = scmp.eq.s32.totalorder %s32, 2
      %p233 = por %p231, %p232
      %p235 = scmp.ne.s32.totalorder %s220, %s234
      %p236 = scmp.eq.s32.totalorder %s32, 0
      %p237 = por %p235, %p236
      %s239 = sadd.s32 %s238, 1
      %p242 = scmp.eq.s32.totalorder %s26, 2
      %p243 = scmp.ne.s32.totalorder %s238, %s240
      %p244 = scmp.eq.s32.totalorder %s26, 0
      %p245 = por %p243, %p244
      %p246 = scmp.ne.s32.totalorder %s238, %s240
      %p247 = scmp.eq.s32.totalorder %s31, 2
      %p248 = por %p246, %p247
      %p249 = scmp.ne.s32.totalorder %s240, %s241
      %p250 = scmp.eq.s32.totalorder %s31, 0
      %p251 = por %p249, %p250
      %p252 = scmp.ne.s32.totalorder %s240, %s241
      %p253 = scmp.eq.s32.totalorder %s32, 2
      %p254 = por %p252, %p253
      %p256 = scmp.ne.s32.totalorder %s241, %s255
      %p257 = scmp.eq.s32.totalorder %s32, 0
      %p258 = por %p256, %p257
      %s260 = sadd.s32 %s259, 1
      %p263 = scmp.eq.s32.totalorder %s26, 2
      %p264 = scmp.ne.s32.totalorder %s259, %s261
      %p265 = scmp.eq.s32.totalorder %s26, 0
      %p266 = por %p264, %p265
      %p267 = scmp.ne.s32.totalorder %s259, %s261
      %p268 = scmp.eq.s32.totalorder %s31, 2
      %p269 = por %p267, %p268
      %p270 = scmp.ne.s32.totalorder %s261, %s262
      %p271 = scmp.eq.s32.totalorder %s31, 0
      %p272 = por %p270, %p271
      %p273 = scmp.ne.s32.totalorder %s261, %s262
      %p274 = scmp.eq.s32.totalorder %s32, 2
      %p275 = por %p273, %p274
      %p277 = scmp.ne.s32.totalorder %s262, %s276
      %p278 = scmp.eq.s32.totalorder %s32, 0
      %p279 = por %p277, %p278
      %s281 = sadd.s32 %s280, 1
      %p284 = scmp.eq.s32.totalorder %s26, 2
      %p285 = scmp.ne.s32.totalorder %s280, %s282
      %p286 = scmp.eq.s32.totalorder %s26, 0
      %p287 = por %p285, %p286
      %p288 = scmp.ne.s32.totalorder %s280, %s282
      %p289 = scmp.eq.s32.totalorder %s31, 2
      %p290 = por %p288, %p289
      %p291 = scmp.ne.s32.totalorder %s282, %s283
      %p292 = scmp.eq.s32.totalorder %s31, 0
      %p293 = por %p291, %p292
      %p294 = scmp.ne.s32.totalorder %s282, %s283
      %p295 = scmp.eq.s32.totalorder %s32, 2
      %p296 = por %p294, %p295
      %p298 = scmp.ne.s32.totalorder %s283, %s297
      %p299 = scmp.eq.s32.totalorder %s32, 0
      %p300 = por %p298, %p299
      %s302 = sadd.s32 %s301, 1
      %p305 = scmp.eq.s32.totalorder %s26, 2
      %p306 = scmp.ne.s32.totalorder %s301, %s303
      %p307 = scmp.eq.s32.totalorder %s26, 0
      %p308 = por %p306, %p307
      %p309 = scmp.ne.s32.totalorder %s301, %s303
      %p310 = scmp.eq.s32.totalorder %s31, 2
      %p311 = por %p309, %p310
      %p312 = scmp.ne.s32.totalorder %s303, %s304
      %p313 = scmp.eq.s32.totalorder %s31, 0
      %p314 = por %p312, %p313
      %p315 = scmp.ne.s32.totalorder %s303, %s304
      %p316 = scmp.eq.s32.totalorder %s32, 2
      %p317 = por %p315, %p316
      %p319 = scmp.ne.s32.totalorder %s304, %s318
      %p320 = scmp.eq.s32.totalorder %s32, 0
      %p321 = por %p319, %p320
      %s323 = sadd.s32 %s322, 1
      %p326 = scmp.eq.s32.totalorder %s26, 2
      %p327 = scmp.ne.s32.totalorder %s322, %s324
      %p328 = scmp.eq.s32.totalorder %s26, 0
      %p329 = por %p327, %p328
      %p330 = scmp.ne.s32.totalorder %s322, %s324
      %p331 = scmp.eq.s32.totalorder %s31, 2
      %p332 = por %p330, %p331
      %p333 = scmp.ne.s32.totalorder %s324, %s325
      %p334 = scmp.eq.s32.totalorder %s31, 0
      %p335 = por %p333, %p334
      %p336 = scmp.ne.s32.totalorder %s324, %s325
      %p337 = scmp.eq.s32.totalorder %s32, 2
      %p338 = por %p336, %p337
      %p340 = scmp.ne.s32.totalorder %s325, %s339
      %p341 = scmp.eq.s32.totalorder %s32, 0
      %p342 = por %p340, %p341
      %s344 = sadd.s32 %s343, 1
      %p347 = scmp.eq.s32.totalorder %s26, 2
      %p348 = scmp.ne.s32.totalorder %s343, %s345
      %p349 = scmp.eq.s32.totalorder %s26, 0
      %p350 = por %p348, %p349
      %p351 = scmp.ne.s32.totalorder %s343, %s345
      %p352 = scmp.eq.s32.totalorder %s31, 2
      %p353 = por %p351, %p352
      %p354 = scmp.ne.s32.totalorder %s345, %s346
      %p355 = scmp.eq.s32.totalorder %s31, 0
      %p356 = por %p354, %p355
      %p357 = scmp.ne.s32.totalorder %s345, %s346
      %p358 = scmp.eq.s32.totalorder %s32, 2
      %p359 = por %p357, %p358
      %p361 = scmp.ne.s32.totalorder %s346, %s360
      %p362 = scmp.eq.s32.totalorder %s32, 0
      %p363 = por %p361, %p362
      %p364 = scmp.le.s32.totalorder 1, %s26
      %p365 = scmp.lt.s32.totalorder %s26, 4
      %p366 = pnand %p364, %p365
      %p367 = pneg %p366
      // Predicated region
      $region9: #{tpu_custom_call.1} parent=5 // pred_check
        _
      $region10: #{tpu_custom_call.1} parent=5 // pred_check_branch
        %369 = sbr.rel (%p366) target = $region12
      $region11: #{tpu_custom_call.1} parent=5 // pred_region
        %s370 = ssub.s32 %s26, 1
        // Predicated region
        $region13: #{tpu_custom_call.1} parent=11 // pred_check
          %p371 = pneg %p47
        $region14: #{tpu_custom_call.1} parent=11 // pred_check_branch
          %373 = sbr.rel (%p371) target = $region16
        $region15: #{tpu_custom_call.1} parent=11 // pred_region
          _
        $region16: #{tpu_custom_call.1} parent=11 // pred_fallthru
          _
        // Predicated region
        $region17: #{tpu_custom_call.1} parent=11 // pred_check
          %p374 = pneg %p68
        $region18: #{tpu_custom_call.1} parent=11 // pred_check_branch
          %376 = sbr.rel (%p374) target = $region20
        $region19: #{tpu_custom_call.1} parent=11 // pred_region
          _
        $region20: #{tpu_custom_call.1} parent=11 // pred_fallthru
          _
        // Predicated region
        $region21: #{tpu_custom_call.1} parent=11 // pred_check
          %p377 = pneg %p89
        $region22: #{tpu_custom_call.1} parent=11 // pred_check_branch
          %379 = sbr.rel (%p377) target = $region24
        $region23: #{tpu_custom_call.1} parent=11 // pred_region
          _
        $region24: #{tpu_custom_call.1} parent=11 // pred_fallthru
          _
        // Predicated region
        $region25: #{tpu_custom_call.1} parent=11 // pred_check
          %p380 = pneg %p110
        $region26: #{tpu_custom_call.1} parent=11 // pred_check_branch
          %382 = sbr.rel (%p380) target = $region28
        $region27: #{tpu_custom_call.1} parent=11 // pred_region
          _
        $region28: #{tpu_custom_call.1} parent=11 // pred_fallthru
          _
        // Predicated region
        $region29: #{tpu_custom_call.1} parent=11 // pred_check
          %p383 = pneg %p131
        $region30: #{tpu_custom_call.1} parent=11 // pred_check_branch
          %385 = sbr.rel (%p383) target = $region32
        $region31: #{tpu_custom_call.1} parent=11 // pred_region
          %387 = vsyncadd [#allocation5], 0
          %s388 = sshll.u32 %s4, 4
          %s389 = int_to_ptr.hbm [resolvable:$true] %s388
          %s390 = sshll.u32 [#allocation4], 4
          %s391 = int_to_ptr.vmem [resolvable:$true] %s390
          %396 = dma.hbm_to_vmem [thread:$0]  %s389, 256, %s391, [#allocation5], 128, 128, 8
        $region32: #{tpu_custom_call.1} parent=11 // pred_fallthru
          _
        // Predicated region
        $region33: #{tpu_custom_call.1} parent=11 // pred_check
          %p397 = pneg %p230
        $region34: #{tpu_custom_call.1} parent=11 // pred_check_branch
          %399 = sbr.rel (%p397) target = $region36
        $region35: #{tpu_custom_call.1} parent=11 // pred_region
          %401 = vsyncadd [#allocation8], 0
          %s403 = sshll.u32 %s8, 4
          %s404 = int_to_ptr.hbm [resolvable:$true] %s403
          %s405 = sshll.u32 [#allocation7], 4
          %s406 = int_to_ptr.vmem [resolvable:$true] %s405
          %408 = dma.hbm_to_vmem [thread:$0]  %s404, 128, %s406, [#allocation8]
        $region36: #{tpu_custom_call.1} parent=11 // pred_fallthru
          _
        // Predicated region
        $region37: #{tpu_custom_call.1} parent=11 // pred_check
          %p409 = pneg %p251
        $region38: #{tpu_custom_call.1} parent=11 // pred_check_branch
          %411 = sbr.rel (%p409) target = $region40
        $region39: #{tpu_custom_call.1} parent=11 // pred_region
          _
        $region40: #{tpu_custom_call.1} parent=11 // pred_fallthru
          _
        // Predicated region
        $region41: #{tpu_custom_call.1} parent=11 // pred_check
          %p412 = pneg %p272
        $region42: #{tpu_custom_call.1} parent=11 // pred_check_branch
          %414 = sbr.rel (%p412) target = $region44
        $region43: #{tpu_custom_call.1} parent=11 // pred_region
          _
        $region44: #{tpu_custom_call.1} parent=11 // pred_fallthru
          _
        // Predicated region
        $region45: #{tpu_custom_call.1} parent=11 // pred_check
          %p415 = pneg %p293
        $region46: #{tpu_custom_call.1} parent=11 // pred_check_branch
          %417 = sbr.rel (%p415) target = $region48
        $region47: #{tpu_custom_call.1} parent=11 // pred_region
          _
        $region48: #{tpu_custom_call.1} parent=11 // pred_fallthru
          _
        // Predicated region
        $region49: #{tpu_custom_call.1} parent=11 // pred_check
          %p418 = pneg %p314
        $region50: #{tpu_custom_call.1} parent=11 // pred_check_branch
          %420 = sbr.rel (%p418) target = $region52
        $region51: #{tpu_custom_call.1} parent=11 // pred_region
          _
        $region52: #{tpu_custom_call.1} parent=11 // pred_fallthru
          _
      $region12: #{tpu_custom_call.1} parent=5 // pred_fallthru
        _
      %p421 = scmp.lt.s32.totalorder %s26, 3
      // Predicated region
      $region53: #{tpu_custom_call.1} parent=5 // pred_check
        %p422 = pneg %p421
      $region54: #{tpu_custom_call.1} parent=5 // pred_check_branch
        %424 = sbr.rel (%p422) target = $region56
      $region55: #{tpu_custom_call.1} parent=5 // pred_region
        // Predicated region
        $region57: #{tpu_custom_call.1} parent=55 // pred_check
          %p425 = pneg %p151
        $region58: #{tpu_custom_call.1} parent=55 // pred_check_branch
          %427 = sbr.rel (%p425) target = $region60
        $region59: #{tpu_custom_call.1} parent=55 // pred_region
          %p428 = scmp.lt.s32.totalorder %s26, 2
          %s429 = scalar_select %p428, %s26, 2
          %s430 = smul.addr %s429, 4
          %s431 = smul.addr %s430, 8
          %s432 = scalar_lea.vmem %s5, %s431
        $region60: #{tpu_custom_call.1} parent=55 // pred_fallthru
          _
        // Predicated region
        $region61: #{tpu_custom_call.1} parent=55 // pred_check
          %p433 = pneg %p177
        $region62: #{tpu_custom_call.1} parent=55 // pred_check_branch
          %435 = sbr.rel (%p433) target = $region64
        $region63: #{tpu_custom_call.1} parent=55 // pred_region
          %p436 = scmp.lt.s32.totalorder %s26, 2
          %s437 = scalar_select %p436, %s26, 2
          %s438 = smul.addr %s437, 2
          %s439 = smul.addr %s438, 8
          %s440 = scalar_lea.vmem %s6, %s439
        $region64: #{tpu_custom_call.1} parent=55 // pred_fallthru
          _
        // Predicated region
        $region65: #{tpu_custom_call.1} parent=55 // pred_check
          %p441 = pneg %p203
        $region66: #{tpu_custom_call.1} parent=55 // pred_check_branch
          %443 = sbr.rel (%p441) target = $region68
        $region67: #{tpu_custom_call.1} parent=55 // pred_region
          %p444 = scmp.lt.s32.totalorder %s26, 2
          %s445 = scalar_select %p444, %s26, 2
          %s446 = scalar_lea.vmem %s7, %s445
        $region68: #{tpu_custom_call.1} parent=55 // pred_fallthru
          _
      $region56: #{tpu_custom_call.1} parent=5 // pred_fallthru
        _
      %p447 = scmp.le.s32.totalorder 1, %s26
      %p448 = scmp.lt.s32.totalorder %s26, 4
      %p449 = pnand %p447, %p448
      %p450 = pneg %p449
      // Predicated region
      $region69: #{tpu_custom_call.1} parent=5 // pred_check
        _
      $region70: #{tpu_custom_call.1} parent=5 // pred_check_branch
        %452 = sbr.rel (%p449) target = $region72
      $region71: #{tpu_custom_call.1} parent=5 // pred_region
        %s453 = ssub.s32 %s26, 1
        // Predicated region
        $region73: #{tpu_custom_call.1} parent=71 // pred_check
          %p454 = pneg %p131
        $region74: #{tpu_custom_call.1} parent=71 // pred_check_branch
          %456 = sbr.rel (%p454) target = $region76
        $region75: #{tpu_custom_call.1} parent=71 // pred_region
          %458 = dma.done [#allocation5], 256
        $region76: #{tpu_custom_call.1} parent=71 // pred_fallthru
          _
        // Predicated region
        $region77: #{tpu_custom_call.1} parent=71 // pred_check
          %p459 = pneg %p230
        $region78: #{tpu_custom_call.1} parent=71 // pred_check_branch
          %461 = sbr.rel (%p459) target = $region80
        $region79: #{tpu_custom_call.1} parent=71 // pred_region
          %463 = dma.done [#allocation8], 128
        $region80: #{tpu_custom_call.1} parent=71 // pred_fallthru
          _
        %p464 = pneg %p47
        %p465 = pneg %p44
        %p466 = pneg %p68
        %p467 = pneg %p65
        %p468 = pneg %p89
        %p469 = pneg %p86
        %p470 = pneg %p110
        %p471 = pneg %p107
        %p472 = pneg %p131
        %p473 = pneg %p128
        %p474 = scmp.lt.s32.totalorder %s31, 2
        %s475 = scalar_select %p474, %s31, 2
        %s476 = smul.addr %s475, 4
        %s477 = smul.addr %s476, 8
        %s478 = scalar_lea.vmem %s5, %s477
        %p479 = pneg %p157
        %p480 = pneg %p154
        %p481 = scmp.lt.s32.totalorder %s31, 2
        %s482 = scalar_select %p481, %s31, 2
        %s483 = smul.addr %s482, 2
        %s484 = smul.addr %s483, 8
        %s485 = scalar_lea.vmem %s6, %s484
        %p486 = pneg %p183
        %p487 = pneg %p180
        %p488 = scmp.lt.s32.totalorder %s31, 2
        %s489 = scalar_select %p488, %s31, 2
        %s490 = scalar_lea.vmem %s7, %s489
        %p491 = pneg %p209
        %p492 = pneg %p206
        %p493 = pneg %p230
        %p494 = pneg %p227
        %p495 = pneg %p251
        %p496 = pneg %p248
        %p497 = pneg %p272
        %p498 = pneg %p269
        %p499 = pneg %p293
        %p500 = pneg %p290
        %p501 = pneg %p314
        %p502 = pneg %p311
        %p503 = pneg %p335
        %p504 = pneg %p332
        %p505 = pneg %p356
        %p506 = pneg %p353
        %p507 = scmp.lt.s32.totalorder %s31, 2
        %s508 = scalar_select %p507, %s31, 2
        %s509 = smul.addr %s508, 4
        %s510 = smul.addr %s509, 8
        %s511 = scalar_lea.vmem %s5, %s510
        %p512 = scmp.lt.s32.totalorder %s31, 2
        %s513 = scalar_select %p512, %s31, 2
        %s514 = smul.addr %s513, 2
        %s515 = smul.addr %s514, 8
        %s516 = scalar_lea.vmem %s6, %s515
        %p517 = scmp.lt.s32.totalorder %s31, 2
        %s518 = scalar_select %p517, %s31, 2
        %s519 = scalar_lea.vmem %s7, %s518
        %p520 = scmp.eq.s32.totalorder %s31, 0
        // Predicated region
        $region81: #{tpu_custom_call.1} parent=71 // pred_check
          %p521 = pneg %p520
        $region82: #{tpu_custom_call.1} parent=71 // pred_check_branch
          %523 = sbr.rel (%p521) target = $region84
        $region83: #{tpu_custom_call.1} parent=71 // pred_region
          %v524 = vld [vmem:[%s0] sm:$0xff]
          %v525 = vld [vmem:[%s0 + $0x8] sm:$0xff]
          %v526 = vld [vmem:[%s1] sm:$0xff]
          %v527 = vld [vmem:[%s1 + $0x8] sm:$0x1f]
          %v528 = vld [vmem:[%s2] sm:$0x1]
          %v530 = vperm.slane %v528, 0
          %vm532 = vcmask 105472
          %v534 = vsel %vm532, %v524, 0
          %v537 = vsel %vm532, %v525, 0
          %vm539 = vcmask 1044480
          %v541 = vsel %vm539, %v527, 0
          %543 = vmatpush.msra.mxu0 0.0
          %544 = vmatpush.msra.mxu0 0.0
          %545 = vmatpush.msra.mxu0 0.0
          %546 = vmatpush.msra.mxu0 0.0
          %547 = vmatpush.msra.mxu0 0.0
          %548 = vmatpush.msra.mxu0 0.0
          %549 = vmatpush.msra.mxu0 0.0
          %550 = vmatpush.msra.mxu0 0.0
          %551 = vmatpush.msra.mxu0 0.0
          %552 = vmatpush.msra.mxu0 0.0
          %553 = vmatpush.msra.mxu0 0.0
          %554 = vmatpush.msra.mxu0 0.0
          %555 = vmatpush.msra.mxu0 0.0
          %556 = vmatpush.msra.mxu0 0.0
          %557 = vmatpush.msra.mxu0 %v541
          %558 = vmatpush.msra.mxu0 %v526
          %559 = vmatmul.f32.gmra.mxu0 %v534
          %v560 = vpop.f32.mrf.mxu0
          %v561 = vadd.f32 %v530, %v560
          %562 = vmatmul.f32.gmra.mxu0 %v537
          %v563 = vpop.f32.mrf.mxu0
          %v564 = vadd.f32 %v530, %v563
          %565 = vdwg.mxu0
          %vm566 = vcmask 261120
          %567 = vst.msk [vmem:[#allocation9] sm:$0xff] %vm566, %v561
          %568 = vst.msk [vmem:[#allocation9 + $0x8] sm:$0xff] %vm566, %v564
        $region84: #{tpu_custom_call.1} parent=71 // pred_fallthru
          _
        %v569 = vld [vmem:[#allocation9] sm:$0xff]
        %v570 = vld [vmem:[#allocation9 + $0x8] sm:$0xff]
        %v571 = vld [vmem:[%s511] sm:$0xff]
        %v572 = vld [vmem:[%s511 + $0x8] sm:$0xff]
        %v573 = vld [vmem:[%s511 + $0x10] sm:$0xff]
        %v574 = vld [vmem:[%s511 + $0x18] sm:$0xff]
        %vm575 = vcmask 261120
        %v577 = vsel %vm575, %v569, 0
        %v580 = vsel %vm575, %v570, 0
        %582 = vmatpush.msra.mxu0 0.0
        %583 = vmatpush.msra.mxu0 0.0
        %584 = vmatpush.msra.mxu0 0.0
        %585 = vmatpush.msra.mxu0 0.0
        %586 = vmatpush.msra.mxu0 0.0
        %587 = vmatpush.msra.mxu0 0.0
        %588 = vmatpush.msra.mxu0 0.0
        %589 = vmatpush.msra.mxu0 0.0
        %590 = vmatpush.msra.mxu0 0.0
        %591 = vmatpush.msra.mxu0 0.0
        %592 = vmatpush.msra.mxu0 0.0
        %593 = vmatpush.msra.mxu0 0.0
        %594 = vmatpush.msra.mxu0 %v574
        %595 = vmatpush.msra.mxu0 %v573
        %596 = vmatpush.msra.mxu0 %v572
        %597 = vmatpush.msra.mxu0 %v571
        %598 = vmatmul.f32.gmra.mxu0 %v577
        %v599 = vpop.f32.mrf.mxu0
        %v600 = vadd.f32 0.0, %v599
        %601 = vmatmul.f32.gmra.mxu0 %v580
        %v602 = vpop.f32.mrf.mxu0
        %v603 = vadd.f32 0.0, %v602
        %604 = vdwg.mxu0
        %v605 = vld [vmem:[%s516] sm:$0xff]
        %v606 = vld [vmem:[%s516 + $0x8] sm:$0xff]
        %vm607 = vcmask 523264
        %608 = vst.msk [vmem:[#allocation2] sm:$0xff] %vm607, %v605
        %609 = vst.msk [vmem:[#allocation2 + $0x8] sm:$0xff] %vm607, %v606
        %612 = vrot.lane.b32.xlu0 %v600, 64
        %v613 = vpop.permute.xlu0 %612
        %614 = vrot.lane.b32.xlu0 %v603, 64
        %v615 = vpop.permute.xlu0 %614
        %618 = vst.msk [vmem:[#allocation2 + $0x10] sm:$0xff] %vm607, %v613
        %619 = vst.msk [vmem:[#allocation2 + $0x18] sm:$0xff] %vm607, %v615
        %v620 = vld [vmem:[%s519] sm:$0x1]
        %v622 = vperm.slane %v620, 0
        %v624 = vadd.f32 %v600, %v622
        %v625 = vadd.f32 %v603, %v622
        %626 = vst.msk [vmem:[#allocation2 + $0x20] sm:$0xff] %vm607, %v624
        %627 = vst.msk [vmem:[#allocation2 + $0x28] sm:$0xff] %vm607, %v625
        %v628 = vld [vmem:[%s3] sm:$0xff]
        %v629 = vld [vmem:[%s3 + $0x8] sm:$0xff]
        %v630 = vld [vmem:[%s3 + $0x10] sm:$0xff]
        %v631 = vld [vmem:[%s3 + $0x18] sm:$0xff]
        %v632 = vld [vmem:[%s3 + $0x20] sm:$0xff]
        %v633 = vld [vmem:[%s3 + $0x28] sm:$0xff]
        %v634 = vld [vmem:[%s3 + $0x30] sm:$0xff]
        %v635 = vld [vmem:[%s3 + $0x38] sm:$0xff]
        %v636 = vld [vmem:[%s3 + $0x40] sm:$0xff]
        %v637 = vld [vmem:[%s3 + $0x48] sm:$0xff]
        %v638 = vld [vmem:[%s3 + $0x50] sm:$0xff]
        %v639 = vld [vmem:[%s3 + $0x58] sm:$0xff]
        %v640 = vld [vmem:[%s3 + $0x60] sm:$0xff]
        %v641 = vld [vmem:[%s3 + $0x68] sm:$0xff]
        %v642 = vld [vmem:[%s3 + $0x70] sm:$0xff]
        %v643 = vld [vmem:[%s3 + $0x78] sm:$0xff]
        %v644 = vld [vmem:[#allocation2] sm:$0xff]
        %v645 = vld [vmem:[#allocation2 + $0x8] sm:$0xff]
        %v646 = vld [vmem:[#allocation2 + $0x10] sm:$0xff]
        %v647 = vld [vmem:[#allocation2 + $0x18] sm:$0xff]
        %v648 = vld [vmem:[#allocation2 + $0x20] sm:$0xff]
        %v649 = vld [vmem:[#allocation2 + $0x28] sm:$0xff]
        %vm650 = vcmask 392192
        %v652 = vsel %vm650, %v628, 0
        %v655 = vsel %vm650, %v629, 0
        %v658 = vsel %vm650, %v630, 0
        %v661 = vsel %vm650, %v631, 0
        %v664 = vsel %vm650, %v632, 0
        %v667 = vsel %vm650, %v633, 0
        %v670 = vsel %vm650, %v634, 0
        %v673 = vsel %vm650, %v635, 0
        %v676 = vsel %vm650, %v636, 0
        %v679 = vsel %vm650, %v637, 0
        %v682 = vsel %vm650, %v638, 0
        %v685 = vsel %vm650, %v639, 0
        %v688 = vsel %vm650, %v640, 0
        %v691 = vsel %vm650, %v641, 0
        %v694 = vsel %vm650, %v642, 0
        %v697 = vsel %vm650, %v643, 0
        %699 = vmatpush.msra.mxu0 0.0
        %700 = vmatpush.msra.mxu0 0.0
        %701 = vmatpush.msra.mxu0 0.0
        %702 = vmatpush.msra.mxu0 0.0
        %703 = vmatpush.msra.mxu0 0.0
        %704 = vmatpush.msra.mxu0 0.0
        %705 = vmatpush.msra.mxu0 0.0
        %706 = vmatpush.msra.mxu0 0.0
        %707 = vmatpush.msra.mxu0 0.0
        %708 = vmatpush.msra.mxu0 0.0
        %709 = vmatpush.msra.mxu0 %v649
        %710 = vmatpush.msra.mxu0 %v648
        %711 = vmatpush.msra.mxu0 %v647
        %712 = vmatpush.msra.mxu0 %v646
        %713 = vmatpush.msra.mxu0 %v645
        %714 = vmatpush.msra.mxu0 %v644
        %715 = vmatmul.f32.gmra.mxu0 %v652
        %v716 = vpop.f32.mrf.mxu0
        %v717 = vadd.f32 0.0, %v716
        %718 = vmatmul.f32.gmra.mxu0 %v655
        %v719 = vpop.f32.mrf.mxu0
        %v720 = vadd.f32 0.0, %v719
        %721 = vmatmul.f32.gmra.mxu0 %v658
        %v722 = vpop.f32.mrf.mxu0
        %v723 = vadd.f32 0.0, %v722
        %724 = vmatmul.f32.gmra.mxu0 %v661
        %v725 = vpop.f32.mrf.mxu0
        %v726 = vadd.f32 0.0, %v725
        %727 = vmatmul.f32.gmra.mxu0 %v664
        %v728 = vpop.f32.mrf.mxu0
        %v729 = vadd.f32 0.0, %v728
        %730 = vmatmul.f32.gmra.mxu0 %v667
        %v731 = vpop.f32.mrf.mxu0
        %v732 = vadd.f32 0.0, %v731
        %733 = vmatmul.f32.gmra.mxu0 %v670
        %v734 = vpop.f32.mrf.mxu0
        %v735 = vadd.f32 0.0, %v734
        %736 = vmatmul.f32.gmra.mxu0 %v673
        %v737 = vpop.f32.mrf.mxu0
        %v738 = vadd.f32 0.0, %v737
        %739 = vmatmul.f32.gmra.mxu0 %v676
        %v740 = vpop.f32.mrf.mxu0
        %v741 = vadd.f32 0.0, %v740
        %742 = vmatmul.f32.gmra.mxu0 %v679
        %v743 = vpop.f32.mrf.mxu0
        %v744 = vadd.f32 0.0, %v743
        %745 = vmatmul.f32.gmra.mxu0 %v682
        %v746 = vpop.f32.mrf.mxu0
        %v747 = vadd.f32 0.0, %v746
        %748 = vmatmul.f32.gmra.mxu0 %v685
        %v749 = vpop.f32.mrf.mxu0
        %v750 = vadd.f32 0.0, %v749
        %751 = vmatmul.f32.gmra.mxu0 %v688
        %v752 = vpop.f32.mrf.mxu0
        %v753 = vadd.f32 0.0, %v752
        %754 = vmatmul.f32.gmra.mxu0 %v691
        %v755 = vpop.f32.mrf.mxu0
        %v756 = vadd.f32 0.0, %v755
        %757 = vmatmul.f32.gmra.mxu0 %v694
        %v758 = vpop.f32.mrf.mxu0
        %v759 = vadd.f32 0.0, %v758
        %760 = vmatmul.f32.gmra.mxu0 %v697
        %v761 = vpop.f32.mrf.mxu0
        %v762 = vadd.f32 0.0, %v761
        %763 = vdwg.mxu0
        %v764 = vmul.f32 %v717, 0.5
        %v765 = vmul.f32 %v720, 0.5
        %v766 = vmul.f32 %v723, 0.5
        %v767 = vmul.f32 %v726, 0.5
        %v768 = vmul.f32 %v729, 0.5
        %v769 = vmul.f32 %v732, 0.5
        %v770 = vmul.f32 %v735, 0.5
        %v771 = vmul.f32 %v738, 0.5
        %v772 = vmul.f32 %v741, 0.5
        %v773 = vmul.f32 %v744, 0.5
        %v774 = vmul.f32 %v747, 0.5
        %v775 = vmul.f32 %v750, 0.5
        %v776 = vmul.f32 %v753, 0.5
        %v777 = vmul.f32 %v756, 0.5
        %v778 = vmul.f32 %v759, 0.5
        %v779 = vmul.f32 %v762, 0.5
        %v780 = vtanh.pop %v764
        %v781 = vtanh.pop %v765
        %v782 = vtanh.pop %v766
        %v783 = vtanh.pop %v767
        %v784 = vtanh.pop %v768
        %v785 = vtanh.pop %v769
        %v786 = vtanh.pop %v770
        %v787 = vtanh.pop %v771
        %v788 = vtanh.pop %v772
        %v789 = vtanh.pop %v773
        %v790 = vtanh.pop %v774
        %v791 = vtanh.pop %v775
        %v792 = vtanh.pop %v776
        %v793 = vtanh.pop %v777
        %v794 = vtanh.pop %v778
        %v795 = vtanh.pop %v779
        %v796 = vadd.f32 %v780, 1.0
        %v797 = vadd.f32 %v781, 1.0
        %v798 = vadd.f32 %v782, 1.0
        %v799 = vadd.f32 %v783, 1.0
        %v800 = vadd.f32 %v784, 1.0
        %v801 = vadd.f32 %v785, 1.0
        %v802 = vadd.f32 %v786, 1.0
        %v803 = vadd.f32 %v787, 1.0
        %v804 = vadd.f32 %v788, 1.0
        %v805 = vadd.f32 %v789, 1.0
        %v806 = vadd.f32 %v790, 1.0
        %v807 = vadd.f32 %v791, 1.0
        %v808 = vadd.f32 %v792, 1.0
        %v809 = vadd.f32 %v793, 1.0
        %v810 = vadd.f32 %v794, 1.0
        %v811 = vadd.f32 %v795, 1.0
        %v812 = vmul.f32 %v796, 0.5
        %v813 = vmul.f32 %v797, 0.5
        %v814 = vmul.f32 %v798, 0.5
        %v815 = vmul.f32 %v799, 0.5
        %v816 = vmul.f32 %v800, 0.5
        %v817 = vmul.f32 %v801, 0.5
        %v818 = vmul.f32 %v802, 0.5
        %v819 = vmul.f32 %v803, 0.5
        %v820 = vmul.f32 %v804, 0.5
        %v821 = vmul.f32 %v805, 0.5
        %v822 = vmul.f32 %v806, 0.5
        %v823 = vmul.f32 %v807, 0.5
        %v824 = vmul.f32 %v808, 0.5
        %v825 = vmul.f32 %v809, 0.5
        %v826 = vmul.f32 %v810, 0.5
        %v827 = vmul.f32 %v811, 0.5
        %v828 = vmax.f32 %v717, 0.0
        %v829 = vmax.f32 %v720, 0.0
        %v830 = vmax.f32 %v723, 0.0
        %v831 = vmax.f32 %v726, 0.0
        %v832 = vmax.f32 %v729, 0.0
        %v833 = vmax.f32 %v732, 0.0
        %v834 = vmax.f32 %v735, 0.0
        %v835 = vmax.f32 %v738, 0.0
        %v836 = vmax.f32 %v741, 0.0
        %v837 = vmax.f32 %v744, 0.0
        %v838 = vmax.f32 %v747, 0.0
        %v839 = vmax.f32 %v750, 0.0
        %v840 = vmax.f32 %v753, 0.0
        %v841 = vmax.f32 %v756, 0.0
        %v842 = vmax.f32 %v759, 0.0
        %v843 = vmax.f32 %v762, 0.0
        %v844 = vand.u32 2147483647, %v717
        %v845 = vand.u32 2147483647, %v720
        %v846 = vand.u32 2147483647, %v723
        %v847 = vand.u32 2147483647, %v726
        %v848 = vand.u32 2147483647, %v729
        %v849 = vand.u32 2147483647, %v732
        %v850 = vand.u32 2147483647, %v735
        %v851 = vand.u32 2147483647, %v738
        %v852 = vand.u32 2147483647, %v741
        %v853 = vand.u32 2147483647, %v744
        %v854 = vand.u32 2147483647, %v747
        %v855 = vand.u32 2147483647, %v750
        %v856 = vand.u32 2147483647, %v753
        %v857 = vand.u32 2147483647, %v756
        %v858 = vand.u32 2147483647, %v759
        %v859 = vand.u32 2147483647, %v762
        %v860 = vsub.f32 0.0, %v844
        %v861 = vsub.f32 0.0, %v845
        %v862 = vsub.f32 0.0, %v846
        %v863 = vsub.f32 0.0, %v847
        %v864 = vsub.f32 0.0, %v848
        %v865 = vsub.f32 0.0, %v849
        %v866 = vsub.f32 0.0, %v850
        %v867 = vsub.f32 0.0, %v851
        %v868 = vsub.f32 0.0, %v852
        %v869 = vsub.f32 0.0, %v853
        %v870 = vsub.f32 0.0, %v854
        %v871 = vsub.f32 0.0, %v855
        %v872 = vsub.f32 0.0, %v856
        %v873 = vsub.f32 0.0, %v857
        %v874 = vsub.f32 0.0, %v858
        %v875 = vsub.f32 0.0, %v859
        %v876 = vmul.f32 %v860, 1.442695
        %v877 = vpow.pop %v876
        %v878 = vmul.f32 %v861, 1.442695
        %v879 = vpow.pop %v878
        %v880 = vmul.f32 %v862, 1.442695
        %v881 = vpow.pop %v880
        %v882 = vmul.f32 %v863, 1.442695
        %v883 = vpow.pop %v882
        %v884 = vmul.f32 %v864, 1.442695
        %v885 = vpow.pop %v884
        %v886 = vmul.f32 %v865, 1.442695
        %v887 = vpow.pop %v886
        %v888 = vmul.f32 %v866, 1.442695
        %v889 = vpow.pop %v888
        %v890 = vmul.f32 %v867, 1.442695
        %v891 = vpow.pop %v890
        %v892 = vmul.f32 %v868, 1.442695
        %v893 = vpow.pop %v892
        %v894 = vmul.f32 %v869, 1.442695
        %v895 = vpow.pop %v894
        %v896 = vmul.f32 %v870, 1.442695
        %v897 = vpow.pop %v896
        %v898 = vmul.f32 %v871, 1.442695
        %v899 = vpow.pop %v898
        %v900 = vmul.f32 %v872, 1.442695
        %v901 = vpow.pop %v900
        %v902 = vmul.f32 %v873, 1.442695
        %v903 = vpow.pop %v902
        %v904 = vmul.f32 %v874, 1.442695
        %v905 = vpow.pop %v904
        %v906 = vmul.f32 %v875, 1.442695
        %v907 = vpow.pop %v906
        %v908 = vadd.f32 %v877, 1.0
        %v909 = vlog2.pop %v908
        %v910 = vmul.f32 %v909, 0.6931472
        %v911 = vmul.f32 -0.5, %v877
        %v912 = vadd.f32 %v911, 1.0
        %v913 = vmul.f32 %v912, %v877
        %v914 = vand.u32 2147483647, %v877
        %vm915 = vcmp.lt.f32.partialorder %v914, 0.0004427343
        %v916 = vsel %vm915, %v913, %v910
        %v917 = vadd.f32 %v879, 1.0
        %v918 = vlog2.pop %v917
        %v919 = vmul.f32 %v918, 0.6931472
        %v920 = vmul.f32 -0.5, %v879
        %v921 = vadd.f32 %v920, 1.0
        %v922 = vmul.f32 %v921, %v879
        %v923 = vand.u32 2147483647, %v879
        %vm924 = vcmp.lt.f32.partialorder %v923, 0.0004427343
        %v925 = vsel %vm924, %v922, %v919
        %v926 = vadd.f32 %v881, 1.0
        %v927 = vlog2.pop %v926
        %v928 = vmul.f32 %v927, 0.6931472
        %v929 = vmul.f32 -0.5, %v881
        %v930 = vadd.f32 %v929, 1.0
        %v931 = vmul.f32 %v930, %v881
        %v932 = vand.u32 2147483647, %v881
        %vm933 = vcmp.lt.f32.partialorder %v932, 0.0004427343
        %v934 = vsel %vm933, %v931, %v928
        %v935 = vadd.f32 %v883, 1.0
        %v936 = vlog2.pop %v935
        %v937 = vmul.f32 %v936, 0.6931472
        %v938 = vmul.f32 -0.5, %v883
        %v939 = vadd.f32 %v938, 1.0
        %v940 = vmul.f32 %v939, %v883
        %v941 = vand.u32 2147483647, %v883
        %vm942 = vcmp.lt.f32.partialorder %v941, 0.0004427343
        %v943 = vsel %vm942, %v940, %v937
        %v944 = vadd.f32 %v885, 1.0
        %v945 = vlog2.pop %v944
        %v946 = vmul.f32 %v945, 0.6931472
        %v947 = vmul.f32 -0.5, %v885
        %v948 = vadd.f32 %v947, 1.0
        %v949 = vmul.f32 %v948, %v885
        %v950 = vand.u32 2147483647, %v885
        %vm951 = vcmp.lt.f32.partialorder %v950, 0.0004427343
        %v952 = vsel %vm951, %v949, %v946
        %v953 = vadd.f32 %v887, 1.0
        %v954 = vlog2.pop %v953
        %v955 = vmul.f32 %v954, 0.6931472
        %v956 = vmul.f32 -0.5, %v887
        %v957 = vadd.f32 %v956, 1.0
        %v958 = vmul.f32 %v957, %v887
        %v959 = vand.u32 2147483647, %v887
        %vm960 = vcmp.lt.f32.partialorder %v959, 0.0004427343
        %v961 = vsel %vm960, %v958, %v955
        %v962 = vadd.f32 %v889, 1.0
        %v963 = vlog2.pop %v962
        %v964 = vmul.f32 %v963, 0.6931472
        %v965 = vmul.f32 -0.5, %v889
        %v966 = vadd.f32 %v965, 1.0
        %v967 = vmul.f32 %v966, %v889
        %v968 = vand.u32 2147483647, %v889
        %vm969 = vcmp.lt.f32.partialorder %v968, 0.0004427343
        %v970 = vsel %vm969, %v967, %v964
        %v971 = vadd.f32 %v891, 1.0
        %v972 = vlog2.pop %v971
        %v973 = vmul.f32 %v972, 0.6931472
        %v974 = vmul.f32 -0.5, %v891
        %v975 = vadd.f32 %v974, 1.0
        %v976 = vmul.f32 %v975, %v891
        %v977 = vand.u32 2147483647, %v891
        %vm978 = vcmp.lt.f32.partialorder %v977, 0.0004427343
        %v979 = vsel %vm978, %v976, %v973
        %v980 = vadd.f32 %v893, 1.0
        %v981 = vlog2.pop %v980
        %v982 = vmul.f32 %v981, 0.6931472
        %v983 = vmul.f32 -0.5, %v893
        %v984 = vadd.f32 %v983, 1.0
        %v985 = vmul.f32 %v984, %v893
        %v986 = vand.u32 2147483647, %v893
        %vm987 = vcmp.lt.f32.partialorder %v986, 0.0004427343
        %v988 = vsel %vm987, %v985, %v982
        %v989 = vadd.f32 %v895, 1.0
        %v990 = vlog2.pop %v989
        %v991 = vmul.f32 %v990, 0.6931472
        %v992 = vmul.f32 -0.5, %v895
        %v993 = vadd.f32 %v992, 1.0
        %v994 = vmul.f32 %v993, %v895
        %v995 = vand.u32 2147483647, %v895
        %vm996 = vcmp.lt.f32.partialorder %v995, 0.0004427343
        %v997 = vsel %vm996, %v994, %v991
        %v998 = vadd.f32 %v897, 1.0
        %v999 = vlog2.pop %v998
        %v1000 = vmul.f32 %v999, 0.6931472
        %v1001 = vmul.f32 -0.5, %v897
        %v1002 = vadd.f32 %v1001, 1.0
        %v1003 = vmul.f32 %v1002, %v897
        %v1004 = vand.u32 2147483647, %v897
        %vm1005 = vcmp.lt.f32.partialorder %v1004, 0.0004427343
        %v1006 = vsel %vm1005, %v1003, %v1000
        %v1007 = vadd.f32 %v899, 1.0
        %v1008 = vlog2.pop %v1007
        %v1009 = vmul.f32 %v1008, 0.6931472
        %v1010 = vmul.f32 -0.5, %v899
        %v1011 = vadd.f32 %v1010, 1.0
        %v1012 = vmul.f32 %v1011, %v899
        %v1013 = vand.u32 2147483647, %v899
        %vm1014 = vcmp.lt.f32.partialorder %v1013, 0.0004427343
        %v1015 = vsel %vm1014, %v1012, %v1009
        %v1016 = vadd.f32 %v901, 1.0
        %v1017 = vlog2.pop %v1016
        %v1018 = vmul.f32 %v1017, 0.6931472
        %v1019 = vmul.f32 -0.5, %v901
        %v1020 = vadd.f32 %v1019, 1.0
        %v1021 = vmul.f32 %v1020, %v901
        %v1022 = vand.u32 2147483647, %v901
        %vm1023 = vcmp.lt.f32.partialorder %v1022, 0.0004427343
        %v1024 = vsel %vm1023, %v1021, %v1018
        %v1025 = vadd.f32 %v903, 1.0
        %v1026 = vlog2.pop %v1025
        %v1027 = vmul.f32 %v1026, 0.6931472
        %v1028 = vmul.f32 -0.5, %v903
        %v1029 = vadd.f32 %v1028, 1.0
        %v1030 = vmul.f32 %v1029, %v903
        %v1031 = vand.u32 2147483647, %v903
        %vm1032 = vcmp.lt.f32.partialorder %v1031, 0.0004427343
        %v1033 = vsel %vm1032, %v1030, %v1027
        %v1034 = vadd.f32 %v905, 1.0
        %v1035 = vlog2.pop %v1034
        %v1036 = vmul.f32 %v1035, 0.6931472
        %v1037 = vmul.f32 -0.5, %v905
        %v1038 = vadd.f32 %v1037, 1.0
        %v1039 = vmul.f32 %v1038, %v905
        %v1040 = vand.u32 2147483647, %v905
        %vm1041 = vcmp.lt.f32.partialorder %v1040, 0.0004427343
        %v1042 = vsel %vm1041, %v1039, %v1036
        %v1043 = vadd.f32 %v907, 1.0
        %v1044 = vlog2.pop %v1043
        %v1045 = vmul.f32 %v1044, 0.6931472
        %v1046 = vmul.f32 -0.5, %v907
        %v1047 = vadd.f32 %v1046, 1.0
        %v1048 = vmul.f32 %v1047, %v907
        %v1049 = vand.u32 2147483647, %v907
        %vm1050 = vcmp.lt.f32.partialorder %v1049, 0.0004427343
        %v1051 = vsel %vm1050, %v1048, %v1045
        %v1052 = vadd.f32 %v828, %v916
        %v1053 = vadd.f32 %v829, %v925
        %v1054 = vadd.f32 %v830, %v934
        %v1055 = vadd.f32 %v831, %v943
        %v1056 = vadd.f32 %v832, %v952
        %v1057 = vadd.f32 %v833, %v961
        %v1058 = vadd.f32 %v834, %v970
        %v1059 = vadd.f32 %v835, %v979
        %v1060 = vadd.f32 %v836, %v988
        %v1061 = vadd.f32 %v837, %v997
        %v1062 = vadd.f32 %v838, %v1006
        %v1063 = vadd.f32 %v839, %v1015
        %v1064 = vadd.f32 %v840, %v1024
        %v1065 = vadd.f32 %v841, %v1033
        %v1066 = vadd.f32 %v842, %v1042
        %v1067 = vadd.f32 %v843, %v1051
        %1084 = vrot.lane.b32.xlu0 %v1052, 96
        %v1085 = vpop.permute.xlu0 %1084
        %1086 = vrot.lane.b32.xlu0 %v1053, 96
        %v1087 = vpop.permute.xlu0 %1086
        %1088 = vrot.lane.b32.xlu0 %v1054, 96
        %v1089 = vpop.permute.xlu0 %1088
        %1090 = vrot.lane.b32.xlu0 %v1055, 96
        %v1091 = vpop.permute.xlu0 %1090
        %1092 = vrot.lane.b32.xlu0 %v1056, 96
        %v1093 = vpop.permute.xlu0 %1092
        %1094 = vrot.lane.b32.xlu0 %v1057, 96
        %v1095 = vpop.permute.xlu0 %1094
        %1096 = vrot.lane.b32.xlu0 %v1058, 96
        %v1097 = vpop.permute.xlu0 %1096
        %1098 = vrot.lane.b32.xlu0 %v1059, 96
        %v1099 = vpop.permute.xlu0 %1098
        %1100 = vrot.lane.b32.xlu0 %v1060, 96
        %v1101 = vpop.permute.xlu0 %1100
        %1102 = vrot.lane.b32.xlu0 %v1061, 96
        %v1103 = vpop.permute.xlu0 %1102
        %1104 = vrot.lane.b32.xlu0 %v1062, 96
        %v1105 = vpop.permute.xlu0 %1104
        %1106 = vrot.lane.b32.xlu0 %v1063, 96
        %v1107 = vpop.permute.xlu0 %1106
        %1108 = vrot.lane.b32.xlu0 %v1064, 96
        %v1109 = vpop.permute.xlu0 %1108
        %1110 = vrot.lane.b32.xlu0 %v1065, 96
        %v1111 = vpop.permute.xlu0 %1110
        %1112 = vrot.lane.b32.xlu0 %v1066, 96
        %v1113 = vpop.permute.xlu0 %1112
        %1114 = vrot.lane.b32.xlu0 %v1067, 96
        %v1115 = vpop.permute.xlu0 %1114
        %v1132 = vmul.f32 %v812, %v1085
        %v1133 = vmul.f32 %v813, %v1087
        %v1134 = vmul.f32 %v814, %v1089
        %v1135 = vmul.f32 %v815, %v1091
        %v1136 = vmul.f32 %v816, %v1093
        %v1137 = vmul.f32 %v817, %v1095
        %v1138 = vmul.f32 %v818, %v1097
        %v1139 = vmul.f32 %v819, %v1099
        %v1140 = vmul.f32 %v820, %v1101
        %v1141 = vmul.f32 %v821, %v1103
        %v1142 = vmul.f32 %v822, %v1105
        %v1143 = vmul.f32 %v823, %v1107
        %v1144 = vmul.f32 %v824, %v1109
        %v1145 = vmul.f32 %v825, %v1111
        %v1146 = vmul.f32 %v826, %v1113
        %v1147 = vmul.f32 %v827, %v1115
        %v1148 = vld [vmem:[#allocation4] sm:$0xff]
        %v1149 = vld [vmem:[#allocation4 + $0x8] sm:$0xff]
        %1150 = vmatpush.msra.mxu0 %v1147
        %1151 = vmatpush.msra.mxu0 %v1146
        %1152 = vmatpush.msra.mxu0 %v1145
        %1153 = vmatpush.msra.mxu0 %v1144
        %1154 = vmatpush.msra.mxu0 %v1143
        %1155 = vmatpush.msra.mxu0 %v1142
        %1156 = vmatpush.msra.mxu0 %v1141
        %1157 = vmatpush.msra.mxu0 %v1140
        %1158 = vmatpush.msra.mxu0 %v1139
        %1159 = vmatpush.msra.mxu0 %v1138
        %1160 = vmatpush.msra.mxu0 %v1137
        %1161 = vmatpush.msra.mxu0 %v1136
        %1162 = vmatpush.msra.mxu0 %v1135
        %1163 = vmatpush.msra.mxu0 %v1134
        %1164 = vmatpush.msra.mxu0 %v1133
        %1165 = vmatpush.msra.mxu0 %v1132
        %1166 = vmatmul.f32.gmra.mxu0 %v1148
        %v1167 = vpop.f32.mrf.mxu0
        %v1168 = vadd.f32 0.0, %v1167
        %1169 = vmatmul.f32.gmra.mxu0 %v1149
        %v1170 = vpop.f32.mrf.mxu0
        %v1171 = vadd.f32 0.0, %v1170
        %1172 = vdwg.mxu0
        %v1173 = vadd.f32 %v569, %v1168
        %v1174 = vadd.f32 %v570, %v1171
        %v1175 = vmax.f32 %v1173, 0.0
        %v1176 = vmax.f32 %v1174, 0.0
        %v1177 = vand.u32 2147483647, %v1173
        %v1178 = vand.u32 2147483647, %v1174
        %v1179 = vsub.f32 0.0, %v1177
        %v1180 = vsub.f32 0.0, %v1178
        %v1181 = vmul.f32 %v1179, 1.442695
        %v1182 = vpow.pop %v1181
        %v1183 = vmul.f32 %v1180, 1.442695
        %v1184 = vpow.pop %v1183
        %v1185 = vadd.f32 %v1182, 1.0
        %v1186 = vlog2.pop %v1185
        %v1187 = vmul.f32 %v1186, 0.6931472
        %v1188 = vmul.f32 -0.5, %v1182
        %v1189 = vadd.f32 %v1188, 1.0
        %v1190 = vmul.f32 %v1189, %v1182
        %v1191 = vand.u32 2147483647, %v1182
        %vm1192 = vcmp.lt.f32.partialorder %v1191, 0.0004427343
        %v1193 = vsel %vm1192, %v1190, %v1187
        %v1194 = vadd.f32 %v1184, 1.0
        %v1195 = vlog2.pop %v1194
        %v1196 = vmul.f32 %v1195, 0.6931472
        %v1197 = vmul.f32 -0.5, %v1184
        %v1198 = vadd.f32 %v1197, 1.0
        %v1199 = vmul.f32 %v1198, %v1184
        %v1200 = vand.u32 2147483647, %v1184
        %vm1201 = vcmp.lt.f32.partialorder %v1200, 0.0004427343
        %v1202 = vsel %vm1201, %v1199, %v1196
        %v1203 = vadd.f32 %v1175, %v1193
        %v1204 = vadd.f32 %v1176, %v1202
        %1205 = vst.msk [vmem:[#allocation9] sm:$0xff] %vm575, %v1203
        %1206 = vst.msk [vmem:[#allocation9 + $0x8] sm:$0xff] %vm575, %v1204
        %p1207 = scmp.eq.s32.totalorder %s31, 2
        // Predicated region
        $region85: #{tpu_custom_call.1} parent=71 // pred_check
          %p1208 = pneg %p1207
        $region86: #{tpu_custom_call.1} parent=71 // pred_check_branch
          %1210 = sbr.rel (%p1208) target = $region88
        $region87: #{tpu_custom_call.1} parent=71 // pred_region
          %v1211 = vld [vmem:[#allocation7] sm:$0xff]
          %vm1212 = vcmask 130048
          %v1214 = vsel %vm1212, %v1211, 0
          %1216 = vmatpush.msra.mxu0 0.0
          %1217 = vmatpush.msra.mxu0 0.0
          %1218 = vmatpush.msra.mxu0 0.0
          %1219 = vmatpush.msra.mxu0 0.0
          %1220 = vmatpush.msra.mxu0 0.0
          %1221 = vmatpush.msra.mxu0 0.0
          %1222 = vmatpush.msra.mxu0 0.0
          %1223 = vmatpush.msra.mxu0 0.0
          %1224 = vmatpush.msra.mxu0 0.0
          %1225 = vmatpush.msra.mxu0 0.0
          %1226 = vmatpush.msra.mxu0 0.0
          %1227 = vmatpush.msra.mxu0 0.0
          %1228 = vmatpush.msra.mxu0 0.0
          %1229 = vmatpush.msra.mxu0 0.0
          %1230 = vmatpush.msra.mxu0 %v1204
          %1231 = vmatpush.msra.mxu0 %v1203
          %1232 = vmatmul.f32.gmra.mxu0 %v1214
          %v1233 = vpop.f32.mrf.mxu0
          %v1234 = vadd.f32 0.0, %v1233
          %1235 = vdwg.mxu0
          %v1236 = vmax.f32 %v1234, 0.0
          %v1237 = vand.u32 2147483647, %v1234
          %v1238 = vsub.f32 0.0, %v1237
          %v1239 = vmul.f32 %v1238, 1.442695
          %v1240 = vpow.pop %v1239
          %v1241 = vadd.f32 %v1240, 1.0
          %v1242 = vlog2.pop %v1241
          %v1243 = vmul.f32 %v1242, 0.6931472
          %v1244 = vmul.f32 -0.5, %v1240
          %v1245 = vadd.f32 %v1244, 1.0
          %v1246 = vmul.f32 %v1245, %v1240
          %v1247 = vand.u32 2147483647, %v1240
          %vm1248 = vcmp.lt.f32.partialorder %v1247, 0.0004427343
          %v1249 = vsel %vm1248, %v1246, %v1243
          %v1250 = vadd.f32 %v1236, %v1249
          %v1251 = vld [vmem:[%s9] sm:$0xff]
          %v1252 = vld [vmem:[%s9 + $0x8] sm:$0xff]
          %v1253 = vld [vmem:[%s9 + $0x10] sm:$0xff]
          %v1254 = vld [vmem:[%s9 + $0x18] sm:$0xff]
          %v1255 = vld [vmem:[%s10] sm:$0x1]
          %v1257 = vperm.slane %v1255, 0
          %v1260 = vsel %vm575, %v1250, 0
          %1262 = vmatpush.msra.mxu0 0.0
          %1263 = vmatpush.msra.mxu0 0.0
          %1264 = vmatpush.msra.mxu0 0.0
          %1265 = vmatpush.msra.mxu0 0.0
          %1266 = vmatpush.msra.mxu0 0.0
          %1267 = vmatpush.msra.mxu0 0.0
          %1268 = vmatpush.msra.mxu0 0.0
          %1269 = vmatpush.msra.mxu0 0.0
          %1270 = vmatpush.msra.mxu0 0.0
          %1271 = vmatpush.msra.mxu0 0.0
          %1272 = vmatpush.msra.mxu0 0.0
          %1273 = vmatpush.msra.mxu0 0.0
          %1274 = vmatpush.msra.mxu0 %v1254
          %1275 = vmatpush.msra.mxu0 %v1253
          %1276 = vmatpush.msra.mxu0 %v1252
          %1277 = vmatpush.msra.mxu0 %v1251
          %1278 = vmatmul.f32.gmra.mxu0 %v1260
          %v1279 = vpop.f32.mrf.mxu0
          %v1280 = vadd.f32 %v1257, %v1279
          %1281 = vdwg.mxu0
          %v1282 = vmax.f32 %v1280, 0.0
          %v1283 = vand.u32 2147483647, %v1280
          %v1284 = vsub.f32 0.0, %v1283
          %v1285 = vmul.f32 %v1284, 1.442695
          %v1286 = vpow.pop %v1285
          %v1287 = vadd.f32 %v1286, 1.0
          %v1288 = vlog2.pop %v1287
          %v1289 = vmul.f32 %v1288, 0.6931472
          %v1290 = vmul.f32 -0.5, %v1286
          %v1291 = vadd.f32 %v1290, 1.0
          %v1292 = vmul.f32 %v1291, %v1286
          %v1293 = vand.u32 2147483647, %v1286
          %vm1294 = vcmp.lt.f32.partialorder %v1293, 0.0004427343
          %v1295 = vsel %vm1294, %v1292, %v1289
          %v1296 = vadd.f32 %v1282, %v1295
          %v1297 = vld [vmem:[%s11] sm:$0xff]
          %v1298 = vld [vmem:[%s11 + $0x8] sm:$0xff]
          %v1299 = vld [vmem:[%s11 + $0x10] sm:$0xff]
          %v1300 = vld [vmem:[%s11 + $0x18] sm:$0xff]
          %v1301 = vld [vmem:[#allocation3] sm:$0x1]
          %v1303 = vperm.slane %v1301, 0
          %v1306 = vsel %vm575, %v1296, 0
          %1308 = vmatpush.msra.mxu0 0.0
          %1309 = vmatpush.msra.mxu0 0.0
          %1310 = vmatpush.msra.mxu0 0.0
          %1311 = vmatpush.msra.mxu0 0.0
          %1312 = vmatpush.msra.mxu0 0.0
          %1313 = vmatpush.msra.mxu0 0.0
          %1314 = vmatpush.msra.mxu0 0.0
          %1315 = vmatpush.msra.mxu0 0.0
          %1316 = vmatpush.msra.mxu0 0.0
          %1317 = vmatpush.msra.mxu0 0.0
          %1318 = vmatpush.msra.mxu0 0.0
          %1319 = vmatpush.msra.mxu0 0.0
          %1320 = vmatpush.msra.mxu0 %v1300
          %1321 = vmatpush.msra.mxu0 %v1299
          %1322 = vmatpush.msra.mxu0 %v1298
          %1323 = vmatpush.msra.mxu0 %v1297
          %1324 = vmatmul.f32.gmra.mxu0 %v1306
          %v1325 = vpop.f32.mrf.mxu0
          %v1326 = vadd.f32 %v1303, %v1325
          %1327 = vdwg.mxu0
          %vm1328 = vcmask 7168
          %1329 = vst.msk [vmem:[%s14] sm:$0xff] %vm1328, %v1326
        $region88: #{tpu_custom_call.1} parent=71 // pred_fallthru
          _
        // Predicated region
        $region89: #{tpu_custom_call.1} parent=71 // pred_check
          %p1330 = pneg %p332
        $region90: #{tpu_custom_call.1} parent=71 // pred_check_branch
          %1332 = sbr.rel (%p1330) target = $region92
        $region91: #{tpu_custom_call.1} parent=71 // pred_region
          %1334 = vsyncadd [#allocation6], 0
          %s1335 = sshll.u32 [#allocation9], 4
          %s1336 = int_to_ptr.vmem [resolvable:$true] %s1335
          %s1337 = sshll.u32 %s13, 4
          %s1338 = int_to_ptr.hbm [resolvable:$true] %s1337
          %1343 = dma.vmem_to_hbm [thread:$0]  %s1336, 256, %s1338, [#allocation6], 128, 128, 8
        $region92: #{tpu_custom_call.1} parent=71 // pred_fallthru
          _
        // Predicated region
        $region93: #{tpu_custom_call.1} parent=71 // pred_check
          %p1344 = pneg %p353
        $region94: #{tpu_custom_call.1} parent=71 // pred_check_branch
          %1346 = sbr.rel (%p1344) target = $region96
        $region95: #{tpu_custom_call.1} parent=71 // pred_region
          _
        $region96: #{tpu_custom_call.1} parent=71 // pred_fallthru
          _
        // Predicated region
        $region97: #{tpu_custom_call.1} parent=71 // pred_check
          %p1347 = pneg %p332
        $region98: #{tpu_custom_call.1} parent=71 // pred_check_branch
          %1349 = sbr.rel (%p1347) target = $region100
        $region99: #{tpu_custom_call.1} parent=71 // pred_region
          %1351 = dma.done [#allocation6], 256
        $region100: #{tpu_custom_call.1} parent=71 // pred_fallthru
          _
        // Predicated region
        $region101: #{tpu_custom_call.1} parent=71 // pred_check
          %p1352 = pneg %p353
        $region102: #{tpu_custom_call.1} parent=71 // pred_check_branch
          %1354 = sbr.rel (%p1352) target = $region104
        $region103: #{tpu_custom_call.1} parent=71 // pred_region
          _
        $region104: #{tpu_custom_call.1} parent=71 // pred_fallthru
          _
      $region72: #{tpu_custom_call.1} parent=5 // pred_fallthru
        _
      %p1355 = scmp.le.s32.totalorder 2, %s26
      // Predicated region
      $region105: #{tpu_custom_call.1} parent=5 // pred_check
        %p1356 = pneg %p1355
      $region106: #{tpu_custom_call.1} parent=5 // pred_check_branch
        %1358 = sbr.rel (%p1356) target = $region108
      $region107: #{tpu_custom_call.1} parent=5 // pred_region
        %s1359 = ssub.s32 %s26, 2
      $region108: #{tpu_custom_call.1} parent=5 // pred_fallthru
        _
    $region6: #{tpu_custom_call.1} parent=1 // loop_footer
      %s30 = sadd.s32 1, %s26
    $region7: #{tpu_custom_call.1} parent=1 // loop_footer_branch
      %25 = sbr.rel target = $region3
    $region8: #{tpu_custom_call.1} parent=1 // loop_exit
      _
    %1360 = vsyncpa [#allocation5], 1
    %s1361 = scalar_lea.sflag [#allocation5], 1
    %1362 = vsyncpa %s1361, 1
    %1363 = vsyncpa [#allocation8], 1
    %1364 = vsyncpa [#allocation6], 1
    %s1365 = scalar_lea.sflag [#allocation6], 1
    %1366 = vsyncpa %s1365, 1

// kernel: tpu_custom_call.1
$region0: #{tpu_custom_call.1}
  #allocation0 [shape = 'u32[]', space=smem, size = 0x4, offset = 0x4, fixed_abs, tag = 'smem constant byte address 0x4 - core index']
  #allocation1 [shape = 'u32[72,128]{1,0:T(1,128)}', space=vmem, size = 0x9000, scoped, tag = 'internal scratch']
  #allocation2 [shape = 'f32[48,64]{1,0:T(8,128)}', space=vmem, size = 0x6000, scoped, tag = 'scratch operand']
  #allocation3 [shape = 'f32[1,1]{1,0:T(1,128)S(1)}', space=vmem, size = 0x200, scoped, tag = 'scoped memory for tpu_custom_call.1']
  %s0 = inlined_call_operand.vmem [shape: f32[16,13], index: 0, kind: input, shape index: {}]
  %s1 = inlined_call_operand.vmem [shape: f32[13,32], index: 1, kind: input, shape index: {}]
  %s2 = inlined_call_operand.vmem [shape: f32[1,32], index: 2, kind: input, shape index: {}]
  %s3 = inlined_call_operand.vmem [shape: f32[128,48], index: 3, kind: input, shape index: {}]
  %s4 = inlined_call_operand.hbm [shape: f32[16,128], index: 4, kind: input, shape index: {}]
  %s5 = inlined_call_operand.vmem [shape: f32[3,32,128], index: 5, kind: input, shape index: {}]
  %s6 = inlined_call_operand.vmem [shape: f32[3,16,64], index: 6, kind: input, shape index: {}]
  %s7 = inlined_call_operand.vmem [shape: f32[3,1,64], index: 7, kind: input, shape index: {}]
  %s8 = inlined_call_operand.hbm [shape: f32[8,16], index: 8, kind: input, shape index: {}]
  %s9 = inlined_call_operand.vmem [shape: f32[32,32], index: 9, kind: input, shape index: {}]
  %s10 = inlined_call_operand.vmem [shape: f32[1,32], index: 10, kind: input, shape index: {}]
  %s11 = inlined_call_operand.vmem [shape: f32[32,1], index: 11, kind: input, shape index: {}]
  %s12 = inlined_call_operand.<no memory space> [shape: f32[1,1], index: 12, kind: input, shape index: {}]
  %s13 = inlined_call_operand.hbm [shape: f32[16,32], index: 13, kind: output, shape index: {0}]
  %s14 = inlined_call_operand.vmem [shape: f32[8,1], index: 14, kind: output, shape index: {1}]
  %15 = xla_tuple %s13, %s14
  %s16 = sld [smem:[#allocation0]]
  $region109: #{tpu_custom_call.1} parent=0
    _
  %s18 = ssub.s32 1, %s16
  %s19 = scalar_select 0, %s18, %s16
  %v20 = vstv %s12
  %21 = vst [vmem:[#allocation3] sm:$0x1] %v20
  $region1: #{tpu_custom_call.1} parent=0
    #allocation4 [shape = 'u8[8192]{0}', space=vmem, size = 0x2000, scoped, tag = 'input window, operand 4, single buffered']
    #allocation5 [shape = 's32[2]{0}', space=sflag, size = 0x8, scoped, tag = 'scoped memory for tpu_custom_call.1']
    #allocation6 [shape = 's32[2]{0}', space=sflag, size = 0x8, scoped, tag = 'scoped memory for tpu_custom_call.1']
    #allocation7 [shape = 'u8[4096]{0}', space=vmem, size = 0x1000, scoped, tag = 'input window, operand 8, single buffered']
    #allocation8 [shape = 's32[1]{0}', space=sflag, size = 0x4, scoped, tag = 'scoped memory for tpu_custom_call.1']
    #allocation9 [shape = 'u8[8192]{0}', space=vmem, size = 0x2000, scoped, tag = 'output window, operand 0, single buffered']
    %22 = vsyncpa [#allocation5], 0
    %23 = vsyncpa [#allocation8], 0
    %24 = vsyncpa [#allocation6], 0
    loop: start=0, step=1, limit=5
    $region2: #{tpu_custom_call.1} parent=1 // loop_pre_header
      _
    $region3: #{tpu_custom_call.1} parent=1 // loop_header
      %s26 = sphi 0, %s30
      %p27 = scmp.ge.s32.totalorder %s26, 5
      %s34 = sphi 0, %s34
      %s36 = sphi 0, %s34
      %s37 = sphi 0, %s36
      %s51 = sphi 0, %s37
      %s55 = sphi 0, %s55
      %s57 = sphi 0, %s55
      %s58 = sphi 0, %s57
      %s72 = sphi 0, %s58
      %s76 = sphi 0, %s76
      %s78 = sphi 0, %s76
      %s79 = sphi 0, %s78
      %s93 = sphi 0, %s79
      %s97 = sphi 0, %s97
      %s99 = sphi 0, %s97
      %s100 = sphi 0, %s99
      %s114 = sphi 0, %s100
      %s118 = sphi 0, %s118
      %s120 = sphi 0, %s118
      %s121 = sphi 0, %s120
      %s135 = sphi 0, %s121
      %s141 = sphi 0, %s143
      %s144 = sphi 0, %s141
      %s145 = sphi 0, %s144
      %s161 = sphi 0, %s145
      %s167 = sphi 0, %s169
      %s170 = sphi 0, %s167
      %s171 = sphi 0, %s170
      %s187 = sphi 0, %s171
      %s193 = sphi 0, %s195
      %s196 = sphi 0, %s193
      %s197 = sphi 0, %s196
      %s213 = sphi 0, %s197
      %s217 = sphi 0, %s217
      %s219 = sphi 0, %s217
      %s220 = sphi 0, %s219
      %s234 = sphi 0, %s220
      %s238 = sphi 0, %s238
      %s240 = sphi 0, %s238
      %s241 = sphi 0, %s240
      %s255 = sphi 0, %s241
      %s259 = sphi 0, %s259
      %s261 = sphi 0, %s259
      %s262 = sphi 0, %s261
      %s276 = sphi 0, %s262
      %s280 = sphi 0, %s280
      %s282 = sphi 0, %s280
      %s283 = sphi 0, %s282
      %s297 = sphi 0, %s283
      %s301 = sphi 0, %s301
      %s303 = sphi 0, %s301
      %s304 = sphi 0, %s303
      %s318 = sphi 0, %s304
      %s322 = sphi 0, %s322
      %s324 = sphi 0, %s322
      %s325 = sphi 0, %s324
      %s339 = sphi 0, %s325
      %s343 = sphi 0, %s343
      %s345 = sphi 0, %s343
      %s346 = sphi 0, %s345
      %s360 = sphi 0, %s346
    $region4: #{tpu_custom_call.1} parent=1 // loop_header_branch
      %29 = sbr.rel (%p27) target = $region8
    $region5: #{tpu_custom_call.1} parent=1 // loop_body
      %s31 = ssub.s32 %s26, 1
      %s32 = ssub.s32 %s26, 2
      %s33 = sadd.s32 %s26, 1
      %s35 = sadd.s32 %s34, 1
      %p38 = scmp.eq.s32.totalorder %s26, 2
      %p39 = scmp.ne.s32.totalorder %s34, %s36
      %p40 = scmp.eq.s32.totalorder %s26, 0
      %p41 = por %p39, %p40
      %p42 = scmp.ne.s32.totalorder %s34, %s36
      %p43 = scmp.eq.s32.totalorder %s31, 2
      %p44 = por %p42, %p43
      %p45 = scmp.ne.s32.totalorder %s36, %s37
      %p46 = scmp.eq.s32.totalorder %s31, 0
      %p47 = por %p45, %p46
      %p48 = scmp.ne.s32.totalorder %s36, %s37
      %p49 = scmp.eq.s32.totalorder %s32, 2
      %p50 = por %p48, %p49
      %p52 = scmp.ne.s32.totalorder %s37, %s51
      %p53 = scmp.eq.s32.totalorder %s32, 0
      %p54 = por %p52, %p53
      %s56 = sadd.s32 %s55, 1
      %p59 = scmp.eq.s32.totalorder %s26, 2
      %p60 = scmp.ne.s32.totalorder %s55, %s57
      %p61 = scmp.eq.s32.totalorder %s26, 0
      %p62 = por %p60, %p61
      %p63 = scmp.ne.s32.totalorder %s55, %s57
      %p64 = scmp.eq.s32.totalorder %s31, 2
      %p65 = por %p63, %p64
      %p66 = scmp.ne.s32.totalorder %s57, %s58
      %p67 = scmp.eq.s32.totalorder %s31, 0
      %p68 = por %p66, %p67
      %p69 = scmp.ne.s32.totalorder %s57, %s58
      %p70 = scmp.eq.s32.totalorder %s32, 2
      %p71 = por %p69, %p70
      %p73 = scmp.ne.s32.totalorder %s58, %s72
      %p74 = scmp.eq.s32.totalorder %s32, 0
      %p75 = por %p73, %p74
      %s77 = sadd.s32 %s76, 1
      %p80 = scmp.eq.s32.totalorder %s26, 2
      %p81 = scmp.ne.s32.totalorder %s76, %s78
      %p82 = scmp.eq.s32.totalorder %s26, 0
      %p83 = por %p81, %p82
      %p84 = scmp.ne.s32.totalorder %s76, %s78
      %p85 = scmp.eq.s32.totalorder %s31, 2
      %p86 = por %p84, %p85
      %p87 = scmp.ne.s32.totalorder %s78, %s79
      %p88 = scmp.eq.s32.totalorder %s31, 0
      %p89 = por %p87, %p88
      %p90 = scmp.ne.s32.totalorder %s78, %s79
      %p91 = scmp.eq.s32.totalorder %s32, 2
      %p92 = por %p90, %p91
      %p94 = scmp.ne.s32.totalorder %s79, %s93
      %p95 = scmp.eq.s32.totalorder %s32, 0
      %p96 = por %p94, %p95
      %s98 = sadd.s32 %s97, 1
      %p101 = scmp.eq.s32.totalorder %s26, 2
      %p102 = scmp.ne.s32.totalorder %s97, %s99
      %p103 = scmp.eq.s32.totalorder %s26, 0
      %p104 = por %p102, %p103
      %p105 = scmp.ne.s32.totalorder %s97, %s99
      %p106 = scmp.eq.s32.totalorder %s31, 2
      %p107 = por %p105, %p106
      %p108 = scmp.ne.s32.totalorder %s99, %s100
      %p109 = scmp.eq.s32.totalorder %s31, 0
      %p110 = por %p108, %p109
      %p111 = scmp.ne.s32.totalorder %s99, %s100
      %p112 = scmp.eq.s32.totalorder %s32, 2
      %p113 = por %p111, %p112
      %p115 = scmp.ne.s32.totalorder %s100, %s114
      %p116 = scmp.eq.s32.totalorder %s32, 0
      %p117 = por %p115, %p116
      %s119 = sadd.s32 %s118, 1
      %p122 = scmp.eq.s32.totalorder %s26, 2
      %p123 = scmp.ne.s32.totalorder %s118, %s120
      %p124 = scmp.eq.s32.totalorder %s26, 0
      %p125 = por %p123, %p124
      %p126 = scmp.ne.s32.totalorder %s118, %s120
      %p127 = scmp.eq.s32.totalorder %s31, 2
      %p128 = por %p126, %p127
      %p129 = scmp.ne.s32.totalorder %s120, %s121
      %p130 = scmp.eq.s32.totalorder %s31, 0
      %p131 = por %p129, %p130
      %p132 = scmp.ne.s32.totalorder %s120, %s121
      %p133 = scmp.eq.s32.totalorder %s32, 2
      %p134 = por %p132, %p133
      %p136 = scmp.ne.s32.totalorder %s121, %s135
      %p137 = scmp.eq.s32.totalorder %s32, 0
      %p138 = por %p136, %p137
      %s139 = ssub.s32 %s26, %s33
      %p140 = scmp.eq.s32.totalorder %s139, 0
      %s142 = sadd.s32 %s141, 1
      %s143 = scalar_select %p140, %s141, %s142
      %p146 = pneg %p140
      %p147 = scmp.eq.s32.totalorder %s26, 2
      %p148 = por %p146, %p147
      %p149 = scmp.ne.s32.totalorder %s141, %s144
      %p150 = scmp.eq.s32.totalorder %s26, 0
      %p151 = por %p149, %p150
      %p152 = scmp.ne.s32.totalorder %s141, %s144
      %p153 = scmp.eq.s32.totalorder %s31, 2
      %p154 = por %p152, %p153
      %p155 = scmp.ne.s32.totalorder %s144, %s145
      %p156 = scmp.eq.s32.totalorder %s31, 0
      %p157 = por %p155, %p156
      %p158 = scmp.ne.s32.totalorder %s144, %s145
      %p159 = scmp.eq.s32.totalorder %s32, 2
      %p160 = por %p158, %p159
      %p162 = scmp.ne.s32.totalorder %s145, %s161
      %p163 = scmp.eq.s32.totalorder %s32, 0
      %p164 = por %p162, %p163
      %s165 = ssub.s32 %s26, %s33
      %p166 = scmp.eq.s32.totalorder %s165, 0
      %s168 = sadd.s32 %s167, 1
      %s169 = scalar_select %p166, %s167, %s168
      %p172 = pneg %p166
      %p173 = scmp.eq.s32.totalorder %s26, 2
      %p174 = por %p172, %p173
      %p175 = scmp.ne.s32.totalorder %s167, %s170
      %p176 = scmp.eq.s32.totalorder %s26, 0
      %p177 = por %p175, %p176
      %p178 = scmp.ne.s32.totalorder %s167, %s170
      %p179 = scmp.eq.s32.totalorder %s31, 2
      %p180 = por %p178, %p179
      %p181 = scmp.ne.s32.totalorder %s170, %s171
      %p182 = scmp.eq.s32.totalorder %s31, 0
      %p183 = por %p181, %p182
      %p184 = scmp.ne.s32.totalorder %s170, %s171
      %p185 = scmp.eq.s32.totalorder %s32, 2
      %p186 = por %p184, %p185
      %p188 = scmp.ne.s32.totalorder %s171, %s187
      %p189 = scmp.eq.s32.totalorder %s32, 0
      %p190 = por %p188, %p189
      %s191 = ssub.s32 %s26, %s33
      %p192 = scmp.eq.s32.totalorder %s191, 0
      %s194 = sadd.s32 %s193, 1
      %s195 = scalar_select %p192, %s193, %s194
      %p198 = pneg %p192
      %p199 = scmp.eq.s32.totalorder %s26, 2
      %p200 = por %p198, %p199
      %p201 = scmp.ne.s32.totalorder %s193, %s196
      %p202 = scmp.eq.s32.totalorder %s26, 0
      %p203 = por %p201, %p202
      %p204 = scmp.ne.s32.totalorder %s193, %s196
      %p205 = scmp.eq.s32.totalorder %s31, 2
      %p206 = por %p204, %p205
      %p207 = scmp.ne.s32.totalorder %s196, %s197
      %p208 = scmp.eq.s32.totalorder %s31, 0
      %p209 = por %p207, %p208
      %p210 = scmp.ne.s32.totalorder %s196, %s197
      %p211 = scmp.eq.s32.totalorder %s32, 2
      %p212 = por %p210, %p211
      %p214 = scmp.ne.s32.totalorder %s197, %s213
      %p215 = scmp.eq.s32.totalorder %s32, 0
      %p216 = por %p214, %p215
      %s218 = sadd.s32 %s217, 1
      %p221 = scmp.eq.s32.totalorder %s26, 2
      %p222 = scmp.ne.s32.totalorder %s217, %s219
      %p223 = scmp.eq.s32.totalorder %s26, 0
      %p224 = por %p222, %p223
      %p225 = scmp.ne.s32.totalorder %s217, %s219
      %p226 = scmp.eq.s32.totalorder %s31, 2
      %p227 = por %p225, %p226
      %p228 = scmp.ne.s32.totalorder %s219, %s220
      %p229 = scmp.eq.s32.totalorder %s31, 0
      %p230 = por %p228, %p229
      %p231 = scmp.ne.s32.totalorder %s219, %s220
      %p232 = scmp.eq.s32.totalorder %s32, 2
      %p233 = por %p231, %p232
      %p235 = scmp.ne.s32.totalorder %s220, %s234
      %p236 = scmp.eq.s32.totalorder %s32, 0
      %p237 = por %p235, %p236
      %s239 = sadd.s32 %s238, 1
      %p242 = scmp.eq.s32.totalorder %s26, 2
      %p243 = scmp.ne.s32.totalorder %s238, %s240
      %p244 = scmp.eq.s32.totalorder %s26, 0
      %p245 = por %p243, %p244
      %p246 = scmp.ne.s32.totalorder %s238, %s240
      %p247 = scmp.eq.s32.totalorder %s31, 2
      %p248 = por %p246, %p247
      %p249 = scmp.ne.s32.totalorder %s240, %s241
      %p250 = scmp.eq.s32.totalorder %s31, 0
      %p251 = por %p249, %p250
      %p252 = scmp.ne.s32.totalorder %s240, %s241
      %p253 = scmp.eq.s32.totalorder %s32, 2
      %p254 = por %p252, %p253
      %p256 = scmp.ne.s32.totalorder %s241, %s255
      %p257 = scmp.eq.s32.totalorder %s32, 0
      %p258 = por %p256, %p257
      %s260 = sadd.s32 %s259, 1
      %p263 = scmp.eq.s32.totalorder %s26, 2
      %p264 = scmp.ne.s32.totalorder %s259, %s261
      %p265 = scmp.eq.s32.totalorder %s26, 0
      %p266 = por %p264, %p265
      %p267 = scmp.ne.s32.totalorder %s259, %s261
      %p268 = scmp.eq.s32.totalorder %s31, 2
      %p269 = por %p267, %p268
      %p270 = scmp.ne.s32.totalorder %s261, %s262
      %p271 = scmp.eq.s32.totalorder %s31, 0
      %p272 = por %p270, %p271
      %p273 = scmp.ne.s32.totalorder %s261, %s262
      %p274 = scmp.eq.s32.totalorder %s32, 2
      %p275 = por %p273, %p274
      %p277 = scmp.ne.s32.totalorder %s262, %s276
      %p278 = scmp.eq.s32.totalorder %s32, 0
      %p279 = por %p277, %p278
      %s281 = sadd.s32 %s280, 1
      %p284 = scmp.eq.s32.totalorder %s26, 2
      %p285 = scmp.ne.s32.totalorder %s280, %s282
      %p286 = scmp.eq.s32.totalorder %s26, 0
      %p287 = por %p285, %p286
      %p288 = scmp.ne.s32.totalorder %s280, %s282
      %p289 = scmp.eq.s32.totalorder %s31, 2
      %p290 = por %p288, %p289
      %p291 = scmp.ne.s32.totalorder %s282, %s283
      %p292 = scmp.eq.s32.totalorder %s31, 0
      %p293 = por %p291, %p292
      %p294 = scmp.ne.s32.totalorder %s282, %s283
      %p295 = scmp.eq.s32.totalorder %s32, 2
      %p296 = por %p294, %p295
      %p298 = scmp.ne.s32.totalorder %s283, %s297
      %p299 = scmp.eq.s32.totalorder %s32, 0
      %p300 = por %p298, %p299
      %s302 = sadd.s32 %s301, 1
      %p305 = scmp.eq.s32.totalorder %s26, 2
      %p306 = scmp.ne.s32.totalorder %s301, %s303
      %p307 = scmp.eq.s32.totalorder %s26, 0
      %p308 = por %p306, %p307
      %p309 = scmp.ne.s32.totalorder %s301, %s303
      %p310 = scmp.eq.s32.totalorder %s31, 2
      %p311 = por %p309, %p310
      %p312 = scmp.ne.s32.totalorder %s303, %s304
      %p313 = scmp.eq.s32.totalorder %s31, 0
      %p314 = por %p312, %p313
      %p315 = scmp.ne.s32.totalorder %s303, %s304
      %p316 = scmp.eq.s32.totalorder %s32, 2
      %p317 = por %p315, %p316
      %p319 = scmp.ne.s32.totalorder %s304, %s318
      %p320 = scmp.eq.s32.totalorder %s32, 0
      %p321 = por %p319, %p320
      %s323 = sadd.s32 %s322, 1
      %p326 = scmp.eq.s32.totalorder %s26, 2
      %p327 = scmp.ne.s32.totalorder %s322, %s324
      %p328 = scmp.eq.s32.totalorder %s26, 0
      %p329 = por %p327, %p328
      %p330 = scmp.ne.s32.totalorder %s322, %s324
      %p331 = scmp.eq.s32.totalorder %s31, 2
      %p332 = por %p330, %p331
      %p333 = scmp.ne.s32.totalorder %s324, %s325
      %p334 = scmp.eq.s32.totalorder %s31, 0
      %p335 = por %p333, %p334
      %p336 = scmp.ne.s32.totalorder %s324, %s325
      %p337 = scmp.eq.s32.totalorder %s32, 2
      %p338 = por %p336, %p337
      %p340 = scmp.ne.s32.totalorder %s325, %s339
      %p341 = scmp.eq.s32.totalorder %s32, 0
      %p342 = por %p340, %p341
      %s344 = sadd.s32 %s343, 1
      %p347 = scmp.eq.s32.totalorder %s26, 2
      %p348 = scmp.ne.s32.totalorder %s343, %s345
      %p349 = scmp.eq.s32.totalorder %s26, 0
      %p350 = por %p348, %p349
      %p351 = scmp.ne.s32.totalorder %s343, %s345
      %p352 = scmp.eq.s32.totalorder %s31, 2
      %p353 = por %p351, %p352
      %p354 = scmp.ne.s32.totalorder %s345, %s346
      %p355 = scmp.eq.s32.totalorder %s31, 0
      %p356 = por %p354, %p355
      %p357 = scmp.ne.s32.totalorder %s345, %s346
      %p358 = scmp.eq.s32.totalorder %s32, 2
      %p359 = por %p357, %p358
      %p361 = scmp.ne.s32.totalorder %s346, %s360
      %p362 = scmp.eq.s32.totalorder %s32, 0
      %p363 = por %p361, %p362
      %p364 = scmp.le.s32.totalorder 1, %s26
      %p365 = scmp.lt.s32.totalorder %s26, 4
      %p366 = pnand %p364, %p365
      %p367 = pneg %p366
      // Predicated region
      $region9: #{tpu_custom_call.1} parent=5 // pred_check
        _
      $region10: #{tpu_custom_call.1} parent=5 // pred_check_branch
        %369 = sbr.rel (%p366) target = $region12
      $region11: #{tpu_custom_call.1} parent=5 // pred_region
        %s370 = ssub.s32 %s26, 1
        // Predicated region
        $region13: #{tpu_custom_call.1} parent=11 // pred_check
          %p371 = pneg %p47
        $region14: #{tpu_custom_call.1} parent=11 // pred_check_branch
          %373 = sbr.rel (%p371) target = $region16
        $region15: #{tpu_custom_call.1} parent=11 // pred_region
          _
        $region16: #{tpu_custom_call.1} parent=11 // pred_fallthru
          _
        // Predicated region
        $region17: #{tpu_custom_call.1} parent=11 // pred_check
          %p374 = pneg %p68
        $region18: #{tpu_custom_call.1} parent=11 // pred_check_branch
          %376 = sbr.rel (%p374) target = $region20
        $region19: #{tpu_custom_call.1} parent=11 // pred_region
          _
        $region20: #{tpu_custom_call.1} parent=11 // pred_fallthru
          _
        // Predicated region
        $region21: #{tpu_custom_call.1} parent=11 // pred_check
          %p377 = pneg %p89
        $region22: #{tpu_custom_call.1} parent=11 // pred_check_branch
          %379 = sbr.rel (%p377) target = $region24
        $region23: #{tpu_custom_call.1} parent=11 // pred_region
          _
        $region24: #{tpu_custom_call.1} parent=11 // pred_fallthru
          _
        // Predicated region
        $region25: #{tpu_custom_call.1} parent=11 // pred_check
          %p380 = pneg %p110
        $region26: #{tpu_custom_call.1} parent=11 // pred_check_branch
          %382 = sbr.rel (%p380) target = $region28
        $region27: #{tpu_custom_call.1} parent=11 // pred_region
          _
        $region28: #{tpu_custom_call.1} parent=11 // pred_fallthru
          _
        // Predicated region
        $region29: #{tpu_custom_call.1} parent=11 // pred_check
          %p383 = pneg %p131
        $region30: #{tpu_custom_call.1} parent=11 // pred_check_branch
          %385 = sbr.rel (%p383) target = $region32
        $region31: #{tpu_custom_call.1} parent=11 // pred_region
          %387 = vsyncadd [#allocation5], 0
          %s388 = sshll.u32 %s4, 4
          %s389 = int_to_ptr.hbm [resolvable:$true] %s388
          %s390 = sshll.u32 [#allocation4], 4
          %s391 = int_to_ptr.vmem [resolvable:$true] %s390
          %396 = dma.hbm_to_vmem [thread:$0]  %s389, 256, %s391, [#allocation5], 128, 128, 8
        $region32: #{tpu_custom_call.1} parent=11 // pred_fallthru
          _
        // Predicated region
        $region33: #{tpu_custom_call.1} parent=11 // pred_check
          %p397 = pneg %p230
        $region34: #{tpu_custom_call.1} parent=11 // pred_check_branch
          %399 = sbr.rel (%p397) target = $region36
        $region35: #{tpu_custom_call.1} parent=11 // pred_region
          %401 = vsyncadd [#allocation8], 0
          %s403 = sshll.u32 %s8, 4
          %s404 = int_to_ptr.hbm [resolvable:$true] %s403
          %s405 = sshll.u32 [#allocation7], 4
          %s406 = int_to_ptr.vmem [resolvable:$true] %s405
          %408 = dma.hbm_to_vmem [thread:$0]  %s404, 128, %s406, [#allocation8]
        $region36: #{tpu_custom_call.1} parent=11 // pred_fallthru
          _
        // Predicated region
        $region37: #{tpu_custom_call.1} parent=11 // pred_check
          %p409 = pneg %p251
        $region38: #{tpu_custom_call.1} parent=11 // pred_check_branch
          %411 = sbr.rel (%p409) target = $region40
        $region39: #{tpu_custom_call.1} parent=11 // pred_region
          _
        $region40: #{tpu_custom_call.1} parent=11 // pred_fallthru
          _
        // Predicated region
        $region41: #{tpu_custom_call.1} parent=11 // pred_check
          %p412 = pneg %p272
        $region42: #{tpu_custom_call.1} parent=11 // pred_check_branch
          %414 = sbr.rel (%p412) target = $region44
        $region43: #{tpu_custom_call.1} parent=11 // pred_region
          _
        $region44: #{tpu_custom_call.1} parent=11 // pred_fallthru
          _
        // Predicated region
        $region45: #{tpu_custom_call.1} parent=11 // pred_check
          %p415 = pneg %p293
        $region46: #{tpu_custom_call.1} parent=11 // pred_check_branch
          %417 = sbr.rel (%p415) target = $region48
        $region47: #{tpu_custom_call.1} parent=11 // pred_region
          _
        $region48: #{tpu_custom_call.1} parent=11 // pred_fallthru
          _
        // Predicated region
        $region49: #{tpu_custom_call.1} parent=11 // pred_check
          %p418 = pneg %p314
        $region50: #{tpu_custom_call.1} parent=11 // pred_check_branch
          %420 = sbr.rel (%p418) target = $region52
        $region51: #{tpu_custom_call.1} parent=11 // pred_region
          _
        $region52: #{tpu_custom_call.1} parent=11 // pred_fallthru
          _
      $region12: #{tpu_custom_call.1} parent=5 // pred_fallthru
        _
      %p421 = scmp.lt.s32.totalorder %s26, 3
      // Predicated region
      $region53: #{tpu_custom_call.1} parent=5 // pred_check
        %p422 = pneg %p421
      $region54: #{tpu_custom_call.1} parent=5 // pred_check_branch
        %424 = sbr.rel (%p422) target = $region56
      $region55: #{tpu_custom_call.1} parent=5 // pred_region
        // Predicated region
        $region57: #{tpu_custom_call.1} parent=55 // pred_check
          %p425 = pneg %p151
        $region58: #{tpu_custom_call.1} parent=55 // pred_check_branch
          %427 = sbr.rel (%p425) target = $region60
        $region59: #{tpu_custom_call.1} parent=55 // pred_region
          %p428 = scmp.lt.s32.totalorder %s26, 2
          %s429 = scalar_select %p428, %s26, 2
          %s430 = smul.addr %s429, 4
          %s431 = smul.addr %s430, 8
          %s432 = scalar_lea.vmem %s5, %s431
        $region60: #{tpu_custom_call.1} parent=55 // pred_fallthru
          _
        // Predicated region
        $region61: #{tpu_custom_call.1} parent=55 // pred_check
          %p433 = pneg %p177
        $region62: #{tpu_custom_call.1} parent=55 // pred_check_branch
          %435 = sbr.rel (%p433) target = $region64
        $region63: #{tpu_custom_call.1} parent=55 // pred_region
          %p436 = scmp.lt.s32.totalorder %s26, 2
          %s437 = scalar_select %p436, %s26, 2
          %s438 = smul.addr %s437, 2
          %s439 = smul.addr %s438, 8
          %s440 = scalar_lea.vmem %s6, %s439
        $region64: #{tpu_custom_call.1} parent=55 // pred_fallthru
          _
        // Predicated region
        $region65: #{tpu_custom_call.1} parent=55 // pred_check
          %p441 = pneg %p203
        $region66: #{tpu_custom_call.1} parent=55 // pred_check_branch
          %443 = sbr.rel (%p441) target = $region68
        $region67: #{tpu_custom_call.1} parent=55 // pred_region
          %p444 = scmp.lt.s32.totalorder %s26, 2
          %s445 = scalar_select %p444, %s26, 2
          %s446 = scalar_lea.vmem %s7, %s445
        $region68: #{tpu_custom_call.1} parent=55 // pred_fallthru
          _
      $region56: #{tpu_custom_call.1} parent=5 // pred_fallthru
        _
      %p447 = scmp.le.s32.totalorder 1, %s26
      %p448 = scmp.lt.s32.totalorder %s26, 4
      %p449 = pnand %p447, %p448
      %p450 = pneg %p449
      // Predicated region
      $region69: #{tpu_custom_call.1} parent=5 // pred_check
        _
      $region70: #{tpu_custom_call.1} parent=5 // pred_check_branch
        %452 = sbr.rel (%p449) target = $region72
      $region71: #{tpu_custom_call.1} parent=5 // pred_region
        %s453 = ssub.s32 %s26, 1
        // Predicated region
        $region73: #{tpu_custom_call.1} parent=71 // pred_check
          %p454 = pneg %p131
        $region74: #{tpu_custom_call.1} parent=71 // pred_check_branch
          %456 = sbr.rel (%p454) target = $region76
        $region75: #{tpu_custom_call.1} parent=71 // pred_region
          %458 = dma.done [#allocation5], 256
        $region76: #{tpu_custom_call.1} parent=71 // pred_fallthru
          _
        // Predicated region
        $region77: #{tpu_custom_call.1} parent=71 // pred_check
          %p459 = pneg %p230
        $region78: #{tpu_custom_call.1} parent=71 // pred_check_branch
          %461 = sbr.rel (%p459) target = $region80
        $region79: #{tpu_custom_call.1} parent=71 // pred_region
          %463 = dma.done [#allocation8], 128
        $region80: #{tpu_custom_call.1} parent=71 // pred_fallthru
          _
        %p464 = pneg %p47
        %p465 = pneg %p44
        %p466 = pneg %p68
        %p467 = pneg %p65
        %p468 = pneg %p89
        %p469 = pneg %p86
        %p470 = pneg %p110
        %p471 = pneg %p107
        %p472 = pneg %p131
        %p473 = pneg %p128
        %p474 = scmp.lt.s32.totalorder %s31, 2
        %s475 = scalar_select %p474, %s31, 2
        %s476 = smul.addr %s475, 4
        %s477 = smul.addr %s476, 8
        %s478 = scalar_lea.vmem %s5, %s477
        %p479 = pneg %p157
        %p480 = pneg %p154
        %p481 = scmp.lt.s32.totalorder %s31, 2
        %s482 = scalar_select %p481, %s31, 2
        %s483 = smul.addr %s482, 2
        %s484 = smul.addr %s483, 8
        %s485 = scalar_lea.vmem %s6, %s484
        %p486 = pneg %p183
        %p487 = pneg %p180
        %p488 = scmp.lt.s32.totalorder %s31, 2
        %s489 = scalar_select %p488, %s31, 2
        %s490 = scalar_lea.vmem %s7, %s489
        %p491 = pneg %p209
        %p492 = pneg %p206
        %p493 = pneg %p230
        %p494 = pneg %p227
        %p495 = pneg %p251
        %p496 = pneg %p248
        %p497 = pneg %p272
        %p498 = pneg %p269
        %p499 = pneg %p293
        %p500 = pneg %p290
        %p501 = pneg %p314
        %p502 = pneg %p311
        %p503 = pneg %p335
        %p504 = pneg %p332
        %p505 = pneg %p356
        %p506 = pneg %p353
        %p507 = scmp.lt.s32.totalorder %s31, 2
        %s508 = scalar_select %p507, %s31, 2
        %s509 = smul.addr %s508, 4
        %s510 = smul.addr %s509, 8
        %s511 = scalar_lea.vmem %s5, %s510
        %p512 = scmp.lt.s32.totalorder %s31, 2
        %s513 = scalar_select %p512, %s31, 2
        %s514 = smul.addr %s513, 2
        %s515 = smul.addr %s514, 8
        %s516 = scalar_lea.vmem %s6, %s515
        %p517 = scmp.lt.s32.totalorder %s31, 2
        %s518 = scalar_select %p517, %s31, 2
        %s519 = scalar_lea.vmem %s7, %s518
        %p520 = scmp.eq.s32.totalorder %s31, 0
        // Predicated region
        $region81: #{tpu_custom_call.1} parent=71 // pred_check
          %p521 = pneg %p520
        $region82: #{tpu_custom_call.1} parent=71 // pred_check_branch
          %523 = sbr.rel (%p521) target = $region84
        $region83: #{tpu_custom_call.1} parent=71 // pred_region
          %v524 = vld [vmem:[%s0] sm:$0xff]
          %v525 = vld [vmem:[%s0 + $0x8] sm:$0xff]
          %v526 = vld [vmem:[%s1] sm:$0xff]
          %v527 = vld [vmem:[%s1 + $0x8] sm:$0x1f]
          %v528 = vld [vmem:[%s2] sm:$0x1]
          %v530 = vperm.slane %v528, 0
          %vm532 = vcmask 105472
          %v534 = vsel %vm532, %v524, 0
          %v537 = vsel %vm532, %v525, 0
          %vm539 = vcmask 1044480
          %v541 = vsel %vm539, %v527, 0
          %543 = vmatpush.msra.mxu0 0.0
          %544 = vmatpush.msra.mxu0 0.0
          %545 = vmatpush.msra.mxu0 0.0
          %546 = vmatpush.msra.mxu0 0.0
          %547 = vmatpush.msra.mxu0 0.0
          %548 = vmatpush.msra.mxu0 0.0
          %549 = vmatpush.msra.mxu0 0.0
          %550 = vmatpush.msra.mxu0 0.0
          %551 = vmatpush.msra.mxu0 0.0
          %552 = vmatpush.msra.mxu0 0.0
          %553 = vmatpush.msra.mxu0 0.0
          %554 = vmatpush.msra.mxu0 0.0
          %555 = vmatpush.msra.mxu0 0.0
          %556 = vmatpush.msra.mxu0 0.0
          %557 = vmatpush.msra.mxu0 %v541
          %558 = vmatpush.msra.mxu0 %v526
          %559 = vmatmul.f32.gmra.mxu0 %v534
          %v560 = vpop.f32.mrf.mxu0
          %v561 = vadd.f32 %v530, %v560
          %562 = vmatmul.f32.gmra.mxu0 %v537
          %v563 = vpop.f32.mrf.mxu0
          %v564 = vadd.f32 %v530, %v563
          %565 = vdwg.mxu0
          %vm566 = vcmask 261120
          %567 = vst.msk [vmem:[#allocation9] sm:$0xff] %vm566, %v561
          %568 = vst.msk [vmem:[#allocation9 + $0x8] sm:$0xff] %vm566, %v564
        $region84: #{tpu_custom_call.1} parent=71 // pred_fallthru
          _
        %v569 = vld [vmem:[#allocation9] sm:$0xff]
        %v570 = vld [vmem:[#allocation9 + $0x8] sm:$0xff]
        %v571 = vld [vmem:[%s511] sm:$0xff]
        %v572 = vld [vmem:[%s511 + $0x8] sm:$0xff]
        %v573 = vld [vmem:[%s511 + $0x10] sm:$0xff]
        %v574 = vld [vmem:[%s511 + $0x18] sm:$0xff]
        %vm575 = vcmask 261120
        %v577 = vsel %vm575, %v569, 0
        %v580 = vsel %vm575, %v570, 0
        %582 = vmatpush.msra.mxu0 0.0
        %583 = vmatpush.msra.mxu0 0.0
        %584 = vmatpush.msra.mxu0 0.0
        %585 = vmatpush.msra.mxu0 0.0
        %586 = vmatpush.msra.mxu0 0.0
        %587 = vmatpush.msra.mxu0 0.0
        %588 = vmatpush.msra.mxu0 0.0
        %589 = vmatpush.msra.mxu0 0.0
        %590 = vmatpush.msra.mxu0 0.0
        %591 = vmatpush.msra.mxu0 0.0
        %592 = vmatpush.msra.mxu0 0.0
        %593 = vmatpush.msra.mxu0 0.0
        %594 = vmatpush.msra.mxu0 %v574
        %595 = vmatpush.msra.mxu0 %v573
        %596 = vmatpush.msra.mxu0 %v572
        %597 = vmatpush.msra.mxu0 %v571
        %598 = vmatmul.f32.gmra.mxu0 %v577
        %v599 = vpop.f32.mrf.mxu0
        %v600 = vadd.f32 0.0, %v599
        %601 = vmatmul.f32.gmra.mxu0 %v580
        %v602 = vpop.f32.mrf.mxu0
        %v603 = vadd.f32 0.0, %v602
        %604 = vdwg.mxu0
        %v605 = vld [vmem:[%s516] sm:$0xff]
        %v606 = vld [vmem:[%s516 + $0x8] sm:$0xff]
        %vm607 = vcmask 523264
        %608 = vst.msk [vmem:[#allocation2] sm:$0xff] %vm607, %v605
        %609 = vst.msk [vmem:[#allocation2 + $0x8] sm:$0xff] %vm607, %v606
        %612 = vrot.lane.b32.xlu0 %v600, 64
        %v613 = vpop.permute.xlu0 %612
        %614 = vrot.lane.b32.xlu0 %v603, 64
        %v615 = vpop.permute.xlu0 %614
        %618 = vst.msk [vmem:[#allocation2 + $0x10] sm:$0xff] %vm607, %v613
        %619 = vst.msk [vmem:[#allocation2 + $0x18] sm:$0xff] %vm607, %v615
        %v620 = vld [vmem:[%s519] sm:$0x1]
        %v622 = vperm.slane %v620, 0
        %v624 = vadd.f32 %v600, %v622
        %v625 = vadd.f32 %v603, %v622
        %626 = vst.msk [vmem:[#allocation2 + $0x20] sm:$0xff] %vm607, %v624
        %627 = vst.msk [vmem:[#allocation2 + $0x28] sm:$0xff] %vm607, %v625
        %v628 = vld [vmem:[%s3] sm:$0xff]
        %v629 = vld [vmem:[%s3 + $0x8] sm:$0xff]
        %v630 = vld [vmem:[%s3 + $0x10] sm:$0xff]
        %v631 = vld [vmem:[%s3 + $0x18] sm:$0xff]
        %v632 = vld [vmem:[%s3 + $0x20] sm:$0xff]
        %v633 = vld [vmem:[%s3 + $0x28] sm:$0xff]
        %v634 = vld [vmem:[%s3 + $0x30] sm:$0xff]
        %v635 = vld [vmem:[%s3 + $0x38] sm:$0xff]
        %v636 = vld [vmem:[%s3 + $0x40] sm:$0xff]
        %v637 = vld [vmem:[%s3 + $0x48] sm:$0xff]
        %v638 = vld [vmem:[%s3 + $0x50] sm:$0xff]
        %v639 = vld [vmem:[%s3 + $0x58] sm:$0xff]
        %v640 = vld [vmem:[%s3 + $0x60] sm:$0xff]
        %v641 = vld [vmem:[%s3 + $0x68] sm:$0xff]
        %v642 = vld [vmem:[%s3 + $0x70] sm:$0xff]
        %v643 = vld [vmem:[%s3 + $0x78] sm:$0xff]
        %v644 = vld [vmem:[#allocation2] sm:$0xff]
        %v645 = vld [vmem:[#allocation2 + $0x8] sm:$0xff]
        %v646 = vld [vmem:[#allocation2 + $0x10] sm:$0xff]
        %v647 = vld [vmem:[#allocation2 + $0x18] sm:$0xff]
        %v648 = vld [vmem:[#allocation2 + $0x20] sm:$0xff]
        %v649 = vld [vmem:[#allocation2 + $0x28] sm:$0xff]
        %vm650 = vcmask 392192
        %v652 = vsel %vm650, %v628, 0
        %v655 = vsel %vm650, %v629, 0
        %v658 = vsel %vm650, %v630, 0
        %v661 = vsel %vm650, %v631, 0
        %v664 = vsel %vm650, %v632, 0
        %v667 = vsel %vm650, %v633, 0
        %v670 = vsel %vm650, %v634, 0
        %v673 = vsel %vm650, %v635, 0
        %v676 = vsel %vm650, %v636, 0
        %v679 = vsel %vm650, %v637, 0
        %v682 = vsel %vm650, %v638, 0
        %v685 = vsel %vm650, %v639, 0
        %v688 = vsel %vm650, %v640, 0
        %v691 = vsel %vm650, %v641, 0
        %v694 = vsel %vm650, %v642, 0
        %v697 = vsel %vm650, %v643, 0
        %699 = vmatpush.msra.mxu0 0.0
        %700 = vmatpush.msra.mxu0 0.0
        %701 = vmatpush.msra.mxu0 0.0
        %702 = vmatpush.msra.mxu0 0.0
        %703 = vmatpush.msra.mxu0 0.0
        %704 = vmatpush.msra.mxu0 0.0
        %705 = vmatpush.msra.mxu0 0.0
        %706 = vmatpush.msra.mxu0 0.0
        %707 = vmatpush.msra.mxu0 0.0
        %708 = vmatpush.msra.mxu0 0.0
        %709 = vmatpush.msra.mxu0 %v649
        %710 = vmatpush.msra.mxu0 %v648
        %711 = vmatpush.msra.mxu0 %v647
        %712 = vmatpush.msra.mxu0 %v646
        %713 = vmatpush.msra.mxu0 %v645
        %714 = vmatpush.msra.mxu0 %v644
        %715 = vmatmul.f32.gmra.mxu0 %v652
        %v716 = vpop.f32.mrf.mxu0
        %v717 = vadd.f32 0.0, %v716
        %718 = vmatmul.f32.gmra.mxu0 %v655
        %v719 = vpop.f32.mrf.mxu0
        %v720 = vadd.f32 0.0, %v719
        %721 = vmatmul.f32.gmra.mxu0 %v658
        %v722 = vpop.f32.mrf.mxu0
        %v723 = vadd.f32 0.0, %v722
        %724 = vmatmul.f32.gmra.mxu0 %v661
        %v725 = vpop.f32.mrf.mxu0
        %v726 = vadd.f32 0.0, %v725
        %727 = vmatmul.f32.gmra.mxu0 %v664
        %v728 = vpop.f32.mrf.mxu0
        %v729 = vadd.f32 0.0, %v728
        %730 = vmatmul.f32.gmra.mxu0 %v667
        %v731 = vpop.f32.mrf.mxu0
        %v732 = vadd.f32 0.0, %v731
        %733 = vmatmul.f32.gmra.mxu0 %v670
        %v734 = vpop.f32.mrf.mxu0
        %v735 = vadd.f32 0.0, %v734
        %736 = vmatmul.f32.gmra.mxu0 %v673
        %v737 = vpop.f32.mrf.mxu0
        %v738 = vadd.f32 0.0, %v737
        %739 = vmatmul.f32.gmra.mxu0 %v676
        %v740 = vpop.f32.mrf.mxu0
        %v741 = vadd.f32 0.0, %v740
        %742 = vmatmul.f32.gmra.mxu0 %v679
        %v743 = vpop.f32.mrf.mxu0
        %v744 = vadd.f32 0.0, %v743
        %745 = vmatmul.f32.gmra.mxu0 %v682
        %v746 = vpop.f32.mrf.mxu0
        %v747 = vadd.f32 0.0, %v746
        %748 = vmatmul.f32.gmra.mxu0 %v685
        %v749 = vpop.f32.mrf.mxu0
        %v750 = vadd.f32 0.0, %v749
        %751 = vmatmul.f32.gmra.mxu0 %v688
        %v752 = vpop.f32.mrf.mxu0
        %v753 = vadd.f32 0.0, %v752
        %754 = vmatmul.f32.gmra.mxu0 %v691
        %v755 = vpop.f32.mrf.mxu0
        %v756 = vadd.f32 0.0, %v755
        %757 = vmatmul.f32.gmra.mxu0 %v694
        %v758 = vpop.f32.mrf.mxu0
        %v759 = vadd.f32 0.0, %v758
        %760 = vmatmul.f32.gmra.mxu0 %v697
        %v761 = vpop.f32.mrf.mxu0
        %v762 = vadd.f32 0.0, %v761
        %763 = vdwg.mxu0
        %v764 = vmul.f32 %v717, 0.5
        %v765 = vmul.f32 %v720, 0.5
        %v766 = vmul.f32 %v723, 0.5
        %v767 = vmul.f32 %v726, 0.5
        %v768 = vmul.f32 %v729, 0.5
        %v769 = vmul.f32 %v732, 0.5
        %v770 = vmul.f32 %v735, 0.5
        %v771 = vmul.f32 %v738, 0.5
        %v772 = vmul.f32 %v741, 0.5
        %v773 = vmul.f32 %v744, 0.5
        %v774 = vmul.f32 %v747, 0.5
        %v775 = vmul.f32 %v750, 0.5
        %v776 = vmul.f32 %v753, 0.5
        %v777 = vmul.f32 %v756, 0.5
        %v778 = vmul.f32 %v759, 0.5
        %v779 = vmul.f32 %v762, 0.5
        %v780 = vtanh.pop %v764
        %v781 = vtanh.pop %v765
        %v782 = vtanh.pop %v766
        %v783 = vtanh.pop %v767
        %v784 = vtanh.pop %v768
        %v785 = vtanh.pop %v769
        %v786 = vtanh.pop %v770
        %v787 = vtanh.pop %v771
        %v788 = vtanh.pop %v772
        %v789 = vtanh.pop %v773
        %v790 = vtanh.pop %v774
        %v791 = vtanh.pop %v775
        %v792 = vtanh.pop %v776
        %v793 = vtanh.pop %v777
        %v794 = vtanh.pop %v778
        %v795 = vtanh.pop %v779
        %v796 = vadd.f32 %v780, 1.0
        %v797 = vadd.f32 %v781, 1.0
        %v798 = vadd.f32 %v782, 1.0
        %v799 = vadd.f32 %v783, 1.0
        %v800 = vadd.f32 %v784, 1.0
        %v801 = vadd.f32 %v785, 1.0
        %v802 = vadd.f32 %v786, 1.0
        %v803 = vadd.f32 %v787, 1.0
        %v804 = vadd.f32 %v788, 1.0
        %v805 = vadd.f32 %v789, 1.0
        %v806 = vadd.f32 %v790, 1.0
        %v807 = vadd.f32 %v791, 1.0
        %v808 = vadd.f32 %v792, 1.0
        %v809 = vadd.f32 %v793, 1.0
        %v810 = vadd.f32 %v794, 1.0
        %v811 = vadd.f32 %v795, 1.0
        %v812 = vmul.f32 %v796, 0.5
        %v813 = vmul.f32 %v797, 0.5
        %v814 = vmul.f32 %v798, 0.5
        %v815 = vmul.f32 %v799, 0.5
        %v816 = vmul.f32 %v800, 0.5
        %v817 = vmul.f32 %v801, 0.5
        %v818 = vmul.f32 %v802, 0.5
        %v819 = vmul.f32 %v803, 0.5
        %v820 = vmul.f32 %v804, 0.5
        %v821 = vmul.f32 %v805, 0.5
        %v822 = vmul.f32 %v806, 0.5
        %v823 = vmul.f32 %v807, 0.5
        %v824 = vmul.f32 %v808, 0.5
        %v825 = vmul.f32 %v809, 0.5
        %v826 = vmul.f32 %v810, 0.5
        %v827 = vmul.f32 %v811, 0.5
        %v828 = vmax.f32 %v717, 0.0
        %v829 = vmax.f32 %v720, 0.0
        %v830 = vmax.f32 %v723, 0.0
        %v831 = vmax.f32 %v726, 0.0
        %v832 = vmax.f32 %v729, 0.0
        %v833 = vmax.f32 %v732, 0.0
        %v834 = vmax.f32 %v735, 0.0
        %v835 = vmax.f32 %v738, 0.0
        %v836 = vmax.f32 %v741, 0.0
        %v837 = vmax.f32 %v744, 0.0
        %v838 = vmax.f32 %v747, 0.0
        %v839 = vmax.f32 %v750, 0.0
        %v840 = vmax.f32 %v753, 0.0
        %v841 = vmax.f32 %v756, 0.0
        %v842 = vmax.f32 %v759, 0.0
        %v843 = vmax.f32 %v762, 0.0
        %v844 = vand.u32 2147483647, %v717
        %v845 = vand.u32 2147483647, %v720
        %v846 = vand.u32 2147483647, %v723
        %v847 = vand.u32 2147483647, %v726
        %v848 = vand.u32 2147483647, %v729
        %v849 = vand.u32 2147483647, %v732
        %v850 = vand.u32 2147483647, %v735
        %v851 = vand.u32 2147483647, %v738
        %v852 = vand.u32 2147483647, %v741
        %v853 = vand.u32 2147483647, %v744
        %v854 = vand.u32 2147483647, %v747
        %v855 = vand.u32 2147483647, %v750
        %v856 = vand.u32 2147483647, %v753
        %v857 = vand.u32 2147483647, %v756
        %v858 = vand.u32 2147483647, %v759
        %v859 = vand.u32 2147483647, %v762
        %v860 = vsub.f32 0.0, %v844
        %v861 = vsub.f32 0.0, %v845
        %v862 = vsub.f32 0.0, %v846
        %v863 = vsub.f32 0.0, %v847
        %v864 = vsub.f32 0.0, %v848
        %v865 = vsub.f32 0.0, %v849
        %v866 = vsub.f32 0.0, %v850
        %v867 = vsub.f32 0.0, %v851
        %v868 = vsub.f32 0.0, %v852
        %v869 = vsub.f32 0.0, %v853
        %v870 = vsub.f32 0.0, %v854
        %v871 = vsub.f32 0.0, %v855
        %v872 = vsub.f32 0.0, %v856
        %v873 = vsub.f32 0.0, %v857
        %v874 = vsub.f32 0.0, %v858
        %v875 = vsub.f32 0.0, %v859
        %v876 = vmul.f32 %v860, 1.442695
        %v877 = vpow.pop %v876
        %v878 = vmul.f32 %v861, 1.442695
        %v879 = vpow.pop %v878
        %v880 = vmul.f32 %v862, 1.442695
        %v881 = vpow.pop %v880
        %v882 = vmul.f32 %v863, 1.442695
        %v883 = vpow.pop %v882
        %v884 = vmul.f32 %v864, 1.442695
        %v885 = vpow.pop %v884
        %v886 = vmul.f32 %v865, 1.442695
        %v887 = vpow.pop %v886
        %v888 = vmul.f32 %v866, 1.442695
        %v889 = vpow.pop %v888
        %v890 = vmul.f32 %v867, 1.442695
        %v891 = vpow.pop %v890
        %v892 = vmul.f32 %v868, 1.442695
        %v893 = vpow.pop %v892
        %v894 = vmul.f32 %v869, 1.442695
        %v895 = vpow.pop %v894
        %v896 = vmul.f32 %v870, 1.442695
        %v897 = vpow.pop %v896
        %v898 = vmul.f32 %v871, 1.442695
        %v899 = vpow.pop %v898
        %v900 = vmul.f32 %v872, 1.442695
        %v901 = vpow.pop %v900
        %v902 = vmul.f32 %v873, 1.442695
        %v903 = vpow.pop %v902
        %v904 = vmul.f32 %v874, 1.442695
        %v905 = vpow.pop %v904
        %v906 = vmul.f32 %v875, 1.442695
        %v907 = vpow.pop %v906
        %v908 = vadd.f32 %v877, 1.0
        %v909 = vlog2.pop %v908
        %v910 = vmul.f32 %v909, 0.6931472
        %v911 = vmul.f32 -0.5, %v877
        %v912 = vadd.f32 %v911, 1.0
        %v913 = vmul.f32 %v912, %v877
        %v914 = vand.u32 2147483647, %v877
        %vm915 = vcmp.lt.f32.partialorder %v914, 0.0004427343
        %v916 = vsel %vm915, %v913, %v910
        %v917 = vadd.f32 %v879, 1.0
        %v918 = vlog2.pop %v917
        %v919 = vmul.f32 %v918, 0.6931472
        %v920 = vmul.f32 -0.5, %v879
        %v921 = vadd.f32 %v920, 1.0
        %v922 = vmul.f32 %v921, %v879
        %v923 = vand.u32 2147483647, %v879
        %vm924 = vcmp.lt.f32.partialorder %v923, 0.0004427343
        %v925 = vsel %vm924, %v922, %v919
        %v926 = vadd.f32 %v881, 1.0
        %v927 = vlog2.pop %v926
        %v928 = vmul.f32 %v927, 0.6931472
        %v929 = vmul.f32 -0.5, %v881
        %v930 = vadd.f32 %v929, 1.0
        %v931 = vmul.f32 %v930, %v881
        %v932 = vand.u32 2147483647, %v881
        %vm933 = vcmp.lt.f32.partialorder %v932, 0.0004427343
        %v934 = vsel %vm933, %v931, %v928
        %v935 = vadd.f32 %v883, 1.0
        %v936 = vlog2.pop %v935
        %v937 = vmul.f32 %v936, 0.6931472
        %v938 = vmul.f32 -0.5, %v883
        %v939 = vadd.f32 %v938, 1.0
        %v940 = vmul.f32 %v939, %v883
        %v941 = vand.u32 2147483647, %v883
        %vm942 = vcmp.lt.f32.partialorder %v941, 0.0004427343
        %v943 = vsel %vm942, %v940, %v937
        %v944 = vadd.f32 %v885, 1.0
        %v945 = vlog2.pop %v944
        %v946 = vmul.f32 %v945, 0.6931472
        %v947 = vmul.f32 -0.5, %v885
        %v948 = vadd.f32 %v947, 1.0
        %v949 = vmul.f32 %v948, %v885
        %v950 = vand.u32 2147483647, %v885
        %vm951 = vcmp.lt.f32.partialorder %v950, 0.0004427343
        %v952 = vsel %vm951, %v949, %v946
        %v953 = vadd.f32 %v887, 1.0
        %v954 = vlog2.pop %v953
        %v955 = vmul.f32 %v954, 0.6931472
        %v956 = vmul.f32 -0.5, %v887
        %v957 = vadd.f32 %v956, 1.0
        %v958 = vmul.f32 %v957, %v887
        %v959 = vand.u32 2147483647, %v887
        %vm960 = vcmp.lt.f32.partialorder %v959, 0.0004427343
        %v961 = vsel %vm960, %v958, %v955
        %v962 = vadd.f32 %v889, 1.0
        %v963 = vlog2.pop %v962
        %v964 = vmul.f32 %v963, 0.6931472
        %v965 = vmul.f32 -0.5, %v889
        %v966 = vadd.f32 %v965, 1.0
        %v967 = vmul.f32 %v966, %v889
        %v968 = vand.u32 2147483647, %v889
        %vm969 = vcmp.lt.f32.partialorder %v968, 0.0004427343
        %v970 = vsel %vm969, %v967, %v964
        %v971 = vadd.f32 %v891, 1.0
        %v972 = vlog2.pop %v971
        %v973 = vmul.f32 %v972, 0.6931472
        %v974 = vmul.f32 -0.5, %v891
        %v975 = vadd.f32 %v974, 1.0
        %v976 = vmul.f32 %v975, %v891
        %v977 = vand.u32 2147483647, %v891
        %vm978 = vcmp.lt.f32.partialorder %v977, 0.0004427343
        %v979 = vsel %vm978, %v976, %v973
        %v980 = vadd.f32 %v893, 1.0
        %v981 = vlog2.pop %v980
        %v982 = vmul.f32 %v981, 0.6931472
        %v983 = vmul.f32 -0.5, %v893
        %v984 = vadd.f32 %v983, 1.0
        %v985 = vmul.f32 %v984, %v893
        %v986 = vand.u32 2147483647, %v893
        %vm987 = vcmp.lt.f32.partialorder %v986, 0.0004427343
        %v988 = vsel %vm987, %v985, %v982
        %v989 = vadd.f32 %v895, 1.0
        %v990 = vlog2.pop %v989
        %v991 = vmul.f32 %v990, 0.6931472
        %v992 = vmul.f32 -0.5, %v895
        %v993 = vadd.f32 %v992, 1.0
        %v994 = vmul.f32 %v993, %v895
        %v995 = vand.u32 2147483647, %v895
        %vm996 = vcmp.lt.f32.partialorder %v995, 0.0004427343
        %v997 = vsel %vm996, %v994, %v991
        %v998 = vadd.f32 %v897, 1.0
        %v999 = vlog2.pop %v998
        %v1000 = vmul.f32 %v999, 0.6931472
        %v1001 = vmul.f32 -0.5, %v897
        %v1002 = vadd.f32 %v1001, 1.0
        %v1003 = vmul.f32 %v1002, %v897
        %v1004 = vand.u32 2147483647, %v897
        %vm1005 = vcmp.lt.f32.partialorder %v1004, 0.0004427343
        %v1006 = vsel %vm1005, %v1003, %v1000
        %v1007 = vadd.f32 %v899, 1.0
        %v1008 = vlog2.pop %v1007
        %v1009 = vmul.f32 %v1008, 0.6931472
        %v1010 = vmul.f32 -0.5, %v899
        %v1011 = vadd.f32 %v1010, 1.0
        %v1012 = vmul.f32 %v1011, %v899
        %v1013 = vand.u32 2147483647, %v899
        %vm1014 = vcmp.lt.f32.partialorder %v1013, 0.0004427343
        %v1015 = vsel %vm1014, %v1012, %v1009
        %v1016 = vadd.f32 %v901, 1.0
        %v1017 = vlog2.pop %v1016
        %v1018 = vmul.f32 %v1017, 0.6931472
        %v1019 = vmul.f32 -0.5, %v901
        %v1020 = vadd.f32 %v1019, 1.0
        %v1021 = vmul.f32 %v1020, %v901
        %v1022 = vand.u32 2147483647, %v901
        %vm1023 = vcmp.lt.f32.partialorder %v1022, 0.0004427343
        %v1024 = vsel %vm1023, %v1021, %v1018
        %v1025 = vadd.f32 %v903, 1.0
        %v1026 = vlog2.pop %v1025
        %v1027 = vmul.f32 %v1026, 0.6931472
        %v1028 = vmul.f32 -0.5, %v903
        %v1029 = vadd.f32 %v1028, 1.0
        %v1030 = vmul.f32 %v1029, %v903
        %v1031 = vand.u32 2147483647, %v903
        %vm1032 = vcmp.lt.f32.partialorder %v1031, 0.0004427343
        %v1033 = vsel %vm1032, %v1030, %v1027
        %v1034 = vadd.f32 %v905, 1.0
        %v1035 = vlog2.pop %v1034
        %v1036 = vmul.f32 %v1035, 0.6931472
        %v1037 = vmul.f32 -0.5, %v905
        %v1038 = vadd.f32 %v1037, 1.0
        %v1039 = vmul.f32 %v1038, %v905
        %v1040 = vand.u32 2147483647, %v905
        %vm1041 = vcmp.lt.f32.partialorder %v1040, 0.0004427343
        %v1042 = vsel %vm1041, %v1039, %v1036
        %v1043 = vadd.f32 %v907, 1.0
        %v1044 = vlog2.pop %v1043
        %v1045 = vmul.f32 %v1044, 0.6931472
        %v1046 = vmul.f32 -0.5, %v907
        %v1047 = vadd.f32 %v1046, 1.0
        %v1048 = vmul.f32 %v1047, %v907
        %v1049 = vand.u32 2147483647, %v907
        %vm1050 = vcmp.lt.f32.partialorder %v1049, 0.0004427343
        %v1051 = vsel %vm1050, %v1048, %v1045
        %v1052 = vadd.f32 %v828, %v916
        %v1053 = vadd.f32 %v829, %v925
        %v1054 = vadd.f32 %v830, %v934
        %v1055 = vadd.f32 %v831, %v943
        %v1056 = vadd.f32 %v832, %v952
        %v1057 = vadd.f32 %v833, %v961
        %v1058 = vadd.f32 %v834, %v970
        %v1059 = vadd.f32 %v835, %v979
        %v1060 = vadd.f32 %v836, %v988
        %v1061 = vadd.f32 %v837, %v997
        %v1062 = vadd.f32 %v838, %v1006
        %v1063 = vadd.f32 %v839, %v1015
        %v1064 = vadd.f32 %v840, %v1024
        %v1065 = vadd.f32 %v841, %v1033
        %v1066 = vadd.f32 %v842, %v1042
        %v1067 = vadd.f32 %v843, %v1051
        %1084 = vrot.lane.b32.xlu0 %v1052, 96
        %v1085 = vpop.permute.xlu0 %1084
        %1086 = vrot.lane.b32.xlu0 %v1053, 96
        %v1087 = vpop.permute.xlu0 %1086
        %1088 = vrot.lane.b32.xlu0 %v1054, 96
        %v1089 = vpop.permute.xlu0 %1088
        %1090 = vrot.lane.b32.xlu0 %v1055, 96
        %v1091 = vpop.permute.xlu0 %1090
        %1092 = vrot.lane.b32.xlu0 %v1056, 96
        %v1093 = vpop.permute.xlu0 %1092
        %1094 = vrot.lane.b32.xlu0 %v1057, 96
        %v1095 = vpop.permute.xlu0 %1094
        %1096 = vrot.lane.b32.xlu0 %v1058, 96
        %v1097 = vpop.permute.xlu0 %1096
        %1098 = vrot.lane.b32.xlu0 %v1059, 96
        %v1099 = vpop.permute.xlu0 %1098
        %1100 = vrot.lane.b32.xlu0 %v1060, 96
        %v1101 = vpop.permute.xlu0 %1100
        %1102 = vrot.lane.b32.xlu0 %v1061, 96
        %v1103 = vpop.permute.xlu0 %1102
        %1104 = vrot.lane.b32.xlu0 %v1062, 96
        %v1105 = vpop.permute.xlu0 %1104
        %1106 = vrot.lane.b32.xlu0 %v1063, 96
        %v1107 = vpop.permute.xlu0 %1106
        %1108 = vrot.lane.b32.xlu0 %v1064, 96
        %v1109 = vpop.permute.xlu0 %1108
        %1110 = vrot.lane.b32.xlu0 %v1065, 96
        %v1111 = vpop.permute.xlu0 %1110
        %1112 = vrot.lane.b32.xlu0 %v1066, 96
        %v1113 = vpop.permute.xlu0 %1112
        %1114 = vrot.lane.b32.xlu0 %v1067, 96
        %v1115 = vpop.permute.xlu0 %1114
        %v1132 = vmul.f32 %v812, %v1085
        %v1133 = vmul.f32 %v813, %v1087
        %v1134 = vmul.f32 %v814, %v1089
        %v1135 = vmul.f32 %v815, %v1091
        %v1136 = vmul.f32 %v816, %v1093
        %v1137 = vmul.f32 %v817, %v1095
        %v1138 = vmul.f32 %v818, %v1097
        %v1139 = vmul.f32 %v819, %v1099
        %v1140 = vmul.f32 %v820, %v1101
        %v1141 = vmul.f32 %v821, %v1103
        %v1142 = vmul.f32 %v822, %v1105
        %v1143 = vmul.f32 %v823, %v1107
        %v1144 = vmul.f32 %v824, %v1109
        %v1145 = vmul.f32 %v825, %v1111
        %v1146 = vmul.f32 %v826, %v1113
        %v1147 = vmul.f32 %v827, %v1115
        %v1148 = vld [vmem:[#allocation4] sm:$0xff]
        %v1149 = vld [vmem:[#allocation4 + $0x8] sm:$0xff]
        %1150 = vmatpush.msra.mxu0 %v1147
        %1151 = vmatpush.msra.mxu0 %v1146
        %1152 = vmatpush.msra.mxu0 %v1145
        %1153 = vmatpush.msra.mxu0 %v1144
        %1154 = vmatpush.msra.mxu0 %v1143
        %1155 = vmatpush.msra.mxu0 %v1142
        %1156 = vmatpush.msra.mxu0 %v1141
        %1157 = vmatpush.msra.mxu0 %v1140
        %1158 = vmatpush.msra.mxu0 %v1139
        %1159 = vmatpush.msra.mxu0 %v1138
        %1160 = vmatpush.msra.mxu0 %v1137
        %1161 = vmatpush.msra.mxu0 %v1136
        %1162 = vmatpush.msra.mxu0 %v1135
        %1163 = vmatpush.msra.mxu0 %v1134
        %1164 = vmatpush.msra.mxu0 %v1133
        %1165 = vmatpush.msra.mxu0 %v1132
        %1166 = vmatmul.f32.gmra.mxu0 %v1148
        %v1167 = vpop.f32.mrf.mxu0
        %v1168 = vadd.f32 0.0, %v1167
        %1169 = vmatmul.f32.gmra.mxu0 %v1149
        %v1170 = vpop.f32.mrf.mxu0
        %v1171 = vadd.f32 0.0, %v1170
        %1172 = vdwg.mxu0
        %v1173 = vadd.f32 %v569, %v1168
        %v1174 = vadd.f32 %v570, %v1171
        %v1175 = vmax.f32 %v1173, 0.0
        %v1176 = vmax.f32 %v1174, 0.0
        %v1177 = vand.u32 2147483647, %v1173
        %v1178 = vand.u32 2147483647, %v1174
        %v1179 = vsub.f32 0.0, %v1177
        %v1180 = vsub.f32 0.0, %v1178
        %v1181 = vmul.f32 %v1179, 1.442695
        %v1182 = vpow.pop %v1181
        %v1183 = vmul.f32 %v1180, 1.442695
        %v1184 = vpow.pop %v1183
        %v1185 = vadd.f32 %v1182, 1.0
        %v1186 = vlog2.pop %v1185
        %v1187 = vmul.f32 %v1186, 0.6931472
        %v1188 = vmul.f32 -0.5, %v1182
        %v1189 = vadd.f32 %v1188, 1.0
        %v1190 = vmul.f32 %v1189, %v1182
        %v1191 = vand.u32 2147483647, %v1182
        %vm1192 = vcmp.lt.f32.partialorder %v1191, 0.0004427343
        %v1193 = vsel %vm1192, %v1190, %v1187
        %v1194 = vadd.f32 %v1184, 1.0
        %v1195 = vlog2.pop %v1194
        %v1196 = vmul.f32 %v1195, 0.6931472
        %v1197 = vmul.f32 -0.5, %v1184
        %v1198 = vadd.f32 %v1197, 1.0
        %v1199 = vmul.f32 %v1198, %v1184
        %v1200 = vand.u32 2147483647, %v1184
        %vm1201 = vcmp.lt.f32.partialorder %v1200, 0.0004427343
        %v1202 = vsel %vm1201, %v1199, %v1196
        %v1203 = vadd.f32 %v1175, %v1193
        %v1204 = vadd.f32 %v1176, %v1202
        %1205 = vst.msk [vmem:[#allocation9] sm:$0xff] %vm575, %v1203
        %1206 = vst.msk [vmem:[#allocation9 + $0x8] sm:$0xff] %vm575, %v1204
        %p1207 = scmp.eq.s32.totalorder %s31, 2
        // Predicated region
        $region85: #{tpu_custom_call.1} parent=71 // pred_check
          %p1208 = pneg %p1207
        $region86: #{tpu_custom_call.1} parent=71 // pred_check_branch
          %1210 = sbr.rel (%p1208) target = $region88
        $region87: #{tpu_custom_call.1} parent=71 // pred_region
          %v1211 = vld [vmem:[#allocation7] sm:$0xff]
          %vm1212 = vcmask 130048
          %v1214 = vsel %vm1212, %v1211, 0
          %1216 = vmatpush.msra.mxu0 0.0
          %1217 = vmatpush.msra.mxu0 0.0
          %1218 = vmatpush.msra.mxu0 0.0
          %1219 = vmatpush.msra.mxu0 0.0
          %1220 = vmatpush.msra.mxu0 0.0
          %1221 = vmatpush.msra.mxu0 0.0
          %1222 = vmatpush.msra.mxu0 0.0
          %1223 = vmatpush.msra.mxu0 0.0
          %1224 = vmatpush.msra.mxu0 0.0
          %1225 = vmatpush.msra.mxu0 0.0
          %1226 = vmatpush.msra.mxu0 0.0
          %1227 = vmatpush.msra.mxu0 0.0
          %1228 = vmatpush.msra.mxu0 0.0
          %1229 = vmatpush.msra.mxu0 0.0
          %1230 = vmatpush.msra.mxu0 %v1204
          %1231 = vmatpush.msra.mxu0 %v1203
          %1232 = vmatmul.f32.gmra.mxu0 %v1214
          %v1233 = vpop.f32.mrf.mxu0
          %v1234 = vadd.f32 0.0, %v1233
          %1235 = vdwg.mxu0
          %v1236 = vmax.f32 %v1234, 0.0
          %v1237 = vand.u32 2147483647, %v1234
          %v1238 = vsub.f32 0.0, %v1237
          %v1239 = vmul.f32 %v1238, 1.442695
          %v1240 = vpow.pop %v1239
          %v1241 = vadd.f32 %v1240, 1.0
          %v1242 = vlog2.pop %v1241
          %v1243 = vmul.f32 %v1242, 0.6931472
          %v1244 = vmul.f32 -0.5, %v1240
          %v1245 = vadd.f32 %v1244, 1.0
          %v1246 = vmul.f32 %v1245, %v1240
          %v1247 = vand.u32 2147483647, %v1240
          %vm1248 = vcmp.lt.f32.partialorder %v1247, 0.0004427343
          %v1249 = vsel %vm1248, %v1246, %v1243
          %v1250 = vadd.f32 %v1236, %v1249
          %v1251 = vld [vmem:[%s9] sm:$0xff]
          %v1252 = vld [vmem:[%s9 + $0x8] sm:$0xff]
          %v1253 = vld [vmem:[%s9 + $0x10] sm:$0xff]
          %v1254 = vld [vmem:[%s9 + $0x18] sm:$0xff]
          %v1255 = vld [vmem:[%s10] sm:$0x1]
          %v1257 = vperm.slane %v1255, 0
          %v1260 = vsel %vm575, %v1250, 0
          %1262 = vmatpush.msra.mxu0 0.0
          %1263 = vmatpush.msra.mxu0 0.0
          %1264 = vmatpush.msra.mxu0 0.0
          %1265 = vmatpush.msra.mxu0 0.0
          %1266 = vmatpush.msra.mxu0 0.0
          %1267 = vmatpush.msra.mxu0 0.0
          %1268 = vmatpush.msra.mxu0 0.0
          %1269 = vmatpush.msra.mxu0 0.0
          %1270 = vmatpush.msra.mxu0 0.0
          %1271 = vmatpush.msra.mxu0 0.0
          %1272 = vmatpush.msra.mxu0 0.0
          %1273 = vmatpush.msra.mxu0 0.0
          %1274 = vmatpush.msra.mxu0 %v1254
          %1275 = vmatpush.msra.mxu0 %v1253
          %1276 = vmatpush.msra.mxu0 %v1252
          %1277 = vmatpush.msra.mxu0 %v1251
          %1278 = vmatmul.f32.gmra.mxu0 %v1260
          %v1279 = vpop.f32.mrf.mxu0
          %v1280 = vadd.f32 %v1257, %v1279
          %1281 = vdwg.mxu0
          %v1282 = vmax.f32 %v1280, 0.0
          %v1283 = vand.u32 2147483647, %v1280
          %v1284 = vsub.f32 0.0, %v1283
          %v1285 = vmul.f32 %v1284, 1.442695
          %v1286 = vpow.pop %v1285
          %v1287 = vadd.f32 %v1286, 1.0
          %v1288 = vlog2.pop %v1287
          %v1289 = vmul.f32 %v1288, 0.6931472
          %v1290 = vmul.f32 -0.5, %v1286
          %v1291 = vadd.f32 %v1290, 1.0
          %v1292 = vmul.f32 %v1291, %v1286
          %v1293 = vand.u32 2147483647, %v1286
          %vm1294 = vcmp.lt.f32.partialorder %v1293, 0.0004427343
          %v1295 = vsel %vm1294, %v1292, %v1289
          %v1296 = vadd.f32 %v1282, %v1295
          %v1297 = vld [vmem:[%s11] sm:$0xff]
          %v1298 = vld [vmem:[%s11 + $0x8] sm:$0xff]
          %v1299 = vld [vmem:[%s11 + $0x10] sm:$0xff]
          %v1300 = vld [vmem:[%s11 + $0x18] sm:$0xff]
          %v1301 = vld [vmem:[#allocation3] sm:$0x1]
          %v1303 = vperm.slane %v1301, 0
          %v1306 = vsel %vm575, %v1296, 0
          %1308 = vmatpush.msra.mxu0 0.0
          %1309 = vmatpush.msra.mxu0 0.0
          %1310 = vmatpush.msra.mxu0 0.0
          %1311 = vmatpush.msra.mxu0 0.0
          %1312 = vmatpush.msra.mxu0 0.0
          %1313 = vmatpush.msra.mxu0 0.0
          %1314 = vmatpush.msra.mxu0 0.0
          %1315 = vmatpush.msra.mxu0 0.0
          %1316 = vmatpush.msra.mxu0 0.0
          %1317 = vmatpush.msra.mxu0 0.0
          %1318 = vmatpush.msra.mxu0 0.0
          %1319 = vmatpush.msra.mxu0 0.0
          %1320 = vmatpush.msra.mxu0 %v1300
          %1321 = vmatpush.msra.mxu0 %v1299
          %1322 = vmatpush.msra.mxu0 %v1298
          %1323 = vmatpush.msra.mxu0 %v1297
          %1324 = vmatmul.f32.gmra.mxu0 %v1306
          %v1325 = vpop.f32.mrf.mxu0
          %v1326 = vadd.f32 %v1303, %v1325
          %1327 = vdwg.mxu0
          %vm1328 = vcmask 7168
          %1329 = vst.msk [vmem:[%s14] sm:$0xff] %vm1328, %v1326
        $region88: #{tpu_custom_call.1} parent=71 // pred_fallthru
          _
        // Predicated region
        $region89: #{tpu_custom_call.1} parent=71 // pred_check
          %p1330 = pneg %p332
        $region90: #{tpu_custom_call.1} parent=71 // pred_check_branch
          %1332 = sbr.rel (%p1330) target = $region92
        $region91: #{tpu_custom_call.1} parent=71 // pred_region
          %1334 = vsyncadd [#allocation6], 0
          %s1335 = sshll.u32 [#allocation9], 4
          %s1336 = int_to_ptr.vmem [resolvable:$true] %s1335
          %s1337 = sshll.u32 %s13, 4
          %s1338 = int_to_ptr.hbm [resolvable:$true] %s1337
          %1343 = dma.vmem_to_hbm [thread:$0]  %s1336, 256, %s1338, [#allocation6], 128, 128, 8
        $region92: #{tpu_custom_call.1} parent=71 // pred_fallthru
          _
        // Predicated region
        $region93: #{tpu_custom_call.1} parent=71 // pred_check
          %p1344 = pneg %p353
        $region94: #{tpu_custom_call.1} parent=71 // pred_check_branch
          %1346 = sbr.rel (%p1344) target = $region96
        $region95: #{tpu_custom_call.1} parent=71 // pred_region
          _
        $region96: #{tpu_custom_call.1} parent=71 // pred_fallthru
          _
        // Predicated region
        $region97: #{tpu_custom_call.1} parent=71 // pred_check
          %p1347 = pneg %p332
        $region98: #{tpu_custom_call.1} parent=71 // pred_check_branch
          %1349 = sbr.rel (%p1347) target = $region100
        $region99: #{tpu_custom_call.1} parent=71 // pred_region
          %1351 = dma.done [#allocation6], 256
        $region100: #{tpu_custom_call.1} parent=71 // pred_fallthru
          _
        // Predicated region
        $region101: #{tpu_custom_call.1} parent=71 // pred_check
          %p1352 = pneg %p353
        $region102: #{tpu_custom_call.1} parent=71 // pred_check_branch
          %1354 = sbr.rel (%p1352) target = $region104
        $region103: #{tpu_custom_call.1} parent=71 // pred_region
          _
        $region104: #{tpu_custom_call.1} parent=71 // pred_fallthru
          _
      $region72: #{tpu_custom_call.1} parent=5 // pred_fallthru
        _
      %p1355 = scmp.le.s32.totalorder 2, %s26
      // Predicated region
      $region105: #{tpu_custom_call.1} parent=5 // pred_check
        %p1356 = pneg %p1355
      $region106: #{tpu_custom_call.1} parent=5 // pred_check_branch
        %1358 = sbr.rel (%p1356) target = $region108
      $region107: #{tpu_custom_call.1} parent=5 // pred_region
        %s1359 = ssub.s32 %s26, 2
      $region108: #{tpu_custom_call.1} parent=5 // pred_fallthru
        _
    $region6: #{tpu_custom_call.1} parent=1 // loop_footer
      %s30 = sadd.s32 1, %s26
    $region7: #{tpu_custom_call.1} parent=1 // loop_footer_branch
      %25 = sbr.rel target = $region3
    $region8: #{tpu_custom_call.1} parent=1 // loop_exit
      _
    %1360 = vsyncpa [#allocation5], 1
    %s1361 = scalar_lea.sflag [#allocation5], 1
    %1362 = vsyncpa %s1361, 1
    %1363 = vsyncpa [#allocation8], 1
    %1364 = vsyncpa [#allocation6], 1
    %s1365 = scalar_lea.sflag [#allocation6], 1
    %1366 = vsyncpa %s1365, 1

</llo_original>
